<compile_context>
chip_gen: v5e
topology: v5e:2x2
jax: 0.10.0
libtpu: 0.0.40
codegen_flags: <defaults>
</compile_context>

<pallas_src>
import functools
import itertools

import numpy as np
import jax
import jax.numpy as jnp
from jax.experimental import pallas as pl
from jax.experimental.pallas import tpu as pltpu


# ----------------------------------------------------------------------------
# Deterministic parameter init (mirrors block_orthogonal from the reference).
# ----------------------------------------------------------------------------
def block_orthogonal(key, shape, split_sizes, dtype=jnp.float32):
    assert len(shape) == len(split_sizes)
    for s, sp in zip(shape, split_sizes):
        assert s % sp == 0
    init = jax.nn.initializers.orthogonal()
    out = jnp.zeros(shape, dtype)
    ranges = [range(0, s, sp) for s, sp in zip(shape, split_sizes)]
    for starts in itertools.product(*ranges):
        key, sub = jax.random.split(key)
        block = init(sub, tuple(split_sizes), dtype)
        idx = tuple(slice(st, st + sp) for st, sp in zip(starts, split_sizes))
        out = out.at[idx].set(block)
    return out


# ----------------------------------------------------------------------------
# Fused Pallas kernel: all layers, all timesteps, one invocation.
# ----------------------------------------------------------------------------
def _fused_lstm_kernel(bs_ref,                       # SMEM (T,) int32  (scalar prefetch)
                       x_ref,                        # (T*B, D_in)     layer-0 input (dense, padded)
                       h0_ref, c0_ref,               # (L, B, H), (L, B, C) initial states
                       wi0_ref,                      # (D_in, 4C)      layer-0 input weights (transposed)
                       wi_ref,                       # (L, H, 4C)      layers>=1 input weights (slot 0 unused)
                       wh_ref,                       # (L, H, 4C)      hidden weights (transposed)
                       b_ref,                        # (L, 1, 4C)      biases
                       wp_ref,                       # (L, C, H)       projection weights (transposed)
                       y_ref,                        # out (L*T*B, H)  per-layer dense outputs
                       hT_ref, cT_ref,               # out (L, B, H), (L, B, C) final states
                       zin_scr, h_scr, c_scr,        # VMEM scratch
                       *, num_layers, num_steps, batch, cell_size,
                       cell_clip, proj_clip, use_skip, mxu_dtype, unroll_time):
    L, T, B, C = num_layers, num_steps, batch, cell_size
    f32 = jnp.float32

    # Hoisted once for all layers & timesteps: row index for packed-seq masking.
    row = jax.lax.broadcasted_iota(jnp.int32, (B, 1), 0)

    for l in range(L):                               # static unroll over layers
        # ---- time-parallel input projection (off the serial recurrence path),
        #      bias folded in so the per-step epilogue has one add fewer. ----
        if l == 0:
            xin = x_ref[...]                                      # (T*B, D_in)
            wi = wi0_ref[...]
        else:
            xin = y_ref[pl.ds((l - 1) * T * B, T * B), :]         # previous layer output (T*B, H)
            wi = wi_ref[l]
        zin_scr[...] = (jnp.dot(xin.astype(mxu_dtype), wi.astype(mxu_dtype),
                                preferred_element_type=f32)
                        + b_ref[l])                               # (T*B, 4C)

        wh = wh_ref[l].astype(mxu_dtype)                          # (H, 4C)
        wp = wp_ref[l].astype(mxu_dtype)                          # (C, H)

        h_scr[...] = h0_ref[l]
        c_scr[...] = c0_ref[l]

        def step(t, l=l, wh=wh, wp=wp):
            h = h_scr[...]                                        # (B, H)
            c = c_scr[...]                                        # (B, C)

            zrow = t * B
            yrow = l * T * B + t * B
            if not isinstance(t, int):                            # dynamic t: hint alignment
                zrow = pl.multiple_of(zrow, B)
                yrow = pl.multiple_of(yrow, B)

            # Serial critical path: a single (B,H)x(H,4C) MXU matmul + epilogue.
            z = zin_scr[pl.ds(zrow, B), :] + jnp.dot(
                h.astype(mxu_dtype), wh, preferred_element_type=f32)     # (B, 4C)

            # NOTE: with C=32 the gate slices are sub-128-lane; for production
            # sizes (C a multiple of 128) these become vreg-aligned for free.
            input_gate = jax.nn.sigmoid(z[:, 0 * C:1 * C])
            forget_gate = jax.nn.sigmoid(z[:, 1 * C:2 * C])
            cell_tilde = jnp.tanh(z[:, 2 * C:3 * C])
            output_gate = jax.nn.sigmoid(z[:, 3 * C:4 * C])

            c_new = input_gate * cell_tilde + forget_gate * c
            if cell_clip > 0.0:
                c_new = jnp.clip(c_new, -cell_clip, cell_clip)
            h_new = jnp.dot((output_gate * jnp.tanh(c_new)).astype(mxu_dtype), wp,
                            preferred_element_type=f32)
            if proj_clip > 0.0:
                h_new = jnp.clip(h_new, -proj_clip, proj_clip)

            # Packed-sequence semantics: rows >= batch_sizes[t] keep their state.
            active = row < bs_ref[t]
            h_u = jnp.where(active, h_new, h)
            c_u = jnp.where(active, c_new, c)
            h_scr[...] = h_u
            c_scr[...] = c_u
            y_ref[pl.ds(yrow, B), :] = h_u

        if unroll_time:
            for t in range(T):                                    # full unroll (short T)
                step(t)
        else:
            def _body(t, carry):
                step(t)
                return carry
            jax.lax.fori_loop(0, T, _body, 0)

        if l > 0 and use_skip:
            # The reference adds layer_inputs in-place, so the stored per-layer
            # output contains the skip and also feeds the next layer.
            cur = pl.ds(l * T * B, T * B)
            prev = pl.ds((l - 1) * T * B, T * B)
            y_ref[cur, :] = y_ref[cur, :] + y_ref[prev, :]

        # Final per-layer state stored ONCE (not every timestep).
        hT_ref[l] = h_scr[...]
        cT_ref[l] = c_scr[...]


# ----------------------------------------------------------------------------
# Multi-layer module equivalent of PyUnidirectionalLstm (go_forward=True, eval).
# ----------------------------------------------------------------------------
class PallasUnidirectionalLstm:
    def __init__(self, num_layers, input_size, hidden_size, cell_size, key,
                 cell_clip=0.0, proj_clip=0.0, use_skip_connections=False,
                 mxu_dtype=jnp.float32):
        assert num_layers >= 1
        self.num_layers = num_layers
        self.input_size = input_size
        self.hidden_size = hidden_size
        self.cell_size = cell_size
        self.cell_clip = abs(cell_clip)
        self.proj_clip = abs(proj_clip)
        self.use_skip_connections = use_skip_connections
        # mxu_dtype=jnp.bfloat16 halves weight bytes and runs the v6e/v7x MXU at
        # full rate; default f32 preserves exact reference numerics.
        self.mxu_dtype = mxu_dtype

        self.params = []
        lstm_input_size = input_size
        for _ in range(num_layers):
            key, k1, k2, k3 = jax.random.split(key, 4)
            w_in = block_orthogonal(k1, (4 * cell_size, lstm_input_size),
                                    [cell_size, lstm_input_size])
            w_h = block_orthogonal(k2, (4 * cell_size, hidden_size),
                                   [cell_size, hidden_size])
            bias = jnp.zeros((4 * cell_size,), jnp.float32)
            bias = bias.at[cell_size:2 * cell_size].set(1.0)      # forget-gate bias = 1
            w_proj = block_orthogonal(k3, (hidden_size, cell_size),
                                      [hidden_size, cell_size])
            self.params.append((w_in, w_h, bias, w_proj))
            lstm_input_size = hidden_size

        # Pre-transposed / pre-stacked weights so the kernel does plain row-major
        # matmuls and indexes layers statically.
        H, C = hidden_size, cell_size
        self.wi0_t = jnp.asarray(self.params[0][0].T, jnp.float32)          # (D, 4C)
        wi_rest = [jnp.zeros((H, 4 * C), jnp.float32)]                      # slot 0 unused
        for l in range(1, num_layers):
            wi_rest.append(jnp.asarray(self.params[l][0].T, jnp.float32))   # (H, 4C)
        self.wi_t = jnp.stack(wi_rest, axis=0)                              # (L, H, 4C)
        self.wh_t = jnp.stack([jnp.asarray(p[1].T, jnp.float32)
                               for p in self.params], axis=0)               # (L, H, 4C)
        self.b_stack = jnp.stack([jnp.asarray(p[2], jnp.float32).reshape(1, 4 * C)
                                  for p in self.params], axis=0)            # (L, 1, 4C)
        self.wp_t = jnp.stack([jnp.asarray(p[3].T, jnp.float32)
                               for p in self.params], axis=0)               # (L, C, H)

    def __call__(self, packed_inputs, batch_sizes, initial_state):
        layers_h, layers_c = initial_state           # (L, B, H), (L, B, C)
        bs_np = np.asarray(batch_sizes, dtype=np.int32)
        T = int(bs_np.shape[0])
        B_state = int(layers_h.shape[1])
        assert B_state >= int(bs_np[0]), "initial_state can't fulfill inputs."
        Bp = ((B_state + 7) // 8) * 8                # pad batch rows to a sublane multiple
        D = int(packed_inputs.shape[1])
        H, C, L = self.hidden_size, self.cell_size, self.num_layers

        # Static flat row index (into the (T*Bp, .) dense layout) of every packed
        # element: one scatter to unpack, one gather per layer to re-pack.
        rows_np = np.concatenate(
            [t * Bp + np.arange(int(b), dtype=np.int32) for t, b in enumerate(bs_np)]
        ).astype(np.int32)
        rows_j = jnp.asarray(rows_np)

        x2d = jnp.zeros((T * Bp, D), jnp.float32).at[rows_j].set(
            packed_inputs.astype(jnp.float32))
        h0 = jnp.zeros((L, Bp, H), jnp.float32).at[:, :B_state].set(
            layers_h.astype(jnp.float32))
        c0 = jnp.zeros((L, Bp, C), jnp.float32).at[:, :B_state].set(
            layers_c.astype(jnp.float32))
        bs_dev = jnp.asarray(bs_np, jnp.int32)

        kernel = functools.partial(
            _fused_lstm_kernel,
            num_layers=L, num_steps=T, batch=Bp, cell_size=C,
            cell_clip=self.cell_clip, proj_clip=self.proj_clip,
            use_skip=self.use_skip_connections, mxu_dtype=self.mxu_dtype,
            unroll_time=(T <= 32))

        grid_spec = pltpu.PrefetchScalarGridSpec(
            num_scalar_prefetch=1,
            grid=(1,),                               # single invocation; T-loop is in-kernel
            in_specs=[
                pl.BlockSpec((T * Bp, D), lambda i, bs: (0, 0)),
                pl.BlockSpec((L, Bp, H), lambda i, bs: (0, 0, 0)),
                pl.BlockSpec((L, Bp, C), lambda i, bs: (0, 0, 0)),
                pl.BlockSpec((D, 4 * C), lambda i, bs: (0, 0)),
                pl.BlockSpec((L, H, 4 * C), lambda i, bs: (0, 0, 0)),
                pl.BlockSpec((L, H, 4 * C), lambda i, bs: (0, 0, 0)),
                pl.BlockSpec((L, 1, 4 * C), lambda i, bs: (0, 0, 0)),
                pl.BlockSpec((L, C, H), lambda i, bs: (0, 0, 0)),
            ],
            out_specs=[
                pl.BlockSpec((L * T * Bp, H), lambda i, bs: (0, 0)),
                pl.BlockSpec((L, Bp, H), lambda i, bs: (0, 0, 0)),
                pl.BlockSpec((L, Bp, C), lambda i, bs: (0, 0, 0)),
            ],
            scratch_shapes=[
                pltpu.VMEM((T * Bp, 4 * C), jnp.float32),   # hoisted input projections
                pltpu.VMEM((Bp, H), jnp.float32),           # hidden state
                pltpu.VMEM((Bp, C), jnp.float32),           # cell state
            ],
        )

        y2d, hT, cT = pl.pallas_call(
            kernel,
            out_shape=(jax.ShapeDtypeStruct((L * T * Bp, H), jnp.float32),
                       jax.ShapeDtypeStruct((L, Bp, H), jnp.float32),
                       jax.ShapeDtypeStruct((L, Bp, C), jnp.float32)),
            grid_spec=grid_spec,
            compiler_params=pltpu.CompilerParams(
                dimension_semantics=("arbitrary",)),
        )(bs_dev, x2d, h0, c0, self.wi0_t, self.wi_t, self.wh_t,
          self.b_stack, self.wp_t)

        outputs = [jnp.take(y2d, l * T * Bp + rows_j, axis=0) for l in range(L)]
        final_h = hT[:, :B_state]
        final_c = cT[:, :B_state]
        return outputs, (final_h, final_c)


# ----------------------------------------------------------------------------
# Pure-JAX reference: a direct port of the PyTorch loop (go_forward, eval mode).
# ----------------------------------------------------------------------------
def _reference_forward(packed, bs_np, init_h_all, init_c_all, params,
                       cell_size, cell_clip, proj_clip, use_skip):
    HIGH = jax.lax.Precision.HIGHEST
    L = len(params)
    T = len(bs_np)
    C = cell_size
    outputs, hs, cs = [], [], []
    layer_in = packed
    for l in range(L):
        w_in, w_h, bias, w_proj = params[l]
        init_h, init_c = init_h_all[l], init_c_all[l]
        bs0 = int(bs_np[0])
        h, c = init_h[:bs0], init_c[:bs0]
        fwd_h, fwd_c = [], []
        out_acc = [None] * T
        off = 0
        for t in range(T):
            b = int(bs_np[t])
            if t > 0:
                last_b = int(bs_np[t - 1])
                dec = last_b - b
                if dec > 0:
                    fwd_h.append(h[b:last_b]); fwd_c.append(c[b:last_b])
                    h, c = h[:b], c[:b]
            x = layer_in[off:off + b]
            z = (jnp.dot(x, w_in.T, precision=HIGH)
                 + jnp.dot(h, w_h.T, precision=HIGH) + bias)
            ig = jax.nn.sigmoid(z[:, 0 * C:1 * C])
            fg = jax.nn.sigmoid(z[:, 1 * C:2 * C])
            gt = jnp.tanh(z[:, 2 * C:3 * C])
            og = jax.nn.sigmoid(z[:, 3 * C:4 * C])
            c = ig * gt + fg * c
            if cell_clip > 0.0:
                c = jnp.clip(c, -cell_clip, cell_clip)
            h = jnp.dot(og * jnp.tanh(c), w_proj.T, precision=HIGH)
            if proj_clip > 0.0:
                h = jnp.clip(h, -proj_clip, proj_clip)
            out_acc[t] = h
            off += b
        fwd_h.append(h); fwd_c.append(c)
        hfin = jnp.concatenate(fwd_h[::-1], axis=0)
        cfin = jnp.concatenate(fwd_c[::-1], axis=0)
        if hfin.shape[0] < init_h.shape[0]:
            hfin = jnp.concatenate([hfin, init_h[hfin.shape[0]:]], axis=0)
        if cfin.shape[0] < init_c.shape[0]:
            cfin = jnp.concatenate([cfin, init_c[cfin.shape[0]:]], axis=0)
        y = jnp.concatenate(out_acc, axis=0)
        if l > 0 and use_skip:
            y = y + layer_in
        outputs.append(y); hs.append(hfin[None]); cs.append(cfin[None])
        layer_in = y
    return outputs, (jnp.concatenate(hs, 0), jnp.concatenate(cs, 0))


if __name__ == "__main__":
    num_layers = 2
    input_size = 16
    hidden_size = 32
    cell_size = 32
    batch_sizes = np.array([8, 8, 7, 6, 6, 4, 2, 1], dtype=np.int32)  # packed, go_forward
    total_len = int(batch_sizes.sum())  # 42
    B = int(batch_sizes[0])             # 8

    key = jax.random.PRNGKey(0)
    k_in, k_h, k_c, k_params = jax.random.split(key, 4)
    packed_inputs = jax.random.normal(k_in, (total_len, input_size), jnp.float32)
    init_h = 0.1 * jax.random.normal(k_h, (num_layers, B, hidden_size), jnp.float32)
    init_c = 0.1 * jax.random.normal(k_c, (num_layers, B, cell_size), jnp.float32)

    model = PallasUnidirectionalLstm(num_layers, input_size, hidden_size, cell_size,
                                     k_params, cell_clip=3.0, proj_clip=3.0,
                                     use_skip_connections=False,
                                     mxu_dtype=jnp.float32)

    outputs, (final_h, final_c) = model(packed_inputs, batch_sizes, (init_h, init_c))
    jax.block_until_ready(outputs)
    jax.block_until_ready(final_h)
    jax.block_until_ready(final_c)

    assert all(o.shape == (total_len, hidden_size) for o in outputs)
    assert final_h.shape == (num_layers, B, hidden_size)
    assert final_c.shape == (num_layers, B, cell_size)

    # Correctness check against a pure-JAX port of the PyTorch packed-sequence loop.
    ref_out, (ref_h, ref_c) = _reference_forward(
        packed_inputs, batch_sizes, init_h, init_c, model.params,
        cell_size=cell_size, cell_clip=3.0, proj_clip=3.0, use_skip=False)
    for o, r in zip(outputs, ref_out):
        np.testing.assert_allclose(np.asarray(o), np.asarray(r), rtol=2e-3, atol=2e-3)
    np.testing.assert_allclose(np.asarray(final_h), np.asarray(ref_h), rtol=2e-3, atol=2e-3)
    np.testing.assert_allclose(np.asarray(final_c), np.asarray(ref_c), rtol=2e-3, atol=2e-3)

    print("KERNEL_OK")
</pallas_src>

<mosaic_0001>
module attributes {stable_mosaic.version = 11 : i64} {
  func.func @_fused_lstm_kernel(%arg0: i32, %arg1: memref<8xi32, #tpu.memory_space<smem>>, %arg2: memref<64x16xf32, #tpu.memory_space<vmem>>, %arg3: memref<2x8x32xf32, #tpu.memory_space<vmem>>, %arg4: memref<2x8x32xf32, #tpu.memory_space<vmem>>, %arg5: memref<16x128xf32, #tpu.memory_space<vmem>>, %arg6: memref<2x32x128xf32, #tpu.memory_space<vmem>>, %arg7: memref<2x32x128xf32, #tpu.memory_space<vmem>>, %arg8: memref<2x1x128xf32, #tpu.memory_space<vmem>>, %arg9: memref<2x32x32xf32, #tpu.memory_space<vmem>>, %arg10: memref<128x32xf32, #tpu.memory_space<vmem>>, %arg11: memref<2x8x32xf32, #tpu.memory_space<vmem>>, %arg12: memref<2x8x32xf32, #tpu.memory_space<vmem>>, %arg13: memref<64x128xf32, #tpu.memory_space<vmem>>, %arg14: memref<8x32xf32, #tpu.memory_space<vmem>>, %arg15: memref<8x32xf32, #tpu.memory_space<vmem>>) attributes {dimension_semantics = [#tpu.dimension_semantics<arbitrary>], iteration_bounds = array<i64: 1>, scalar_prefetch = 1 : i64, scratch_operands = 3 : i64, tpu.core_type = #tpu.core_type<tc>, window_params = [{pipeline_mode = #tpu.pipeline_mode<synchronous>, transform_indices = @transform_0, window_bounds = array<i64: 64, 16>}, {pipeline_mode = #tpu.pipeline_mode<synchronous>, transform_indices = @transform_1, window_bounds = array<i64: 2, 8, 32>}, {pipeline_mode = #tpu.pipeline_mode<synchronous>, transform_indices = @transform_2, window_bounds = array<i64: 2, 8, 32>}, {pipeline_mode = #tpu.pipeline_mode<synchronous>, transform_indices = @transform_3, window_bounds = array<i64: 16, 128>}, {pipeline_mode = #tpu.pipeline_mode<synchronous>, transform_indices = @transform_4, window_bounds = array<i64: 2, 32, 128>}, {pipeline_mode = #tpu.pipeline_mode<synchronous>, transform_indices = @transform_5, window_bounds = array<i64: 2, 32, 128>}, {pipeline_mode = #tpu.pipeline_mode<synchronous>, transform_indices = @transform_6, window_bounds = array<i64: 2, 1, 128>}, {pipeline_mode = #tpu.pipeline_mode<synchronous>, transform_indices = @transform_7, window_bounds = array<i64: 2, 32, 32>}, {pipeline_mode = #tpu.pipeline_mode<synchronous>, transform_indices = @transform_8, window_bounds = array<i64: 128, 32>}, {pipeline_mode = #tpu.pipeline_mode<synchronous>, transform_indices = @transform_9, window_bounds = array<i64: 2, 8, 32>}, {pipeline_mode = #tpu.pipeline_mode<synchronous>, transform_indices = @transform_10, window_bounds = array<i64: 2, 8, 32>}]} {
    %0 = tpu.iota {dimensions = array<i32: 0>} : vector<8x1xi32>
    %c0 = arith.constant 0 : index
    %c0_0 = arith.constant 0 : index
    %1 = vector.load %arg2[%c0, %c0_0] : memref<64x16xf32, #tpu.memory_space<vmem>>, vector<64x16xf32>
    %c0_1 = arith.constant 0 : index
    %c0_2 = arith.constant 0 : index
    %2 = vector.load %arg5[%c0_1, %c0_2] : memref<16x128xf32, #tpu.memory_space<vmem>>, vector<16x128xf32>
    %cst = arith.constant dense<0.000000e+00> : vector<64x128xf32>
    %3 = tpu.matmul %1, %2, %cst {dimension_numbers = #tpu.dot_dimension_numbers<[1], [0], [0], [1], [0, 0, 1, 1], [], []>} : vector<64x16xf32>, vector<16x128xf32>, vector<64x128xf32> -> vector<64x128xf32>
    %c0_3 = arith.constant 0 : index
    %c0_4 = arith.constant 0 : index
    %c0_5 = arith.constant 0 : index
    %4 = vector.load %arg8[%c0_3, %c0_4, %c0_5] : memref<2x1x128xf32, #tpu.memory_space<vmem>>, vector<1x1x128xf32>
    %5 = vector.shape_cast %4 : vector<1x1x128xf32> to vector<1x128xf32>
    %6 = vector.broadcast %5 : vector<1x128xf32> to vector<64x128xf32>
    %7 = arith.addf %3, %6 : vector<64x128xf32>
    %c0_6 = arith.constant 0 : index
    %c0_7 = arith.constant 0 : index
    %8 = vector.load %arg13[%c0_6, %c0_7] : memref<64x128xf32, #tpu.memory_space<vmem>>, vector<64x128xf32>
    tpu.vector_store %arg13[%c0_6, %c0_7], %7 {strides = array<i32>} : memref<64x128xf32, #tpu.memory_space<vmem>>, vector<64x128xf32>,
    %c0_8 = arith.constant 0 : index
    %c0_9 = arith.constant 0 : index
    %c0_10 = arith.constant 0 : index
    %9 = vector.load %arg7[%c0_8, %c0_9, %c0_10] : memref<2x32x128xf32, #tpu.memory_space<vmem>>, vector<1x32x128xf32>
    %10 = vector.shape_cast %9 : vector<1x32x128xf32> to vector<32x128xf32>
    %c0_11 = arith.constant 0 : index
    %c0_12 = arith.constant 0 : index
    %c0_13 = arith.constant 0 : index
    %11 = vector.load %arg9[%c0_11, %c0_12, %c0_13] : memref<2x32x32xf32, #tpu.memory_space<vmem>>, vector<1x32x32xf32>
    %12 = vector.shape_cast %11 : vector<1x32x32xf32> to vector<32x32xf32>
    %c0_14 = arith.constant 0 : index
    %c0_15 = arith.constant 0 : index
    %c0_16 = arith.constant 0 : index
    %13 = vector.load %arg3[%c0_14, %c0_15, %c0_16] : memref<2x8x32xf32, #tpu.memory_space<vmem>>, vector<1x8x32xf32>
    %14 = vector.shape_cast %13 : vector<1x8x32xf32> to vector<8x32xf32>
    %c0_17 = arith.constant 0 : index
    %c0_18 = arith.constant 0 : index
    %15 = vector.load %arg14[%c0_17, %c0_18] : memref<8x32xf32, #tpu.memory_space<vmem>>, vector<8x32xf32>
    tpu.vector_store %arg14[%c0_17, %c0_18], %14 {strides = array<i32>} : memref<8x32xf32, #tpu.memory_space<vmem>>, vector<8x32xf32>,
    %c0_19 = arith.constant 0 : index
    %c0_20 = arith.constant 0 : index
    %c0_21 = arith.constant 0 : index
    %16 = vector.load %arg4[%c0_19, %c0_20, %c0_21] : memref<2x8x32xf32, #tpu.memory_space<vmem>>, vector<1x8x32xf32>
    %17 = vector.shape_cast %16 : vector<1x8x32xf32> to vector<8x32xf32>
    %c0_22 = arith.constant 0 : index
    %c0_23 = arith.constant 0 : index
    %18 = vector.load %arg15[%c0_22, %c0_23] : memref<8x32xf32, #tpu.memory_space<vmem>>, vector<8x32xf32>
    tpu.vector_store %arg15[%c0_22, %c0_23], %17 {strides = array<i32>} : memref<8x32xf32, #tpu.memory_space<vmem>>, vector<8x32xf32>,
    %c0_24 = arith.constant 0 : index
    %c0_25 = arith.constant 0 : index
    %19 = vector.load %arg14[%c0_24, %c0_25] : memref<8x32xf32, #tpu.memory_space<vmem>>, vector<8x32xf32>
    %c0_26 = arith.constant 0 : index
    %c0_27 = arith.constant 0 : index
    %20 = vector.load %arg15[%c0_26, %c0_27] : memref<8x32xf32, #tpu.memory_space<vmem>>, vector<8x32xf32>
    %c0_28 = arith.constant 0 : index
    %c0_29 = arith.constant 0 : index
    %21 = vector.load %arg13[%c0_28, %c0_29] : memref<64x128xf32, #tpu.memory_space<vmem>>, vector<8x128xf32>
    %cst_30 = arith.constant dense<0.000000e+00> : vector<8x128xf32>
    %22 = tpu.matmul %19, %10, %cst_30 {dimension_numbers = #tpu.dot_dimension_numbers<[1], [0], [0], [1], [0, 0, 1, 1], [], []>} : vector<8x32xf32>, vector<32x128xf32>, vector<8x128xf32> -> vector<8x128xf32>
    %23 = arith.addf %21, %22 : vector<8x128xf32>
    %24 = vector.extract_strided_slice %23 {offsets = [0, 0], sizes = [8, 32], strides = [1, 1]} : vector<8x128xf32> to vector<8x32xf32>
    %25 = arith.negf %24 : vector<8x32xf32>
    %26 = math.exp %25 : vector<8x32xf32>
    %cst_31 = arith.constant 1.000000e+00 : f32
    %27 = vector.broadcast %cst_31 : f32 to vector<8x32xf32>
    %28 = arith.addf %27, %26 : vector<8x32xf32>
    %29 = arith.divf %27, %28 : vector<8x32xf32>
    %30 = vector.extract_strided_slice %23 {offsets = [0, 32], sizes = [8, 32], strides = [1, 1]} : vector<8x128xf32> to vector<8x32xf32>
    %31 = arith.negf %30 : vector<8x32xf32>
    %32 = math.exp %31 : vector<8x32xf32>
    %cst_32 = arith.constant 1.000000e+00 : f32
    %33 = vector.broadcast %cst_32 : f32 to vector<8x32xf32>
    %34 = arith.addf %33, %32 : vector<8x32xf32>
    %35 = arith.divf %33, %34 : vector<8x32xf32>
    %36 = vector.extract_strided_slice %23 {offsets = [0, 64], sizes = [8, 32], strides = [1, 1]} : vector<8x128xf32> to vector<8x32xf32>
    %37 = math.tanh %36 : vector<8x32xf32>
    %38 = vector.extract_strided_slice %23 {offsets = [0, 96], sizes = [8, 32], strides = [1, 1]} : vector<8x128xf32> to vector<8x32xf32>
    %39 = arith.negf %38 : vector<8x32xf32>
    %40 = math.exp %39 : vector<8x32xf32>
    %cst_33 = arith.constant 1.000000e+00 : f32
    %41 = vector.broadcast %cst_33 : f32 to vector<8x32xf32>
    %42 = arith.addf %41, %40 : vector<8x32xf32>
    %43 = arith.divf %41, %42 : vector<8x32xf32>
    %44 = arith.mulf %29, %37 : vector<8x32xf32>
    %45 = arith.mulf %35, %20 : vector<8x32xf32>
    %46 = arith.addf %44, %45 : vector<8x32xf32>
    %cst_34 = arith.constant -3.000000e+00 : f32
    %cst_35 = arith.constant 3.000000e+00 : f32
    %47 = vector.broadcast %cst_34 : f32 to vector<8x32xf32>
    %48 = arith.maximumf %47, %46 : vector<8x32xf32>
    %49 = vector.broadcast %cst_35 : f32 to vector<8x32xf32>
    %50 = arith.minimumf %49, %48 : vector<8x32xf32>
    %51 = math.tanh %50 : vector<8x32xf32>
    %52 = arith.mulf %43, %51 : vector<8x32xf32>
    %cst_36 = arith.constant dense<0.000000e+00> : vector<8x32xf32>
    %53 = tpu.matmul %52, %12, %cst_36 {dimension_numbers = #tpu.dot_dimension_numbers<[1], [0], [0], [1], [0, 0, 1, 1], [], []>} : vector<8x32xf32>, vector<32x32xf32>, vector<8x32xf32> -> vector<8x32xf32>
    %cst_37 = arith.constant -3.000000e+00 : f32
    %cst_38 = arith.constant 3.000000e+00 : f32
    %54 = vector.broadcast %cst_37 : f32 to vector<8x32xf32>
    %55 = arith.maximumf %54, %53 : vector<8x32xf32>
    %56 = vector.broadcast %cst_38 : f32 to vector<8x32xf32>
    %57 = arith.minimumf %56, %55 : vector<8x32xf32>
    %c0_39 = arith.constant 0 : index
    %58 = memref.load %arg1[%c0_39] : memref<8xi32, #tpu.memory_space<smem>>
    %59 = vector.broadcast %58 : i32 to vector<8x1xi32>
    %60 = arith.cmpi slt, %0, %59 : vector<8x1xi32>
    %61 = vector.shape_cast %60 : vector<8x1xi1> to vector<8x1xi1>
    %62 = vector.broadcast %61 : vector<8x1xi1> to vector<8x32xi1>
    %63 = arith.select %62, %57, %19 : vector<8x32xi1>, vector<8x32xf32>
    %64 = vector.shape_cast %60 : vector<8x1xi1> to vector<8x1xi1>
    %65 = vector.broadcast %64 : vector<8x1xi1> to vector<8x32xi1>
    %66 = arith.select %65, %50, %20 : vector<8x32xi1>, vector<8x32xf32>
    %c0_40 = arith.constant 0 : index
    %c0_41 = arith.constant 0 : index
    %67 = vector.load %arg14[%c0_40, %c0_41] : memref<8x32xf32, #tpu.memory_space<vmem>>, vector<8x32xf32>
    tpu.vector_store %arg14[%c0_40, %c0_41], %63 {strides = array<i32>} : memref<8x32xf32, #tpu.memory_space<vmem>>, vector<8x32xf32>,
    %c0_42 = arith.constant 0 : index
    %c0_43 = arith.constant 0 : index
    %68 = vector.load %arg15[%c0_42, %c0_43] : memref<8x32xf32, #tpu.memory_space<vmem>>, vector<8x32xf32>
    tpu.vector_store %arg15[%c0_42, %c0_43], %66 {strides = array<i32>} : memref<8x32xf32, #tpu.memory_space<vmem>>, vector<8x32xf32>,
    %c0_44 = arith.constant 0 : index
    %c0_45 = arith.constant 0 : index
    %69 = vector.load %arg10[%c0_44, %c0_45] : memref<128x32xf32, #tpu.memory_space<vmem>>, vector<8x32xf32>
    tpu.vector_store %arg10[%c0_44, %c0_45], %63 {strides = array<i32>} : memref<128x32xf32, #tpu.memory_space<vmem>>, vector<8x32xf32>,
    %c0_46 = arith.constant 0 : index
    %c0_47 = arith.constant 0 : index
    %70 = vector.load %arg14[%c0_46, %c0_47] : memref<8x32xf32, #tpu.memory_space<vmem>>, vector<8x32xf32>
    %c0_48 = arith.constant 0 : index
    %c0_49 = arith.constant 0 : index
    %71 = vector.load %arg15[%c0_48, %c0_49] : memref<8x32xf32, #tpu.memory_space<vmem>>, vector<8x32xf32>
    %c8 = arith.constant 8 : index
    %c0_50 = arith.constant 0 : index
    %72 = vector.load %arg13[%c8, %c0_50] : memref<64x128xf32, #tpu.memory_space<vmem>>, vector<8x128xf32>
    %cst_51 = arith.constant dense<0.000000e+00> : vector<8x128xf32>
    %73 = tpu.matmul %70, %10, %cst_51 {dimension_numbers = #tpu.dot_dimension_numbers<[1], [0], [0], [1], [0, 0, 1, 1], [], []>} : vector<8x32xf32>, vector<32x128xf32>, vector<8x128xf32> -> vector<8x128xf32>
    %74 = arith.addf %72, %73 : vector<8x128xf32>
    %75 = vector.extract_strided_slice %74 {offsets = [0, 0], sizes = [8, 32], strides = [1, 1]} : vector<8x128xf32> to vector<8x32xf32>
    %76 = arith.negf %75 : vector<8x32xf32>
    %77 = math.exp %76 : vector<8x32xf32>
    %cst_52 = arith.constant 1.000000e+00 : f32
    %78 = vector.broadcast %cst_52 : f32 to vector<8x32xf32>
    %79 = arith.addf %78, %77 : vector<8x32xf32>
    %80 = arith.divf %78, %79 : vector<8x32xf32>
    %81 = vector.extract_strided_slice %74 {offsets = [0, 32], sizes = [8, 32], strides = [1, 1]} : vector<8x128xf32> to vector<8x32xf32>
    %82 = arith.negf %81 : vector<8x32xf32>
    %83 = math.exp %82 : vector<8x32xf32>
    %cst_53 = arith.constant 1.000000e+00 : f32
    %84 = vector.broadcast %cst_53 : f32 to vector<8x32xf32>
    %85 = arith.addf %84, %83 : vector<8x32xf32>
    %86 = arith.divf %84, %85 : vector<8x32xf32>
    %87 = vector.extract_strided_slice %74 {offsets = [0, 64], sizes = [8, 32], strides = [1, 1]} : vector<8x128xf32> to vector<8x32xf32>
    %88 = math.tanh %87 : vector<8x32xf32>
    %89 = vector.extract_strided_slice %74 {offsets = [0, 96], sizes = [8, 32], strides = [1, 1]} : vector<8x128xf32> to vector<8x32xf32>
    %90 = arith.negf %89 : vector<8x32xf32>
    %91 = math.exp %90 : vector<8x32xf32>
    %cst_54 = arith.constant 1.000000e+00 : f32
    %92 = vector.broadcast %cst_54 : f32 to vector<8x32xf32>
    %93 = arith.addf %92, %91 : vector<8x32xf32>
    %94 = arith.divf %92, %93 : vector<8x32xf32>
    %95 = arith.mulf %80, %88 : vector<8x32xf32>
    %96 = arith.mulf %86, %71 : vector<8x32xf32>
    %97 = arith.addf %95, %96 : vector<8x32xf32>
    %cst_55 = arith.constant -3.000000e+00 : f32
    %cst_56 = arith.constant 3.000000e+00 : f32
    %98 = vector.broadcast %cst_55 : f32 to vector<8x32xf32>
    %99 = arith.maximumf %98, %97 : vector<8x32xf32>
    %100 = vector.broadcast %cst_56 : f32 to vector<8x32xf32>
    %101 = arith.minimumf %100, %99 : vector<8x32xf32>
    %102 = math.tanh %101 : vector<8x32xf32>
    %103 = arith.mulf %94, %102 : vector<8x32xf32>
    %cst_57 = arith.constant dense<0.000000e+00> : vector<8x32xf32>
    %104 = tpu.matmul %103, %12, %cst_57 {dimension_numbers = #tpu.dot_dimension_numbers<[1], [0], [0], [1], [0, 0, 1, 1], [], []>} : vector<8x32xf32>, vector<32x32xf32>, vector<8x32xf32> -> vector<8x32xf32>
    %cst_58 = arith.constant -3.000000e+00 : f32
    %cst_59 = arith.constant 3.000000e+00 : f32
    %105 = vector.broadcast %cst_58 : f32 to vector<8x32xf32>
    %106 = arith.maximumf %105, %104 : vector<8x32xf32>
    %107 = vector.broadcast %cst_59 : f32 to vector<8x32xf32>
    %108 = arith.minimumf %107, %106 : vector<8x32xf32>
    %c1 = arith.constant 1 : index
    %109 = memref.load %arg1[%c1] : memref<8xi32, #tpu.memory_space<smem>>
    %110 = vector.broadcast %109 : i32 to vector<8x1xi32>
    %111 = arith.cmpi slt, %0, %110 : vector<8x1xi32>
    %112 = vector.shape_cast %111 : vector<8x1xi1> to vector<8x1xi1>
    %113 = vector.broadcast %112 : vector<8x1xi1> to vector<8x32xi1>
    %114 = arith.select %113, %108, %70 : vector<8x32xi1>, vector<8x32xf32>
    %115 = vector.shape_cast %111 : vector<8x1xi1> to vector<8x1xi1>
    %116 = vector.broadcast %115 : vector<8x1xi1> to vector<8x32xi1>
    %117 = arith.select %116, %101, %71 : vector<8x32xi1>, vector<8x32xf32>
    %c0_60 = arith.constant 0 : index
    %c0_61 = arith.constant 0 : index
    %118 = vector.load %arg14[%c0_60, %c0_61] : memref<8x32xf32, #tpu.memory_space<vmem>>, vector<8x32xf32>
    tpu.vector_store %arg14[%c0_60, %c0_61], %114 {strides = array<i32>} : memref<8x32xf32, #tpu.memory_space<vmem>>, vector<8x32xf32>,
    %c0_62 = arith.constant 0 : index
    %c0_63 = arith.constant 0 : index
    %119 = vector.load %arg15[%c0_62, %c0_63] : memref<8x32xf32, #tpu.memory_space<vmem>>, vector<8x32xf32>
    tpu.vector_store %arg15[%c0_62, %c0_63], %117 {strides = array<i32>} : memref<8x32xf32, #tpu.memory_space<vmem>>, vector<8x32xf32>,
    %c8_64 = arith.constant 8 : index
    %c0_65 = arith.constant 0 : index
    %120 = vector.load %arg10[%c8_64, %c0_65] : memref<128x32xf32, #tpu.memory_space<vmem>>, vector<8x32xf32>
    tpu.vector_store %arg10[%c8_64, %c0_65], %114 {strides = array<i32>} : memref<128x32xf32, #tpu.memory_space<vmem>>, vector<8x32xf32>,
    %c0_66 = arith.constant 0 : index
    %c0_67 = arith.constant 0 : index
    %121 = vector.load %arg14[%c0_66, %c0_67] : memref<8x32xf32, #tpu.memory_space<vmem>>, vector<8x32xf32>
    %c0_68 = arith.constant 0 : index
    %c0_69 = arith.constant 0 : index
    %122 = vector.load %arg15[%c0_68, %c0_69] : memref<8x32xf32, #tpu.memory_space<vmem>>, vector<8x32xf32>
    %c16 = arith.constant 16 : index
    %c0_70 = arith.constant 0 : index
    %123 = vector.load %arg13[%c16, %c0_70] : memref<64x128xf32, #tpu.memory_space<vmem>>, vector<8x128xf32>
    %cst_71 = arith.constant dense<0.000000e+00> : vector<8x128xf32>
    %124 = tpu.matmul %121, %10, %cst_71 {dimension_numbers = #tpu.dot_dimension_numbers<[1], [0], [0], [1], [0, 0, 1, 1], [], []>} : vector<8x32xf32>, vector<32x128xf32>, vector<8x128xf32> -> vector<8x128xf32>
    %125 = arith.addf %123, %124 : vector<8x128xf32>
    %126 = vector.extract_strided_slice %125 {offsets = [0, 0], sizes = [8, 32], strides = [1, 1]} : vector<8x128xf32> to vector<8x32xf32>
    %127 = arith.negf %126 : vector<8x32xf32>
    %128 = math.exp %127 : vector<8x32xf32>
    %cst_72 = arith.constant 1.000000e+00 : f32
    %129 = vector.broadcast %cst_72 : f32 to vector<8x32xf32>
    %130 = arith.addf %129, %128 : vector<8x32xf32>
    %131 = arith.divf %129, %130 : vector<8x32xf32>
    %132 = vector.extract_strided_slice %125 {offsets = [0, 32], sizes = [8, 32], strides = [1, 1]} : vector<8x128xf32> to vector<8x32xf32>
    %133 = arith.negf %132 : vector<8x32xf32>
    %134 = math.exp %133 : vector<8x32xf32>
    %cst_73 = arith.constant 1.000000e+00 : f32
    %135 = vector.broadcast %cst_73 : f32 to vector<8x32xf32>
    %136 = arith.addf %135, %134 : vector<8x32xf32>
    %137 = arith.divf %135, %136 : vector<8x32xf32>
    %138 = vector.extract_strided_slice %125 {offsets = [0, 64], sizes = [8, 32], strides = [1, 1]} : vector<8x128xf32> to vector<8x32xf32>
    %139 = math.tanh %138 : vector<8x32xf32>
    %140 = vector.extract_strided_slice %125 {offsets = [0, 96], sizes = [8, 32], strides = [1, 1]} : vector<8x128xf32> to vector<8x32xf32>
    %141 = arith.negf %140 : vector<8x32xf32>
    %142 = math.exp %141 : vector<8x32xf32>
    %cst_74 = arith.constant 1.000000e+00 : f32
    %143 = vector.broadcast %cst_74 : f32 to vector<8x32xf32>
    %144 = arith.addf %143, %142 : vector<8x32xf32>
    %145 = arith.divf %143, %144 : vector<8x32xf32>
    %146 = arith.mulf %131, %139 : vector<8x32xf32>
    %147 = arith.mulf %137, %122 : vector<8x32xf32>
    %148 = arith.addf %146, %147 : vector<8x32xf32>
    %cst_75 = arith.constant -3.000000e+00 : f32
    %cst_76 = arith.constant 3.000000e+00 : f32
    %149 = vector.broadcast %cst_75 : f32 to vector<8x32xf32>
    %150 = arith.maximumf %149, %148 : vector<8x32xf32>
    %151 = vector.broadcast %cst_76 : f32 to vector<8x32xf32>
    %152 = arith.minimumf %151, %150 : vector<8x32xf32>
    %153 = math.tanh %152 : vector<8x32xf32>
    %154 = arith.mulf %145, %153 : vector<8x32xf32>
    %cst_77 = arith.constant dense<0.000000e+00> : vector<8x32xf32>
    %155 = tpu.matmul %154, %12, %cst_77 {dimension_numbers = #tpu.dot_dimension_numbers<[1], [0], [0], [1], [0, 0, 1, 1], [], []>} : vector<8x32xf32>, vector<32x32xf32>, vector<8x32xf32> -> vector<8x32xf32>
    %cst_78 = arith.constant -3.000000e+00 : f32
    %cst_79 = arith.constant 3.000000e+00 : f32
    %156 = vector.broadcast %cst_78 : f32 to vector<8x32xf32>
    %157 = arith.maximumf %156, %155 : vector<8x32xf32>
    %158 = vector.broadcast %cst_79 : f32 to vector<8x32xf32>
    %159 = arith.minimumf %158, %157 : vector<8x32xf32>
    %c2 = arith.constant 2 : index
    %160 = memref.load %arg1[%c2] : memref<8xi32, #tpu.memory_space<smem>>
    %161 = vector.broadcast %160 : i32 to vector<8x1xi32>
    %162 = arith.cmpi slt, %0, %161 : vector<8x1xi32>
    %163 = vector.shape_cast %162 : vector<8x1xi1> to vector<8x1xi1>
    %164 = vector.broadcast %163 : vector<8x1xi1> to vector<8x32xi1>
    %165 = arith.select %164, %159, %121 : vector<8x32xi1>, vector<8x32xf32>
    %166 = vector.shape_cast %162 : vector<8x1xi1> to vector<8x1xi1>
    %167 = vector.broadcast %166 : vector<8x1xi1> to vector<8x32xi1>
    %168 = arith.select %167, %152, %122 : vector<8x32xi1>, vector<8x32xf32>
    %c0_80 = arith.constant 0 : index
    %c0_81 = arith.constant 0 : index
    %169 = vector.load %arg14[%c0_80, %c0_81] : memref<8x32xf32, #tpu.memory_space<vmem>>, vector<8x32xf32>
    tpu.vector_store %arg14[%c0_80, %c0_81], %165 {strides = array<i32>} : memref<8x32xf32, #tpu.memory_space<vmem>>, vector<8x32xf32>,
    %c0_82 = arith.constant 0 : index
    %c0_83 = arith.constant 0 : index
    %170 = vector.load %arg15[%c0_82, %c0_83] : memref<8x32xf32, #tpu.memory_space<vmem>>, vector<8x32xf32>
    tpu.vector_store %arg15[%c0_82, %c0_83], %168 {strides = array<i32>} : memref<8x32xf32, #tpu.memory_space<vmem>>, vector<8x32xf32>,
    %c16_84 = arith.constant 16 : index
    %c0_85 = arith.constant 0 : index
    %171 = vector.load %arg10[%c16_84, %c0_85] : memref<128x32xf32, #tpu.memory_space<vmem>>, vector<8x32xf32>
    tpu.vector_store %arg10[%c16_84, %c0_85], %165 {strides = array<i32>} : memref<128x32xf32, #tpu.memory_space<vmem>>, vector<8x32xf32>,
    %c0_86 = arith.constant 0 : index
    %c0_87 = arith.constant 0 : index
    %172 = vector.load %arg14[%c0_86, %c0_87] : memref<8x32xf32, #tpu.memory_space<vmem>>, vector<8x32xf32>
    %c0_88 = arith.constant 0 : index
    %c0_89 = arith.constant 0 : index
    %173 = vector.load %arg15[%c0_88, %c0_89] : memref<8x32xf32, #tpu.memory_space<vmem>>, vector<8x32xf32>
    %c24 = arith.constant 24 : index
    %c0_90 = arith.constant 0 : index
    %174 = vector.load %arg13[%c24, %c0_90] : memref<64x128xf32, #tpu.memory_space<vmem>>, vector<8x128xf32>
    %cst_91 = arith.constant dense<0.000000e+00> : vector<8x128xf32>
    %175 = tpu.matmul %172, %10, %cst_91 {dimension_numbers = #tpu.dot_dimension_numbers<[1], [0], [0], [1], [0, 0, 1, 1], [], []>} : vector<8x32xf32>, vector<32x128xf32>, vector<8x128xf32> -> vector<8x128xf32>
    %176 = arith.addf %174, %175 : vector<8x128xf32>
    %177 = vector.extract_strided_slice %176 {offsets = [0, 0], sizes = [8, 32], strides = [1, 1]} : vector<8x128xf32> to vector<8x32xf32>
    %178 = arith.negf %177 : vector<8x32xf32>
    %179 = math.exp %178 : vector<8x32xf32>
    %cst_92 = arith.constant 1.000000e+00 : f32
    %180 = vector.broadcast %cst_92 : f32 to vector<8x32xf32>
    %181 = arith.addf %180, %179 : vector<8x32xf32>
    %182 = arith.divf %180, %181 : vector<8x32xf32>
    %183 = vector.extract_strided_slice %176 {offsets = [0, 32], sizes = [8, 32], strides = [1, 1]} : vector<8x128xf32> to vector<8x32xf32>
    %184 = arith.negf %183 : vector<8x32xf32>
    %185 = math.exp %184 : vector<8x32xf32>
    %cst_93 = arith.constant 1.000000e+00 : f32
    %186 = vector.broadcast %cst_93 : f32 to vector<8x32xf32>
    %187 = arith.addf %186, %185 : vector<8x32xf32>
    %188 = arith.divf %186, %187 : vector<8x32xf32>
    %189 = vector.extract_strided_slice %176 {offsets = [0, 64], sizes = [8, 32], strides = [1, 1]} : vector<8x128xf32> to vector<8x32xf32>
    %190 = math.tanh %189 : vector<8x32xf32>
    %191 = vector.extract_strided_slice %176 {offsets = [0, 96], sizes = [8, 32], strides = [1, 1]} : vector<8x128xf32> to vector<8x32xf32>
    %192 = arith.negf %191 : vector<8x32xf32>
    %193 = math.exp %192 : vector<8x32xf32>
    %cst_94 = arith.constant 1.000000e+00 : f32
    %194 = vector.broadcast %cst_94 : f32 to vector<8x32xf32>
    %195 = arith.addf %194, %193 : vector<8x32xf32>
    %196 = arith.divf %194, %195 : vector<8x32xf32>
    %197 = arith.mulf %182, %190 : vector<8x32xf32>
    %198 = arith.mulf %188, %173 : vector<8x32xf32>
    %199 = arith.addf %197, %198 : vector<8x32xf32>
    %cst_95 = arith.constant -3.000000e+00 : f32
    %cst_96 = arith.constant 3.000000e+00 : f32
    %200 = vector.broadcast %cst_95 : f32 to vector<8x32xf32>
    %201 = arith.maximumf %200, %199 : vector<8x32xf32>
    %202 = vector.broadcast %cst_96 : f32 to vector<8x32xf32>
    %203 = arith.minimumf %202, %201 : vector<8x32xf32>
    %204 = math.tanh %203 : vector<8x32xf32>
    %205 = arith.mulf %196, %204 : vector<8x32xf32>
    %cst_97 = arith.constant dense<0.000000e+00> : vector<8x32xf32>
    %206 = tpu.matmul %205, %12, %cst_97 {dimension_numbers = #tpu.dot_dimension_numbers<[1], [0], [0], [1], [0, 0, 1, 1], [], []>} : vector<8x32xf32>, vector<32x32xf32>, vector<8x32xf32> -> vector<8x32xf32>
    %cst_98 = arith.constant -3.000000e+00 : f32
    %cst_99 = arith.constant 3.000000e+00 : f32
    %207 = vector.broadcast %cst_98 : f32 to vector<8x32xf32>
    %208 = arith.maximumf %207, %206 : vector<8x32xf32>
    %209 = vector.broadcast %cst_99 : f32 to vector<8x32xf32>
    %210 = arith.minimumf %209, %208 : vector<8x32xf32>
    %c3 = arith.constant 3 : index
    %211 = memref.load %arg1[%c3] : memref<8xi32, #tpu.memory_space<smem>>
    %212 = vector.broadcast %211 : i32 to vector<8x1xi32>
    %213 = arith.cmpi slt, %0, %212 : vector<8x1xi32>
    %214 = vector.shape_cast %213 : vector<8x1xi1> to vector<8x1xi1>
    %215 = vector.broadcast %214 : vector<8x1xi1> to vector<8x32xi1>
    %216 = arith.select %215, %210, %172 : vector<8x32xi1>, vector<8x32xf32>
    %217 = vector.shape_cast %213 : vector<8x1xi1> to vector<8x1xi1>
    %218 = vector.broadcast %217 : vector<8x1xi1> to vector<8x32xi1>
    %219 = arith.select %218, %203, %173 : vector<8x32xi1>, vector<8x32xf32>
    %c0_100 = arith.constant 0 : index
    %c0_101 = arith.constant 0 : index
    %220 = vector.load %arg14[%c0_100, %c0_101] : memref<8x32xf32, #tpu.memory_space<vmem>>, vector<8x32xf32>
    tpu.vector_store %arg14[%c0_100, %c0_101], %216 {strides = array<i32>} : memref<8x32xf32, #tpu.memory_space<vmem>>, vector<8x32xf32>,
    %c0_102 = arith.constant 0 : index
    %c0_103 = arith.constant 0 : index
    %221 = vector.load %arg15[%c0_102, %c0_103] : memref<8x32xf32, #tpu.memory_space<vmem>>, vector<8x32xf32>
    tpu.vector_store %arg15[%c0_102, %c0_103], %219 {strides = array<i32>} : memref<8x32xf32, #tpu.memory_space<vmem>>, vector<8x32xf32>,
    %c24_104 = arith.constant 24 : index
    %c0_105 = arith.constant 0 : index
    %222 = vector.load %arg10[%c24_104, %c0_105] : memref<128x32xf32, #tpu.memory_space<vmem>>, vector<8x32xf32>
    tpu.vector_store %arg10[%c24_104, %c0_105], %216 {strides = array<i32>} : memref<128x32xf32, #tpu.memory_space<vmem>>, vector<8x32xf32>,
    %c0_106 = arith.constant 0 : index
    %c0_107 = arith.constant 0 : index
    %223 = vector.load %arg14[%c0_106, %c0_107] : memref<8x32xf32, #tpu.memory_space<vmem>>, vector<8x32xf32>
    %c0_108 = arith.constant 0 : index
    %c0_109 = arith.constant 0 : index
    %224 = vector.load %arg15[%c0_108, %c0_109] : memref<8x32xf32, #tpu.memory_space<vmem>>, vector<8x32xf32>
    %c32 = arith.constant 32 : index
    %c0_110 = arith.constant 0 : index
    %225 = vector.load %arg13[%c32, %c0_110] : memref<64x128xf32, #tpu.memory_space<vmem>>, vector<8x128xf32>
    %cst_111 = arith.constant dense<0.000000e+00> : vector<8x128xf32>
    %226 = tpu.matmul %223, %10, %cst_111 {dimension_numbers = #tpu.dot_dimension_numbers<[1], [0], [0], [1], [0, 0, 1, 1], [], []>} : vector<8x32xf32>, vector<32x128xf32>, vector<8x128xf32> -> vector<8x128xf32>
    %227 = arith.addf %225, %226 : vector<8x128xf32>
    %228 = vector.extract_strided_slice %227 {offsets = [0, 0], sizes = [8, 32], strides = [1, 1]} : vector<8x128xf32> to vector<8x32xf32>
    %229 = arith.negf %228 : vector<8x32xf32>
    %230 = math.exp %229 : vector<8x32xf32>
    %cst_112 = arith.constant 1.000000e+00 : f32
    %231 = vector.broadcast %cst_112 : f32 to vector<8x32xf32>
    %232 = arith.addf %231, %230 : vector<8x32xf32>
    %233 = arith.divf %231, %232 : vector<8x32xf32>
    %234 = vector.extract_strided_slice %227 {offsets = [0, 32], sizes = [8, 32], strides = [1, 1]} : vector<8x128xf32> to vector<8x32xf32>
    %235 = arith.negf %234 : vector<8x32xf32>
    %236 = math.exp %235 : vector<8x32xf32>
    %cst_113 = arith.constant 1.000000e+00 : f32
    %237 = vector.broadcast %cst_113 : f32 to vector<8x32xf32>
    %238 = arith.addf %237, %236 : vector<8x32xf32>
    %239 = arith.divf %237, %238 : vector<8x32xf32>
    %240 = vector.extract_strided_slice %227 {offsets = [0, 64], sizes = [8, 32], strides = [1, 1]} : vector<8x128xf32> to vector<8x32xf32>
    %241 = math.tanh %240 : vector<8x32xf32>
    %242 = vector.extract_strided_slice %227 {offsets = [0, 96], sizes = [8, 32], strides = [1, 1]} : vector<8x128xf32> to vector<8x32xf32>
    %243 = arith.negf %242 : vector<8x32xf32>
    %244 = math.exp %243 : vector<8x32xf32>
    %cst_114 = arith.constant 1.000000e+00 : f32
    %245 = vector.broadcast %cst_114 : f32 to vector<8x32xf32>
    %246 = arith.addf %245, %244 : vector<8x32xf32>
    %247 = arith.divf %245, %246 : vector<8x32xf32>
    %248 = arith.mulf %233, %241 : vector<8x32xf32>
    %249 = arith.mulf %239, %224 : vector<8x32xf32>
    %250 = arith.addf %248, %249 : vector<8x32xf32>
    %cst_115 = arith.constant -3.000000e+00 : f32
    %cst_116 = arith.constant 3.000000e+00 : f32
    %251 = vector.broadcast %cst_115 : f32 to vector<8x32xf32>
    %252 = arith.maximumf %251, %250 : vector<8x32xf32>
    %253 = vector.broadcast %cst_116 : f32 to vector<8x32xf32>
    %254 = arith.minimumf %253, %252 : vector<8x32xf32>
    %255 = math.tanh %254 : vector<8x32xf32>
    %256 = arith.mulf %247, %255 : vector<8x32xf32>
    %cst_117 = arith.constant dense<0.000000e+00> : vector<8x32xf32>
    %257 = tpu.matmul %256, %12, %cst_117 {dimension_numbers = #tpu.dot_dimension_numbers<[1], [0], [0], [1], [0, 0, 1, 1], [], []>} : vector<8x32xf32>, vector<32x32xf32>, vector<8x32xf32> -> vector<8x32xf32>
    %cst_118 = arith.constant -3.000000e+00 : f32
    %cst_119 = arith.constant 3.000000e+00 : f32
    %258 = vector.broadcast %cst_118 : f32 to vector<8x32xf32>
    %259 = arith.maximumf %258, %257 : vector<8x32xf32>
    %260 = vector.broadcast %cst_119 : f32 to vector<8x32xf32>
    %261 = arith.minimumf %260, %259 : vector<8x32xf32>
    %c4 = arith.constant 4 : index
    %262 = memref.load %arg1[%c4] : memref<8xi32, #tpu.memory_space<smem>>
    %263 = vector.broadcast %262 : i32 to vector<8x1xi32>
    %264 = arith.cmpi slt, %0, %263 : vector<8x1xi32>
    %265 = vector.shape_cast %264 : vector<8x1xi1> to vector<8x1xi1>
    %266 = vector.broadcast %265 : vector<8x1xi1> to vector<8x32xi1>
    %267 = arith.select %266, %261, %223 : vector<8x32xi1>, vector<8x32xf32>
    %268 = vector.shape_cast %264 : vector<8x1xi1> to vector<8x1xi1>
    %269 = vector.broadcast %268 : vector<8x1xi1> to vector<8x32xi1>
    %270 = arith.select %269, %254, %224 : vector<8x32xi1>, vector<8x32xf32>
    %c0_120 = arith.constant 0 : index
    %c0_121 = arith.constant 0 : index
    %271 = vector.load %arg14[%c0_120, %c0_121] : memref<8x32xf32, #tpu.memory_space<vmem>>, vector<8x32xf32>
    tpu.vector_store %arg14[%c0_120, %c0_121], %267 {strides = array<i32>} : memref<8x32xf32, #tpu.memory_space<vmem>>, vector<8x32xf32>,
    %c0_122 = arith.constant 0 : index
    %c0_123 = arith.constant 0 : index
    %272 = vector.load %arg15[%c0_122, %c0_123] : memref<8x32xf32, #tpu.memory_space<vmem>>, vector<8x32xf32>
    tpu.vector_store %arg15[%c0_122, %c0_123], %270 {strides = array<i32>} : memref<8x32xf32, #tpu.memory_space<vmem>>, vector<8x32xf32>,
    %c32_124 = arith.constant 32 : index
    %c0_125 = arith.constant 0 : index
    %273 = vector.load %arg10[%c32_124, %c0_125] : memref<128x32xf32, #tpu.memory_space<vmem>>, vector<8x32xf32>
    tpu.vector_store %arg10[%c32_124, %c0_125], %267 {strides = array<i32>} : memref<128x32xf32, #tpu.memory_space<vmem>>, vector<8x32xf32>,
    %c0_126 = arith.constant 0 : index
    %c0_127 = arith.constant 0 : index
    %274 = vector.load %arg14[%c0_126, %c0_127] : memref<8x32xf32, #tpu.memory_space<vmem>>, vector<8x32xf32>
    %c0_128 = arith.constant 0 : index
    %c0_129 = arith.constant 0 : index
    %275 = vector.load %arg15[%c0_128, %c0_129] : memref<8x32xf32, #tpu.memory_space<vmem>>, vector<8x32xf32>
    %c40 = arith.constant 40 : index
    %c0_130 = arith.constant 0 : index
    %276 = vector.load %arg13[%c40, %c0_130] : memref<64x128xf32, #tpu.memory_space<vmem>>, vector<8x128xf32>
    %cst_131 = arith.constant dense<0.000000e+00> : vector<8x128xf32>
    %277 = tpu.matmul %274, %10, %cst_131 {dimension_numbers = #tpu.dot_dimension_numbers<[1], [0], [0], [1], [0, 0, 1, 1], [], []>} : vector<8x32xf32>, vector<32x128xf32>, vector<8x128xf32> -> vector<8x128xf32>
    %278 = arith.addf %276, %277 : vector<8x128xf32>
    %279 = vector.extract_strided_slice %278 {offsets = [0, 0], sizes = [8, 32], strides = [1, 1]} : vector<8x128xf32> to vector<8x32xf32>
    %280 = arith.negf %279 : vector<8x32xf32>
    %281 = math.exp %280 : vector<8x32xf32>
    %cst_132 = arith.constant 1.000000e+00 : f32
    %282 = vector.broadcast %cst_132 : f32 to vector<8x32xf32>
    %283 = arith.addf %282, %281 : vector<8x32xf32>
    %284 = arith.divf %282, %283 : vector<8x32xf32>
    %285 = vector.extract_strided_slice %278 {offsets = [0, 32], sizes = [8, 32], strides = [1, 1]} : vector<8x128xf32> to vector<8x32xf32>
    %286 = arith.negf %285 : vector<8x32xf32>
    %287 = math.exp %286 : vector<8x32xf32>
    %cst_133 = arith.constant 1.000000e+00 : f32
    %288 = vector.broadcast %cst_133 : f32 to vector<8x32xf32>
    %289 = arith.addf %288, %287 : vector<8x32xf32>
    %290 = arith.divf %288, %289 : vector<8x32xf32>
    %291 = vector.extract_strided_slice %278 {offsets = [0, 64], sizes = [8, 32], strides = [1, 1]} : vector<8x128xf32> to vector<8x32xf32>
    %292 = math.tanh %291 : vector<8x32xf32>
    %293 = vector.extract_strided_slice %278 {offsets = [0, 96], sizes = [8, 32], strides = [1, 1]} : vector<8x128xf32> to vector<8x32xf32>
    %294 = arith.negf %293 : vector<8x32xf32>
    %295 = math.exp %294 : vector<8x32xf32>
    %cst_134 = arith.constant 1.000000e+00 : f32
    %296 = vector.broadcast %cst_134 : f32 to vector<8x32xf32>
    %297 = arith.addf %296, %295 : vector<8x32xf32>
    %298 = arith.divf %296, %297 : vector<8x32xf32>
    %299 = arith.mulf %284, %292 : vector<8x32xf32>
    %300 = arith.mulf %290, %275 : vector<8x32xf32>
    %301 = arith.addf %299, %300 : vector<8x32xf32>
    %cst_135 = arith.constant -3.000000e+00 : f32
    %cst_136 = arith.constant 3.000000e+00 : f32
    %302 = vector.broadcast %cst_135 : f32 to vector<8x32xf32>
    %303 = arith.maximumf %302, %301 : vector<8x32xf32>
    %304 = vector.broadcast %cst_136 : f32 to vector<8x32xf32>
    %305 = arith.minimumf %304, %303 : vector<8x32xf32>
    %306 = math.tanh %305 : vector<8x32xf32>
    %307 = arith.mulf %298, %306 : vector<8x32xf32>
    %cst_137 = arith.constant dense<0.000000e+00> : vector<8x32xf32>
    %308 = tpu.matmul %307, %12, %cst_137 {dimension_numbers = #tpu.dot_dimension_numbers<[1], [0], [0], [1], [0, 0, 1, 1], [], []>} : vector<8x32xf32>, vector<32x32xf32>, vector<8x32xf32> -> vector<8x32xf32>
    %cst_138 = arith.constant -3.000000e+00 : f32
    %cst_139 = arith.constant 3.000000e+00 : f32
    %309 = vector.broadcast %cst_138 : f32 to vector<8x32xf32>
    %310 = arith.maximumf %309, %308 : vector<8x32xf32>
    %311 = vector.broadcast %cst_139 : f32 to vector<8x32xf32>
    %312 = arith.minimumf %311, %310 : vector<8x32xf32>
    %c5 = arith.constant 5 : index
    %313 = memref.load %arg1[%c5] : memref<8xi32, #tpu.memory_space<smem>>
    %314 = vector.broadcast %313 : i32 to vector<8x1xi32>
    %315 = arith.cmpi slt, %0, %314 : vector<8x1xi32>
    %316 = vector.shape_cast %315 : vector<8x1xi1> to vector<8x1xi1>
    %317 = vector.broadcast %316 : vector<8x1xi1> to vector<8x32xi1>
    %318 = arith.select %317, %312, %274 : vector<8x32xi1>, vector<8x32xf32>
    %319 = vector.shape_cast %315 : vector<8x1xi1> to vector<8x1xi1>
    %320 = vector.broadcast %319 : vector<8x1xi1> to vector<8x32xi1>
    %321 = arith.select %320, %305, %275 : vector<8x32xi1>, vector<8x32xf32>
    %c0_140 = arith.constant 0 : index
    %c0_141 = arith.constant 0 : index
    %322 = vector.load %arg14[%c0_140, %c0_141] : memref<8x32xf32, #tpu.memory_space<vmem>>, vector<8x32xf32>
    tpu.vector_store %arg14[%c0_140, %c0_141], %318 {strides = array<i32>} : memref<8x32xf32, #tpu.memory_space<vmem>>, vector<8x32xf32>,
    %c0_142 = arith.constant 0 : index
    %c0_143 = arith.constant 0 : index
    %323 = vector.load %arg15[%c0_142, %c0_143] : memref<8x32xf32, #tpu.memory_space<vmem>>, vector<8x32xf32>
    tpu.vector_store %arg15[%c0_142, %c0_143], %321 {strides = array<i32>} : memref<8x32xf32, #tpu.memory_space<vmem>>, vector<8x32xf32>,
    %c40_144 = arith.constant 40 : index
    %c0_145 = arith.constant 0 : index
    %324 = vector.load %arg10[%c40_144, %c0_145] : memref<128x32xf32, #tpu.memory_space<vmem>>, vector<8x32xf32>
    tpu.vector_store %arg10[%c40_144, %c0_145], %318 {strides = array<i32>} : memref<128x32xf32, #tpu.memory_space<vmem>>, vector<8x32xf32>,
    %c0_146 = arith.constant 0 : index
    %c0_147 = arith.constant 0 : index
    %325 = vector.load %arg14[%c0_146, %c0_147] : memref<8x32xf32, #tpu.memory_space<vmem>>, vector<8x32xf32>
    %c0_148 = arith.constant 0 : index
    %c0_149 = arith.constant 0 : index
    %326 = vector.load %arg15[%c0_148, %c0_149] : memref<8x32xf32, #tpu.memory_space<vmem>>, vector<8x32xf32>
    %c48 = arith.constant 48 : index
    %c0_150 = arith.constant 0 : index
    %327 = vector.load %arg13[%c48, %c0_150] : memref<64x128xf32, #tpu.memory_space<vmem>>, vector<8x128xf32>
    %cst_151 = arith.constant dense<0.000000e+00> : vector<8x128xf32>
    %328 = tpu.matmul %325, %10, %cst_151 {dimension_numbers = #tpu.dot_dimension_numbers<[1], [0], [0], [1], [0, 0, 1, 1], [], []>} : vector<8x32xf32>, vector<32x128xf32>, vector<8x128xf32> -> vector<8x128xf32>
    %329 = arith.addf %327, %328 : vector<8x128xf32>
    %330 = vector.extract_strided_slice %329 {offsets = [0, 0], sizes = [8, 32], strides = [1, 1]} : vector<8x128xf32> to vector<8x32xf32>
    %331 = arith.negf %330 : vector<8x32xf32>
    %332 = math.exp %331 : vector<8x32xf32>
    %cst_152 = arith.constant 1.000000e+00 : f32
    %333 = vector.broadcast %cst_152 : f32 to vector<8x32xf32>
    %334 = arith.addf %333, %332 : vector<8x32xf32>
    %335 = arith.divf %333, %334 : vector<8x32xf32>
    %336 = vector.extract_strided_slice %329 {offsets = [0, 32], sizes = [8, 32], strides = [1, 1]} : vector<8x128xf32> to vector<8x32xf32>
    %337 = arith.negf %336 : vector<8x32xf32>
    %338 = math.exp %337 : vector<8x32xf32>
    %cst_153 = arith.constant 1.000000e+00 : f32
    %339 = vector.broadcast %cst_153 : f32 to vector<8x32xf32>
    %340 = arith.addf %339, %338 : vector<8x32xf32>
    %341 = arith.divf %339, %340 : vector<8x32xf32>
    %342 = vector.extract_strided_slice %329 {offsets = [0, 64], sizes = [8, 32], strides = [1, 1]} : vector<8x128xf32> to vector<8x32xf32>
    %343 = math.tanh %342 : vector<8x32xf32>
    %344 = vector.extract_strided_slice %329 {offsets = [0, 96], sizes = [8, 32], strides = [1, 1]} : vector<8x128xf32> to vector<8x32xf32>
    %345 = arith.negf %344 : vector<8x32xf32>
    %346 = math.exp %345 : vector<8x32xf32>
    %cst_154 = arith.constant 1.000000e+00 : f32
    %347 = vector.broadcast %cst_154 : f32 to vector<8x32xf32>
    %348 = arith.addf %347, %346 : vector<8x32xf32>
    %349 = arith.divf %347, %348 : vector<8x32xf32>
    %350 = arith.mulf %335, %343 : vector<8x32xf32>
    %351 = arith.mulf %341, %326 : vector<8x32xf32>
    %352 = arith.addf %350, %351 : vector<8x32xf32>
    %cst_155 = arith.constant -3.000000e+00 : f32
    %cst_156 = arith.constant 3.000000e+00 : f32
    %353 = vector.broadcast %cst_155 : f32 to vector<8x32xf32>
    %354 = arith.maximumf %353, %352 : vector<8x32xf32>
    %355 = vector.broadcast %cst_156 : f32 to vector<8x32xf32>
    %356 = arith.minimumf %355, %354 : vector<8x32xf32>
    %357 = math.tanh %356 : vector<8x32xf32>
    %358 = arith.mulf %349, %357 : vector<8x32xf32>
    %cst_157 = arith.constant dense<0.000000e+00> : vector<8x32xf32>
    %359 = tpu.matmul %358, %12, %cst_157 {dimension_numbers = #tpu.dot_dimension_numbers<[1], [0], [0], [1], [0, 0, 1, 1], [], []>} : vector<8x32xf32>, vector<32x32xf32>, vector<8x32xf32> -> vector<8x32xf32>
    %cst_158 = arith.constant -3.000000e+00 : f32
    %cst_159 = arith.constant 3.000000e+00 : f32
    %360 = vector.broadcast %cst_158 : f32 to vector<8x32xf32>
    %361 = arith.maximumf %360, %359 : vector<8x32xf32>
    %362 = vector.broadcast %cst_159 : f32 to vector<8x32xf32>
    %363 = arith.minimumf %362, %361 : vector<8x32xf32>
    %c6 = arith.constant 6 : index
    %364 = memref.load %arg1[%c6] : memref<8xi32, #tpu.memory_space<smem>>
    %365 = vector.broadcast %364 : i32 to vector<8x1xi32>
    %366 = arith.cmpi slt, %0, %365 : vector<8x1xi32>
    %367 = vector.shape_cast %366 : vector<8x1xi1> to vector<8x1xi1>
    %368 = vector.broadcast %367 : vector<8x1xi1> to vector<8x32xi1>
    %369 = arith.select %368, %363, %325 : vector<8x32xi1>, vector<8x32xf32>
    %370 = vector.shape_cast %366 : vector<8x1xi1> to vector<8x1xi1>
    %371 = vector.broadcast %370 : vector<8x1xi1> to vector<8x32xi1>
    %372 = arith.select %371, %356, %326 : vector<8x32xi1>, vector<8x32xf32>
    %c0_160 = arith.constant 0 : index
    %c0_161 = arith.constant 0 : index
    %373 = vector.load %arg14[%c0_160, %c0_161] : memref<8x32xf32, #tpu.memory_space<vmem>>, vector<8x32xf32>
    tpu.vector_store %arg14[%c0_160, %c0_161], %369 {strides = array<i32>} : memref<8x32xf32, #tpu.memory_space<vmem>>, vector<8x32xf32>,
    %c0_162 = arith.constant 0 : index
    %c0_163 = arith.constant 0 : index
    %374 = vector.load %arg15[%c0_162, %c0_163] : memref<8x32xf32, #tpu.memory_space<vmem>>, vector<8x32xf32>
    tpu.vector_store %arg15[%c0_162, %c0_163], %372 {strides = array<i32>} : memref<8x32xf32, #tpu.memory_space<vmem>>, vector<8x32xf32>,
    %c48_164 = arith.constant 48 : index
    %c0_165 = arith.constant 0 : index
    %375 = vector.load %arg10[%c48_164, %c0_165] : memref<128x32xf32, #tpu.memory_space<vmem>>, vector<8x32xf32>
    tpu.vector_store %arg10[%c48_164, %c0_165], %369 {strides = array<i32>} : memref<128x32xf32, #tpu.memory_space<vmem>>, vector<8x32xf32>,
    %c0_166 = arith.constant 0 : index
    %c0_167 = arith.constant 0 : index
    %376 = vector.load %arg14[%c0_166, %c0_167] : memref<8x32xf32, #tpu.memory_space<vmem>>, vector<8x32xf32>
    %c0_168 = arith.constant 0 : index
    %c0_169 = arith.constant 0 : index
    %377 = vector.load %arg15[%c0_168, %c0_169] : memref<8x32xf32, #tpu.memory_space<vmem>>, vector<8x32xf32>
    %c56 = arith.constant 56 : index
    %c0_170 = arith.constant 0 : index
    %378 = vector.load %arg13[%c56, %c0_170] : memref<64x128xf32, #tpu.memory_space<vmem>>, vector<8x128xf32>
    %cst_171 = arith.constant dense<0.000000e+00> : vector<8x128xf32>
    %379 = tpu.matmul %376, %10, %cst_171 {dimension_numbers = #tpu.dot_dimension_numbers<[1], [0], [0], [1], [0, 0, 1, 1], [], []>} : vector<8x32xf32>, vector<32x128xf32>, vector<8x128xf32> -> vector<8x128xf32>
    %380 = arith.addf %378, %379 : vector<8x128xf32>
    %381 = vector.extract_strided_slice %380 {offsets = [0, 0], sizes = [8, 32], strides = [1, 1]} : vector<8x128xf32> to vector<8x32xf32>
    %382 = arith.negf %381 : vector<8x32xf32>
    %383 = math.exp %382 : vector<8x32xf32>
    %cst_172 = arith.constant 1.000000e+00 : f32
    %384 = vector.broadcast %cst_172 : f32 to vector<8x32xf32>
    %385 = arith.addf %384, %383 : vector<8x32xf32>
    %386 = arith.divf %384, %385 : vector<8x32xf32>
    %387 = vector.extract_strided_slice %380 {offsets = [0, 32], sizes = [8, 32], strides = [1, 1]} : vector<8x128xf32> to vector<8x32xf32>
    %388 = arith.negf %387 : vector<8x32xf32>
    %389 = math.exp %388 : vector<8x32xf32>
    %cst_173 = arith.constant 1.000000e+00 : f32
    %390 = vector.broadcast %cst_173 : f32 to vector<8x32xf32>
    %391 = arith.addf %390, %389 : vector<8x32xf32>
    %392 = arith.divf %390, %391 : vector<8x32xf32>
    %393 = vector.extract_strided_slice %380 {offsets = [0, 64], sizes = [8, 32], strides = [1, 1]} : vector<8x128xf32> to vector<8x32xf32>
    %394 = math.tanh %393 : vector<8x32xf32>
    %395 = vector.extract_strided_slice %380 {offsets = [0, 96], sizes = [8, 32], strides = [1, 1]} : vector<8x128xf32> to vector<8x32xf32>
    %396 = arith.negf %395 : vector<8x32xf32>
    %397 = math.exp %396 : vector<8x32xf32>
    %cst_174 = arith.constant 1.000000e+00 : f32
    %398 = vector.broadcast %cst_174 : f32 to vector<8x32xf32>
    %399 = arith.addf %398, %397 : vector<8x32xf32>
    %400 = arith.divf %398, %399 : vector<8x32xf32>
    %401 = arith.mulf %386, %394 : vector<8x32xf32>
    %402 = arith.mulf %392, %377 : vector<8x32xf32>
    %403 = arith.addf %401, %402 : vector<8x32xf32>
    %cst_175 = arith.constant -3.000000e+00 : f32
    %cst_176 = arith.constant 3.000000e+00 : f32
    %404 = vector.broadcast %cst_175 : f32 to vector<8x32xf32>
    %405 = arith.maximumf %404, %403 : vector<8x32xf32>
    %406 = vector.broadcast %cst_176 : f32 to vector<8x32xf32>
    %407 = arith.minimumf %406, %405 : vector<8x32xf32>
    %408 = math.tanh %407 : vector<8x32xf32>
    %409 = arith.mulf %400, %408 : vector<8x32xf32>
    %cst_177 = arith.constant dense<0.000000e+00> : vector<8x32xf32>
    %410 = tpu.matmul %409, %12, %cst_177 {dimension_numbers = #tpu.dot_dimension_numbers<[1], [0], [0], [1], [0, 0, 1, 1], [], []>} : vector<8x32xf32>, vector<32x32xf32>, vector<8x32xf32> -> vector<8x32xf32>
    %cst_178 = arith.constant -3.000000e+00 : f32
    %cst_179 = arith.constant 3.000000e+00 : f32
    %411 = vector.broadcast %cst_178 : f32 to vector<8x32xf32>
    %412 = arith.maximumf %411, %410 : vector<8x32xf32>
    %413 = vector.broadcast %cst_179 : f32 to vector<8x32xf32>
    %414 = arith.minimumf %413, %412 : vector<8x32xf32>
    %c7 = arith.constant 7 : index
    %415 = memref.load %arg1[%c7] : memref<8xi32, #tpu.memory_space<smem>>
    %416 = vector.broadcast %415 : i32 to vector<8x1xi32>
    %417 = arith.cmpi slt, %0, %416 : vector<8x1xi32>
    %418 = vector.shape_cast %417 : vector<8x1xi1> to vector<8x1xi1>
    %419 = vector.broadcast %418 : vector<8x1xi1> to vector<8x32xi1>
    %420 = arith.select %419, %414, %376 : vector<8x32xi1>, vector<8x32xf32>
    %421 = vector.shape_cast %417 : vector<8x1xi1> to vector<8x1xi1>
    %422 = vector.broadcast %421 : vector<8x1xi1> to vector<8x32xi1>
    %423 = arith.select %422, %407, %377 : vector<8x32xi1>, vector<8x32xf32>
    %c0_180 = arith.constant 0 : index
    %c0_181 = arith.constant 0 : index
    %424 = vector.load %arg14[%c0_180, %c0_181] : memref<8x32xf32, #tpu.memory_space<vmem>>, vector<8x32xf32>
    tpu.vector_store %arg14[%c0_180, %c0_181], %420 {strides = array<i32>} : memref<8x32xf32, #tpu.memory_space<vmem>>, vector<8x32xf32>,
    %c0_182 = arith.constant 0 : index
    %c0_183 = arith.constant 0 : index
    %425 = vector.load %arg15[%c0_182, %c0_183] : memref<8x32xf32, #tpu.memory_space<vmem>>, vector<8x32xf32>
    tpu.vector_store %arg15[%c0_182, %c0_183], %423 {strides = array<i32>} : memref<8x32xf32, #tpu.memory_space<vmem>>, vector<8x32xf32>,
    %c56_184 = arith.constant 56 : index
    %c0_185 = arith.constant 0 : index
    %426 = vector.load %arg10[%c56_184, %c0_185] : memref<128x32xf32, #tpu.memory_space<vmem>>, vector<8x32xf32>
    tpu.vector_store %arg10[%c56_184, %c0_185], %420 {strides = array<i32>} : memref<128x32xf32, #tpu.memory_space<vmem>>, vector<8x32xf32>,
    %c0_186 = arith.constant 0 : index
    %c0_187 = arith.constant 0 : index
    %427 = vector.load %arg14[%c0_186, %c0_187] : memref<8x32xf32, #tpu.memory_space<vmem>>, vector<8x32xf32>
    %c0_188 = arith.constant 0 : index
    %c0_189 = arith.constant 0 : index
    %c0_190 = arith.constant 0 : index
    %428 = vector.load %arg11[%c0_188, %c0_189, %c0_190] : memref<2x8x32xf32, #tpu.memory_space<vmem>>, vector<1x8x32xf32>
    %429 = vector.shape_cast %428 : vector<1x8x32xf32> to vector<8x32xf32>
    %430 = vector.shape_cast %427 : vector<8x32xf32> to vector<1x8x32xf32>
    tpu.vector_store %arg11[%c0_188, %c0_189, %c0_190], %430 {strides = array<i32>} : memref<2x8x32xf32, #tpu.memory_space<vmem>>, vector<1x8x32xf32>,
    %c0_191 = arith.constant 0 : index
    %c0_192 = arith.constant 0 : index
    %431 = vector.load %arg15[%c0_191, %c0_192] : memref<8x32xf32, #tpu.memory_space<vmem>>, vector<8x32xf32>
    %c0_193 = arith.constant 0 : index
    %c0_194 = arith.constant 0 : index
    %c0_195 = arith.constant 0 : index
    %432 = vector.load %arg12[%c0_193, %c0_194, %c0_195] : memref<2x8x32xf32, #tpu.memory_space<vmem>>, vector<1x8x32xf32>
    %433 = vector.shape_cast %432 : vector<1x8x32xf32> to vector<8x32xf32>
    %434 = vector.shape_cast %431 : vector<8x32xf32> to vector<1x8x32xf32>
    tpu.vector_store %arg12[%c0_193, %c0_194, %c0_195], %434 {strides = array<i32>} : memref<2x8x32xf32, #tpu.memory_space<vmem>>, vector<1x8x32xf32>,
    %c0_196 = arith.constant 0 : index
    %c0_197 = arith.constant 0 : index
    %435 = vector.load %arg10[%c0_196, %c0_197] : memref<128x32xf32, #tpu.memory_space<vmem>>, vector<64x32xf32>
    %c1_198 = arith.constant 1 : index
    %c0_199 = arith.constant 0 : index
    %c0_200 = arith.constant 0 : index
    %436 = vector.load %arg6[%c1_198, %c0_199, %c0_200] : memref<2x32x128xf32, #tpu.memory_space<vmem>>, vector<1x32x128xf32>
    %437 = vector.shape_cast %436 : vector<1x32x128xf32> to vector<32x128xf32>
    %cst_201 = arith.constant dense<0.000000e+00> : vector<64x128xf32>
    %438 = tpu.matmul %435, %437, %cst_201 {dimension_numbers = #tpu.dot_dimension_numbers<[1], [0], [0], [1], [0, 0, 1, 1], [], []>} : vector<64x32xf32>, vector<32x128xf32>, vector<64x128xf32> -> vector<64x128xf32>
    %c1_202 = arith.constant 1 : index
    %c0_203 = arith.constant 0 : index
    %c0_204 = arith.constant 0 : index
    %439 = vector.load %arg8[%c1_202, %c0_203, %c0_204] : memref<2x1x128xf32, #tpu.memory_space<vmem>>, vector<1x1x128xf32>
    %440 = vector.shape_cast %439 : vector<1x1x128xf32> to vector<1x128xf32>
    %441 = vector.broadcast %440 : vector<1x128xf32> to vector<64x128xf32>
    %442 = arith.addf %438, %441 : vector<64x128xf32>
    %c0_205 = arith.constant 0 : index
    %c0_206 = arith.constant 0 : index
    %443 = vector.load %arg13[%c0_205, %c0_206] : memref<64x128xf32, #tpu.memory_space<vmem>>, vector<64x128xf32>
    tpu.vector_store %arg13[%c0_205, %c0_206], %442 {strides = array<i32>} : memref<64x128xf32, #tpu.memory_space<vmem>>, vector<64x128xf32>,
    %c1_207 = arith.constant 1 : index
    %c0_208 = arith.constant 0 : index
    %c0_209 = arith.constant 0 : index
    %444 = vector.load %arg7[%c1_207, %c0_208, %c0_209] : memref<2x32x128xf32, #tpu.memory_space<vmem>>, vector<1x32x128xf32>
    %445 = vector.shape_cast %444 : vector<1x32x128xf32> to vector<32x128xf32>
    %c1_210 = arith.constant 1 : index
    %c0_211 = arith.constant 0 : index
    %c0_212 = arith.constant 0 : index
    %446 = vector.load %arg9[%c1_210, %c0_211, %c0_212] : memref<2x32x32xf32, #tpu.memory_space<vmem>>, vector<1x32x32xf32>
    %447 = vector.shape_cast %446 : vector<1x32x32xf32> to vector<32x32xf32>
    %c1_213 = arith.constant 1 : index
    %c0_214 = arith.constant 0 : index
    %c0_215 = arith.constant 0 : index
    %448 = vector.load %arg3[%c1_213, %c0_214, %c0_215] : memref<2x8x32xf32, #tpu.memory_space<vmem>>, vector<1x8x32xf32>
    %449 = vector.shape_cast %448 : vector<1x8x32xf32> to vector<8x32xf32>
    %c0_216 = arith.constant 0 : index
    %c0_217 = arith.constant 0 : index
    %450 = vector.load %arg14[%c0_216, %c0_217] : memref<8x32xf32, #tpu.memory_space<vmem>>, vector<8x32xf32>
    tpu.vector_store %arg14[%c0_216, %c0_217], %449 {strides = array<i32>} : memref<8x32xf32, #tpu.memory_space<vmem>>, vector<8x32xf32>,
    %c1_218 = arith.constant 1 : index
    %c0_219 = arith.constant 0 : index
    %c0_220 = arith.constant 0 : index
    %451 = vector.load %arg4[%c1_218, %c0_219, %c0_220] : memref<2x8x32xf32, #tpu.memory_space<vmem>>, vector<1x8x32xf32>
    %452 = vector.shape_cast %451 : vector<1x8x32xf32> to vector<8x32xf32>
    %c0_221 = arith.constant 0 : index
    %c0_222 = arith.constant 0 : index
    %453 = vector.load %arg15[%c0_221, %c0_222] : memref<8x32xf32, #tpu.memory_space<vmem>>, vector<8x32xf32>
    tpu.vector_store %arg15[%c0_221, %c0_222], %452 {strides = array<i32>} : memref<8x32xf32, #tpu.memory_space<vmem>>, vector<8x32xf32>,
    %c0_223 = arith.constant 0 : index
    %c0_224 = arith.constant 0 : index
    %454 = vector.load %arg14[%c0_223, %c0_224] : memref<8x32xf32, #tpu.memory_space<vmem>>, vector<8x32xf32>
    %c0_225 = arith.constant 0 : index
    %c0_226 = arith.constant 0 : index
    %455 = vector.load %arg15[%c0_225, %c0_226] : memref<8x32xf32, #tpu.memory_space<vmem>>, vector<8x32xf32>
    %c0_227 = arith.constant 0 : index
    %c0_228 = arith.constant 0 : index
    %456 = vector.load %arg13[%c0_227, %c0_228] : memref<64x128xf32, #tpu.memory_space<vmem>>, vector<8x128xf32>
    %cst_229 = arith.constant dense<0.000000e+00> : vector<8x128xf32>
    %457 = tpu.matmul %454, %445, %cst_229 {dimension_numbers = #tpu.dot_dimension_numbers<[1], [0], [0], [1], [0, 0, 1, 1], [], []>} : vector<8x32xf32>, vector<32x128xf32>, vector<8x128xf32> -> vector<8x128xf32>
    %458 = arith.addf %456, %457 : vector<8x128xf32>
    %459 = vector.extract_strided_slice %458 {offsets = [0, 0], sizes = [8, 32], strides = [1, 1]} : vector<8x128xf32> to vector<8x32xf32>
    %460 = arith.negf %459 : vector<8x32xf32>
    %461 = math.exp %460 : vector<8x32xf32>
    %cst_230 = arith.constant 1.000000e+00 : f32
    %462 = vector.broadcast %cst_230 : f32 to vector<8x32xf32>
    %463 = arith.addf %462, %461 : vector<8x32xf32>
    %464 = arith.divf %462, %463 : vector<8x32xf32>
    %465 = vector.extract_strided_slice %458 {offsets = [0, 32], sizes = [8, 32], strides = [1, 1]} : vector<8x128xf32> to vector<8x32xf32>
    %466 = arith.negf %465 : vector<8x32xf32>
    %467 = math.exp %466 : vector<8x32xf32>
    %cst_231 = arith.constant 1.000000e+00 : f32
    %468 = vector.broadcast %cst_231 : f32 to vector<8x32xf32>
    %469 = arith.addf %468, %467 : vector<8x32xf32>
    %470 = arith.divf %468, %469 : vector<8x32xf32>
    %471 = vector.extract_strided_slice %458 {offsets = [0, 64], sizes = [8, 32], strides = [1, 1]} : vector<8x128xf32> to vector<8x32xf32>
    %472 = math.tanh %471 : vector<8x32xf32>
    %473 = vector.extract_strided_slice %458 {offsets = [0, 96], sizes = [8, 32], strides = [1, 1]} : vector<8x128xf32> to vector<8x32xf32>
    %474 = arith.negf %473 : vector<8x32xf32>
    %475 = math.exp %474 : vector<8x32xf32>
    %cst_232 = arith.constant 1.000000e+00 : f32
    %476 = vector.broadcast %cst_232 : f32 to vector<8x32xf32>
    %477 = arith.addf %476, %475 : vector<8x32xf32>
    %478 = arith.divf %476, %477 : vector<8x32xf32>
    %479 = arith.mulf %464, %472 : vector<8x32xf32>
    %480 = arith.mulf %470, %455 : vector<8x32xf32>
    %481 = arith.addf %479, %480 : vector<8x32xf32>
    %cst_233 = arith.constant -3.000000e+00 : f32
    %cst_234 = arith.constant 3.000000e+00 : f32
    %482 = vector.broadcast %cst_233 : f32 to vector<8x32xf32>
    %483 = arith.maximumf %482, %481 : vector<8x32xf32>
    %484 = vector.broadcast %cst_234 : f32 to vector<8x32xf32>
    %485 = arith.minimumf %484, %483 : vector<8x32xf32>
    %486 = math.tanh %485 : vector<8x32xf32>
    %487 = arith.mulf %478, %486 : vector<8x32xf32>
    %cst_235 = arith.constant dense<0.000000e+00> : vector<8x32xf32>
    %488 = tpu.matmul %487, %447, %cst_235 {dimension_numbers = #tpu.dot_dimension_numbers<[1], [0], [0], [1], [0, 0, 1, 1], [], []>} : vector<8x32xf32>, vector<32x32xf32>, vector<8x32xf32> -> vector<8x32xf32>
    %cst_236 = arith.constant -3.000000e+00 : f32
    %cst_237 = arith.constant 3.000000e+00 : f32
    %489 = vector.broadcast %cst_236 : f32 to vector<8x32xf32>
    %490 = arith.maximumf %489, %488 : vector<8x32xf32>
    %491 = vector.broadcast %cst_237 : f32 to vector<8x32xf32>
    %492 = arith.minimumf %491, %490 : vector<8x32xf32>
    %c0_238 = arith.constant 0 : index
    %493 = memref.load %arg1[%c0_238] : memref<8xi32, #tpu.memory_space<smem>>
    %494 = vector.broadcast %493 : i32 to vector<8x1xi32>
    %495 = arith.cmpi slt, %0, %494 : vector<8x1xi32>
    %496 = vector.shape_cast %495 : vector<8x1xi1> to vector<8x1xi1>
    %497 = vector.broadcast %496 : vector<8x1xi1> to vector<8x32xi1>
    %498 = arith.select %497, %492, %454 : vector<8x32xi1>, vector<8x32xf32>
    %499 = vector.shape_cast %495 : vector<8x1xi1> to vector<8x1xi1>
    %500 = vector.broadcast %499 : vector<8x1xi1> to vector<8x32xi1>
    %501 = arith.select %500, %485, %455 : vector<8x32xi1>, vector<8x32xf32>
    %c0_239 = arith.constant 0 : index
    %c0_240 = arith.constant 0 : index
    %502 = vector.load %arg14[%c0_239, %c0_240] : memref<8x32xf32, #tpu.memory_space<vmem>>, vector<8x32xf32>
    tpu.vector_store %arg14[%c0_239, %c0_240], %498 {strides = array<i32>} : memref<8x32xf32, #tpu.memory_space<vmem>>, vector<8x32xf32>,
    %c0_241 = arith.constant 0 : index
    %c0_242 = arith.constant 0 : index
    %503 = vector.load %arg15[%c0_241, %c0_242] : memref<8x32xf32, #tpu.memory_space<vmem>>, vector<8x32xf32>
    tpu.vector_store %arg15[%c0_241, %c0_242], %501 {strides = array<i32>} : memref<8x32xf32, #tpu.memory_space<vmem>>, vector<8x32xf32>,
    %c64 = arith.constant 64 : index
    %c0_243 = arith.constant 0 : index
    %504 = vector.load %arg10[%c64, %c0_243] : memref<128x32xf32, #tpu.memory_space<vmem>>, vector<8x32xf32>
    tpu.vector_store %arg10[%c64, %c0_243], %498 {strides = array<i32>} : memref<128x32xf32, #tpu.memory_space<vmem>>, vector<8x32xf32>,
    %c0_244 = arith.constant 0 : index
    %c0_245 = arith.constant 0 : index
    %505 = vector.load %arg14[%c0_244, %c0_245] : memref<8x32xf32, #tpu.memory_space<vmem>>, vector<8x32xf32>
    %c0_246 = arith.constant 0 : index
    %c0_247 = arith.constant 0 : index
    %506 = vector.load %arg15[%c0_246, %c0_247] : memref<8x32xf32, #tpu.memory_space<vmem>>, vector<8x32xf32>
    %c8_248 = arith.constant 8 : index
    %c0_249 = arith.constant 0 : index
    %507 = vector.load %arg13[%c8_248, %c0_249] : memref<64x128xf32, #tpu.memory_space<vmem>>, vector<8x128xf32>
    %cst_250 = arith.constant dense<0.000000e+00> : vector<8x128xf32>
    %508 = tpu.matmul %505, %445, %cst_250 {dimension_numbers = #tpu.dot_dimension_numbers<[1], [0], [0], [1], [0, 0, 1, 1], [], []>} : vector<8x32xf32>, vector<32x128xf32>, vector<8x128xf32> -> vector<8x128xf32>
    %509 = arith.addf %507, %508 : vector<8x128xf32>
    %510 = vector.extract_strided_slice %509 {offsets = [0, 0], sizes = [8, 32], strides = [1, 1]} : vector<8x128xf32> to vector<8x32xf32>
    %511 = arith.negf %510 : vector<8x32xf32>
    %512 = math.exp %511 : vector<8x32xf32>
    %cst_251 = arith.constant 1.000000e+00 : f32
    %513 = vector.broadcast %cst_251 : f32 to vector<8x32xf32>
    %514 = arith.addf %513, %512 : vector<8x32xf32>
    %515 = arith.divf %513, %514 : vector<8x32xf32>
    %516 = vector.extract_strided_slice %509 {offsets = [0, 32], sizes = [8, 32], strides = [1, 1]} : vector<8x128xf32> to vector<8x32xf32>
    %517 = arith.negf %516 : vector<8x32xf32>
    %518 = math.exp %517 : vector<8x32xf32>
    %cst_252 = arith.constant 1.000000e+00 : f32
    %519 = vector.broadcast %cst_252 : f32 to vector<8x32xf32>
    %520 = arith.addf %519, %518 : vector<8x32xf32>
    %521 = arith.divf %519, %520 : vector<8x32xf32>
    %522 = vector.extract_strided_slice %509 {offsets = [0, 64], sizes = [8, 32], strides = [1, 1]} : vector<8x128xf32> to vector<8x32xf32>
    %523 = math.tanh %522 : vector<8x32xf32>
    %524 = vector.extract_strided_slice %509 {offsets = [0, 96], sizes = [8, 32], strides = [1, 1]} : vector<8x128xf32> to vector<8x32xf32>
    %525 = arith.negf %524 : vector<8x32xf32>
    %526 = math.exp %525 : vector<8x32xf32>
    %cst_253 = arith.constant 1.000000e+00 : f32
    %527 = vector.broadcast %cst_253 : f32 to vector<8x32xf32>
    %528 = arith.addf %527, %526 : vector<8x32xf32>
    %529 = arith.divf %527, %528 : vector<8x32xf32>
    %530 = arith.mulf %515, %523 : vector<8x32xf32>
    %531 = arith.mulf %521, %506 : vector<8x32xf32>
    %532 = arith.addf %530, %531 : vector<8x32xf32>
    %cst_254 = arith.constant -3.000000e+00 : f32
    %cst_255 = arith.constant 3.000000e+00 : f32
    %533 = vector.broadcast %cst_254 : f32 to vector<8x32xf32>
    %534 = arith.maximumf %533, %532 : vector<8x32xf32>
    %535 = vector.broadcast %cst_255 : f32 to vector<8x32xf32>
    %536 = arith.minimumf %535, %534 : vector<8x32xf32>
    %537 = math.tanh %536 : vector<8x32xf32>
    %538 = arith.mulf %529, %537 : vector<8x32xf32>
    %cst_256 = arith.constant dense<0.000000e+00> : vector<8x32xf32>
    %539 = tpu.matmul %538, %447, %cst_256 {dimension_numbers = #tpu.dot_dimension_numbers<[1], [0], [0], [1], [0, 0, 1, 1], [], []>} : vector<8x32xf32>, vector<32x32xf32>, vector<8x32xf32> -> vector<8x32xf32>
    %cst_257 = arith.constant -3.000000e+00 : f32
    %cst_258 = arith.constant 3.000000e+00 : f32
    %540 = vector.broadcast %cst_257 : f32 to vector<8x32xf32>
    %541 = arith.maximumf %540, %539 : vector<8x32xf32>
    %542 = vector.broadcast %cst_258 : f32 to vector<8x32xf32>
    %543 = arith.minimumf %542, %541 : vector<8x32xf32>
    %c1_259 = arith.constant 1 : index
    %544 = memref.load %arg1[%c1_259] : memref<8xi32, #tpu.memory_space<smem>>
    %545 = vector.broadcast %544 : i32 to vector<8x1xi32>
    %546 = arith.cmpi slt, %0, %545 : vector<8x1xi32>
    %547 = vector.shape_cast %546 : vector<8x1xi1> to vector<8x1xi1>
    %548 = vector.broadcast %547 : vector<8x1xi1> to vector<8x32xi1>
    %549 = arith.select %548, %543, %505 : vector<8x32xi1>, vector<8x32xf32>
    %550 = vector.shape_cast %546 : vector<8x1xi1> to vector<8x1xi1>
    %551 = vector.broadcast %550 : vector<8x1xi1> to vector<8x32xi1>
    %552 = arith.select %551, %536, %506 : vector<8x32xi1>, vector<8x32xf32>
    %c0_260 = arith.constant 0 : index
    %c0_261 = arith.constant 0 : index
    %553 = vector.load %arg14[%c0_260, %c0_261] : memref<8x32xf32, #tpu.memory_space<vmem>>, vector<8x32xf32>
    tpu.vector_store %arg14[%c0_260, %c0_261], %549 {strides = array<i32>} : memref<8x32xf32, #tpu.memory_space<vmem>>, vector<8x32xf32>,
    %c0_262 = arith.constant 0 : index
    %c0_263 = arith.constant 0 : index
    %554 = vector.load %arg15[%c0_262, %c0_263] : memref<8x32xf32, #tpu.memory_space<vmem>>, vector<8x32xf32>
    tpu.vector_store %arg15[%c0_262, %c0_263], %552 {strides = array<i32>} : memref<8x32xf32, #tpu.memory_space<vmem>>, vector<8x32xf32>,
    %c72 = arith.constant 72 : index
    %c0_264 = arith.constant 0 : index
    %555 = vector.load %arg10[%c72, %c0_264] : memref<128x32xf32, #tpu.memory_space<vmem>>, vector<8x32xf32>
    tpu.vector_store %arg10[%c72, %c0_264], %549 {strides = array<i32>} : memref<128x32xf32, #tpu.memory_space<vmem>>, vector<8x32xf32>,
    %c0_265 = arith.constant 0 : index
    %c0_266 = arith.constant 0 : index
    %556 = vector.load %arg14[%c0_265, %c0_266] : memref<8x32xf32, #tpu.memory_space<vmem>>, vector<8x32xf32>
    %c0_267 = arith.constant 0 : index
    %c0_268 = arith.constant 0 : index
    %557 = vector.load %arg15[%c0_267, %c0_268] : memref<8x32xf32, #tpu.memory_space<vmem>>, vector<8x32xf32>
    %c16_269 = arith.constant 16 : index
    %c0_270 = arith.constant 0 : index
    %558 = vector.load %arg13[%c16_269, %c0_270] : memref<64x128xf32, #tpu.memory_space<vmem>>, vector<8x128xf32>
    %cst_271 = arith.constant dense<0.000000e+00> : vector<8x128xf32>
    %559 = tpu.matmul %556, %445, %cst_271 {dimension_numbers = #tpu.dot_dimension_numbers<[1], [0], [0], [1], [0, 0, 1, 1], [], []>} : vector<8x32xf32>, vector<32x128xf32>, vector<8x128xf32> -> vector<8x128xf32>
    %560 = arith.addf %558, %559 : vector<8x128xf32>
    %561 = vector.extract_strided_slice %560 {offsets = [0, 0], sizes = [8, 32], strides = [1, 1]} : vector<8x128xf32> to vector<8x32xf32>
    %562 = arith.negf %561 : vector<8x32xf32>
    %563 = math.exp %562 : vector<8x32xf32>
    %cst_272 = arith.constant 1.000000e+00 : f32
    %564 = vector.broadcast %cst_272 : f32 to vector<8x32xf32>
    %565 = arith.addf %564, %563 : vector<8x32xf32>
    %566 = arith.divf %564, %565 : vector<8x32xf32>
    %567 = vector.extract_strided_slice %560 {offsets = [0, 32], sizes = [8, 32], strides = [1, 1]} : vector<8x128xf32> to vector<8x32xf32>
    %568 = arith.negf %567 : vector<8x32xf32>
    %569 = math.exp %568 : vector<8x32xf32>
    %cst_273 = arith.constant 1.000000e+00 : f32
    %570 = vector.broadcast %cst_273 : f32 to vector<8x32xf32>
    %571 = arith.addf %570, %569 : vector<8x32xf32>
    %572 = arith.divf %570, %571 : vector<8x32xf32>
    %573 = vector.extract_strided_slice %560 {offsets = [0, 64], sizes = [8, 32], strides = [1, 1]} : vector<8x128xf32> to vector<8x32xf32>
    %574 = math.tanh %573 : vector<8x32xf32>
    %575 = vector.extract_strided_slice %560 {offsets = [0, 96], sizes = [8, 32], strides = [1, 1]} : vector<8x128xf32> to vector<8x32xf32>
    %576 = arith.negf %575 : vector<8x32xf32>
    %577 = math.exp %576 : vector<8x32xf32>
    %cst_274 = arith.constant 1.000000e+00 : f32
    %578 = vector.broadcast %cst_274 : f32 to vector<8x32xf32>
    %579 = arith.addf %578, %577 : vector<8x32xf32>
    %580 = arith.divf %578, %579 : vector<8x32xf32>
    %581 = arith.mulf %566, %574 : vector<8x32xf32>
    %582 = arith.mulf %572, %557 : vector<8x32xf32>
    %583 = arith.addf %581, %582 : vector<8x32xf32>
    %cst_275 = arith.constant -3.000000e+00 : f32
    %cst_276 = arith.constant 3.000000e+00 : f32
    %584 = vector.broadcast %cst_275 : f32 to vector<8x32xf32>
    %585 = arith.maximumf %584, %583 : vector<8x32xf32>
    %586 = vector.broadcast %cst_276 : f32 to vector<8x32xf32>
    %587 = arith.minimumf %586, %585 : vector<8x32xf32>
    %588 = math.tanh %587 : vector<8x32xf32>
    %589 = arith.mulf %580, %588 : vector<8x32xf32>
    %cst_277 = arith.constant dense<0.000000e+00> : vector<8x32xf32>
    %590 = tpu.matmul %589, %447, %cst_277 {dimension_numbers = #tpu.dot_dimension_numbers<[1], [0], [0], [1], [0, 0, 1, 1], [], []>} : vector<8x32xf32>, vector<32x32xf32>, vector<8x32xf32> -> vector<8x32xf32>
    %cst_278 = arith.constant -3.000000e+00 : f32
    %cst_279 = arith.constant 3.000000e+00 : f32
    %591 = vector.broadcast %cst_278 : f32 to vector<8x32xf32>
    %592 = arith.maximumf %591, %590 : vector<8x32xf32>
    %593 = vector.broadcast %cst_279 : f32 to vector<8x32xf32>
    %594 = arith.minimumf %593, %592 : vector<8x32xf32>
    %c2_280 = arith.constant 2 : index
    %595 = memref.load %arg1[%c2_280] : memref<8xi32, #tpu.memory_space<smem>>
    %596 = vector.broadcast %595 : i32 to vector<8x1xi32>
    %597 = arith.cmpi slt, %0, %596 : vector<8x1xi32>
    %598 = vector.shape_cast %597 : vector<8x1xi1> to vector<8x1xi1>
    %599 = vector.broadcast %598 : vector<8x1xi1> to vector<8x32xi1>
    %600 = arith.select %599, %594, %556 : vector<8x32xi1>, vector<8x32xf32>
    %601 = vector.shape_cast %597 : vector<8x1xi1> to vector<8x1xi1>
    %602 = vector.broadcast %601 : vector<8x1xi1> to vector<8x32xi1>
    %603 = arith.select %602, %587, %557 : vector<8x32xi1>, vector<8x32xf32>
    %c0_281 = arith.constant 0 : index
    %c0_282 = arith.constant 0 : index
    %604 = vector.load %arg14[%c0_281, %c0_282] : memref<8x32xf32, #tpu.memory_space<vmem>>, vector<8x32xf32>
    tpu.vector_store %arg14[%c0_281, %c0_282], %600 {strides = array<i32>} : memref<8x32xf32, #tpu.memory_space<vmem>>, vector<8x32xf32>,
    %c0_283 = arith.constant 0 : index
    %c0_284 = arith.constant 0 : index
    %605 = vector.load %arg15[%c0_283, %c0_284] : memref<8x32xf32, #tpu.memory_space<vmem>>, vector<8x32xf32>
    tpu.vector_store %arg15[%c0_283, %c0_284], %603 {strides = array<i32>} : memref<8x32xf32, #tpu.memory_space<vmem>>, vector<8x32xf32>,
    %c80 = arith.constant 80 : index
    %c0_285 = arith.constant 0 : index
    %606 = vector.load %arg10[%c80, %c0_285] : memref<128x32xf32, #tpu.memory_space<vmem>>, vector<8x32xf32>
    tpu.vector_store %arg10[%c80, %c0_285], %600 {strides = array<i32>} : memref<128x32xf32, #tpu.memory_space<vmem>>, vector<8x32xf32>,
    %c0_286 = arith.constant 0 : index
    %c0_287 = arith.constant 0 : index
    %607 = vector.load %arg14[%c0_286, %c0_287] : memref<8x32xf32, #tpu.memory_space<vmem>>, vector<8x32xf32>
    %c0_288 = arith.constant 0 : index
    %c0_289 = arith.constant 0 : index
    %608 = vector.load %arg15[%c0_288, %c0_289] : memref<8x32xf32, #tpu.memory_space<vmem>>, vector<8x32xf32>
    %c24_290 = arith.constant 24 : index
    %c0_291 = arith.constant 0 : index
    %609 = vector.load %arg13[%c24_290, %c0_291] : memref<64x128xf32, #tpu.memory_space<vmem>>, vector<8x128xf32>
    %cst_292 = arith.constant dense<0.000000e+00> : vector<8x128xf32>
    %610 = tpu.matmul %607, %445, %cst_292 {dimension_numbers = #tpu.dot_dimension_numbers<[1], [0], [0], [1], [0, 0, 1, 1], [], []>} : vector<8x32xf32>, vector<32x128xf32>, vector<8x128xf32> -> vector<8x128xf32>
    %611 = arith.addf %609, %610 : vector<8x128xf32>
    %612 = vector.extract_strided_slice %611 {offsets = [0, 0], sizes = [8, 32], strides = [1, 1]} : vector<8x128xf32> to vector<8x32xf32>
    %613 = arith.negf %612 : vector<8x32xf32>
    %614 = math.exp %613 : vector<8x32xf32>
    %cst_293 = arith.constant 1.000000e+00 : f32
    %615 = vector.broadcast %cst_293 : f32 to vector<8x32xf32>
    %616 = arith.addf %615, %614 : vector<8x32xf32>
    %617 = arith.divf %615, %616 : vector<8x32xf32>
    %618 = vector.extract_strided_slice %611 {offsets = [0, 32], sizes = [8, 32], strides = [1, 1]} : vector<8x128xf32> to vector<8x32xf32>
    %619 = arith.negf %618 : vector<8x32xf32>
    %620 = math.exp %619 : vector<8x32xf32>
    %cst_294 = arith.constant 1.000000e+00 : f32
    %621 = vector.broadcast %cst_294 : f32 to vector<8x32xf32>
    %622 = arith.addf %621, %620 : vector<8x32xf32>
    %623 = arith.divf %621, %622 : vector<8x32xf32>
    %624 = vector.extract_strided_slice %611 {offsets = [0, 64], sizes = [8, 32], strides = [1, 1]} : vector<8x128xf32> to vector<8x32xf32>
    %625 = math.tanh %624 : vector<8x32xf32>
    %626 = vector.extract_strided_slice %611 {offsets = [0, 96], sizes = [8, 32], strides = [1, 1]} : vector<8x128xf32> to vector<8x32xf32>
    %627 = arith.negf %626 : vector<8x32xf32>
    %628 = math.exp %627 : vector<8x32xf32>
    %cst_295 = arith.constant 1.000000e+00 : f32
    %629 = vector.broadcast %cst_295 : f32 to vector<8x32xf32>
    %630 = arith.addf %629, %628 : vector<8x32xf32>
    %631 = arith.divf %629, %630 : vector<8x32xf32>
    %632 = arith.mulf %617, %625 : vector<8x32xf32>
    %633 = arith.mulf %623, %608 : vector<8x32xf32>
    %634 = arith.addf %632, %633 : vector<8x32xf32>
    %cst_296 = arith.constant -3.000000e+00 : f32
    %cst_297 = arith.constant 3.000000e+00 : f32
    %635 = vector.broadcast %cst_296 : f32 to vector<8x32xf32>
    %636 = arith.maximumf %635, %634 : vector<8x32xf32>
    %637 = vector.broadcast %cst_297 : f32 to vector<8x32xf32>
    %638 = arith.minimumf %637, %636 : vector<8x32xf32>
    %639 = math.tanh %638 : vector<8x32xf32>
    %640 = arith.mulf %631, %639 : vector<8x32xf32>
    %cst_298 = arith.constant dense<0.000000e+00> : vector<8x32xf32>
    %641 = tpu.matmul %640, %447, %cst_298 {dimension_numbers = #tpu.dot_dimension_numbers<[1], [0], [0], [1], [0, 0, 1, 1], [], []>} : vector<8x32xf32>, vector<32x32xf32>, vector<8x32xf32> -> vector<8x32xf32>
    %cst_299 = arith.constant -3.000000e+00 : f32
    %cst_300 = arith.constant 3.000000e+00 : f32
    %642 = vector.broadcast %cst_299 : f32 to vector<8x32xf32>
    %643 = arith.maximumf %642, %641 : vector<8x32xf32>
    %644 = vector.broadcast %cst_300 : f32 to vector<8x32xf32>
    %645 = arith.minimumf %644, %643 : vector<8x32xf32>
    %c3_301 = arith.constant 3 : index
    %646 = memref.load %arg1[%c3_301] : memref<8xi32, #tpu.memory_space<smem>>
    %647 = vector.broadcast %646 : i32 to vector<8x1xi32>
    %648 = arith.cmpi slt, %0, %647 : vector<8x1xi32>
    %649 = vector.shape_cast %648 : vector<8x1xi1> to vector<8x1xi1>
    %650 = vector.broadcast %649 : vector<8x1xi1> to vector<8x32xi1>
    %651 = arith.select %650, %645, %607 : vector<8x32xi1>, vector<8x32xf32>
    %652 = vector.shape_cast %648 : vector<8x1xi1> to vector<8x1xi1>
    %653 = vector.broadcast %652 : vector<8x1xi1> to vector<8x32xi1>
    %654 = arith.select %653, %638, %608 : vector<8x32xi1>, vector<8x32xf32>
    %c0_302 = arith.constant 0 : index
    %c0_303 = arith.constant 0 : index
    %655 = vector.load %arg14[%c0_302, %c0_303] : memref<8x32xf32, #tpu.memory_space<vmem>>, vector<8x32xf32>
    tpu.vector_store %arg14[%c0_302, %c0_303], %651 {strides = array<i32>} : memref<8x32xf32, #tpu.memory_space<vmem>>, vector<8x32xf32>,
    %c0_304 = arith.constant 0 : index
    %c0_305 = arith.constant 0 : index
    %656 = vector.load %arg15[%c0_304, %c0_305] : memref<8x32xf32, #tpu.memory_space<vmem>>, vector<8x32xf32>
    tpu.vector_store %arg15[%c0_304, %c0_305], %654 {strides = array<i32>} : memref<8x32xf32, #tpu.memory_space<vmem>>, vector<8x32xf32>,
    %c88 = arith.constant 88 : index
    %c0_306 = arith.constant 0 : index
    %657 = vector.load %arg10[%c88, %c0_306] : memref<128x32xf32, #tpu.memory_space<vmem>>, vector<8x32xf32>
    tpu.vector_store %arg10[%c88, %c0_306], %651 {strides = array<i32>} : memref<128x32xf32, #tpu.memory_space<vmem>>, vector<8x32xf32>,
    %c0_307 = arith.constant 0 : index
    %c0_308 = arith.constant 0 : index
    %658 = vector.load %arg14[%c0_307, %c0_308] : memref<8x32xf32, #tpu.memory_space<vmem>>, vector<8x32xf32>
    %c0_309 = arith.constant 0 : index
    %c0_310 = arith.constant 0 : index
    %659 = vector.load %arg15[%c0_309, %c0_310] : memref<8x32xf32, #tpu.memory_space<vmem>>, vector<8x32xf32>
    %c32_311 = arith.constant 32 : index
    %c0_312 = arith.constant 0 : index
    %660 = vector.load %arg13[%c32_311, %c0_312] : memref<64x128xf32, #tpu.memory_space<vmem>>, vector<8x128xf32>
    %cst_313 = arith.constant dense<0.000000e+00> : vector<8x128xf32>
    %661 = tpu.matmul %658, %445, %cst_313 {dimension_numbers = #tpu.dot_dimension_numbers<[1], [0], [0], [1], [0, 0, 1, 1], [], []>} : vector<8x32xf32>, vector<32x128xf32>, vector<8x128xf32> -> vector<8x128xf32>
    %662 = arith.addf %660, %661 : vector<8x128xf32>
    %663 = vector.extract_strided_slice %662 {offsets = [0, 0], sizes = [8, 32], strides = [1, 1]} : vector<8x128xf32> to vector<8x32xf32>
    %664 = arith.negf %663 : vector<8x32xf32>
    %665 = math.exp %664 : vector<8x32xf32>
    %cst_314 = arith.constant 1.000000e+00 : f32
    %666 = vector.broadcast %cst_314 : f32 to vector<8x32xf32>
    %667 = arith.addf %666, %665 : vector<8x32xf32>
    %668 = arith.divf %666, %667 : vector<8x32xf32>
    %669 = vector.extract_strided_slice %662 {offsets = [0, 32], sizes = [8, 32], strides = [1, 1]} : vector<8x128xf32> to vector<8x32xf32>
    %670 = arith.negf %669 : vector<8x32xf32>
    %671 = math.exp %670 : vector<8x32xf32>
    %cst_315 = arith.constant 1.000000e+00 : f32
    %672 = vector.broadcast %cst_315 : f32 to vector<8x32xf32>
    %673 = arith.addf %672, %671 : vector<8x32xf32>
    %674 = arith.divf %672, %673 : vector<8x32xf32>
    %675 = vector.extract_strided_slice %662 {offsets = [0, 64], sizes = [8, 32], strides = [1, 1]} : vector<8x128xf32> to vector<8x32xf32>
    %676 = math.tanh %675 : vector<8x32xf32>
    %677 = vector.extract_strided_slice %662 {offsets = [0, 96], sizes = [8, 32], strides = [1, 1]} : vector<8x128xf32> to vector<8x32xf32>
    %678 = arith.negf %677 : vector<8x32xf32>
    %679 = math.exp %678 : vector<8x32xf32>
    %cst_316 = arith.constant 1.000000e+00 : f32
    %680 = vector.broadcast %cst_316 : f32 to vector<8x32xf32>
    %681 = arith.addf %680, %679 : vector<8x32xf32>
    %682 = arith.divf %680, %681 : vector<8x32xf32>
    %683 = arith.mulf %668, %676 : vector<8x32xf32>
    %684 = arith.mulf %674, %659 : vector<8x32xf32>
    %685 = arith.addf %683, %684 : vector<8x32xf32>
    %cst_317 = arith.constant -3.000000e+00 : f32
    %cst_318 = arith.constant 3.000000e+00 : f32
    %686 = vector.broadcast %cst_317 : f32 to vector<8x32xf32>
    %687 = arith.maximumf %686, %685 : vector<8x32xf32>
    %688 = vector.broadcast %cst_318 : f32 to vector<8x32xf32>
    %689 = arith.minimumf %688, %687 : vector<8x32xf32>
    %690 = math.tanh %689 : vector<8x32xf32>
    %691 = arith.mulf %682, %690 : vector<8x32xf32>
    %cst_319 = arith.constant dense<0.000000e+00> : vector<8x32xf32>
    %692 = tpu.matmul %691, %447, %cst_319 {dimension_numbers = #tpu.dot_dimension_numbers<[1], [0], [0], [1], [0, 0, 1, 1], [], []>} : vector<8x32xf32>, vector<32x32xf32>, vector<8x32xf32> -> vector<8x32xf32>
    %cst_320 = arith.constant -3.000000e+00 : f32
    %cst_321 = arith.constant 3.000000e+00 : f32
    %693 = vector.broadcast %cst_320 : f32 to vector<8x32xf32>
    %694 = arith.maximumf %693, %692 : vector<8x32xf32>
    %695 = vector.broadcast %cst_321 : f32 to vector<8x32xf32>
    %696 = arith.minimumf %695, %694 : vector<8x32xf32>
    %c4_322 = arith.constant 4 : index
    %697 = memref.load %arg1[%c4_322] : memref<8xi32, #tpu.memory_space<smem>>
    %698 = vector.broadcast %697 : i32 to vector<8x1xi32>
    %699 = arith.cmpi slt, %0, %698 : vector<8x1xi32>
    %700 = vector.shape_cast %699 : vector<8x1xi1> to vector<8x1xi1>
    %701 = vector.broadcast %700 : vector<8x1xi1> to vector<8x32xi1>
    %702 = arith.select %701, %696, %658 : vector<8x32xi1>, vector<8x32xf32>
    %703 = vector.shape_cast %699 : vector<8x1xi1> to vector<8x1xi1>
    %704 = vector.broadcast %703 : vector<8x1xi1> to vector<8x32xi1>
    %705 = arith.select %704, %689, %659 : vector<8x32xi1>, vector<8x32xf32>
    %c0_323 = arith.constant 0 : index
    %c0_324 = arith.constant 0 : index
    %706 = vector.load %arg14[%c0_323, %c0_324] : memref<8x32xf32, #tpu.memory_space<vmem>>, vector<8x32xf32>
    tpu.vector_store %arg14[%c0_323, %c0_324], %702 {strides = array<i32>} : memref<8x32xf32, #tpu.memory_space<vmem>>, vector<8x32xf32>,
    %c0_325 = arith.constant 0 : index
    %c0_326 = arith.constant 0 : index
    %707 = vector.load %arg15[%c0_325, %c0_326] : memref<8x32xf32, #tpu.memory_space<vmem>>, vector<8x32xf32>
    tpu.vector_store %arg15[%c0_325, %c0_326], %705 {strides = array<i32>} : memref<8x32xf32, #tpu.memory_space<vmem>>, vector<8x32xf32>,
    %c96 = arith.constant 96 : index
    %c0_327 = arith.constant 0 : index
    %708 = vector.load %arg10[%c96, %c0_327] : memref<128x32xf32, #tpu.memory_space<vmem>>, vector<8x32xf32>
    tpu.vector_store %arg10[%c96, %c0_327], %702 {strides = array<i32>} : memref<128x32xf32, #tpu.memory_space<vmem>>, vector<8x32xf32>,
    %c0_328 = arith.constant 0 : index
    %c0_329 = arith.constant 0 : index
    %709 = vector.load %arg14[%c0_328, %c0_329] : memref<8x32xf32, #tpu.memory_space<vmem>>, vector<8x32xf32>
    %c0_330 = arith.constant 0 : index
    %c0_331 = arith.constant 0 : index
    %710 = vector.load %arg15[%c0_330, %c0_331] : memref<8x32xf32, #tpu.memory_space<vmem>>, vector<8x32xf32>
    %c40_332 = arith.constant 40 : index
    %c0_333 = arith.constant 0 : index
    %711 = vector.load %arg13[%c40_332, %c0_333] : memref<64x128xf32, #tpu.memory_space<vmem>>, vector<8x128xf32>
    %cst_334 = arith.constant dense<0.000000e+00> : vector<8x128xf32>
    %712 = tpu.matmul %709, %445, %cst_334 {dimension_numbers = #tpu.dot_dimension_numbers<[1], [0], [0], [1], [0, 0, 1, 1], [], []>} : vector<8x32xf32>, vector<32x128xf32>, vector<8x128xf32> -> vector<8x128xf32>
    %713 = arith.addf %711, %712 : vector<8x128xf32>
    %714 = vector.extract_strided_slice %713 {offsets = [0, 0], sizes = [8, 32], strides = [1, 1]} : vector<8x128xf32> to vector<8x32xf32>
    %715 = arith.negf %714 : vector<8x32xf32>
    %716 = math.exp %715 : vector<8x32xf32>
    %cst_335 = arith.constant 1.000000e+00 : f32
    %717 = vector.broadcast %cst_335 : f32 to vector<8x32xf32>
    %718 = arith.addf %717, %716 : vector<8x32xf32>
    %719 = arith.divf %717, %718 : vector<8x32xf32>
    %720 = vector.extract_strided_slice %713 {offsets = [0, 32], sizes = [8, 32], strides = [1, 1]} : vector<8x128xf32> to vector<8x32xf32>
    %721 = arith.negf %720 : vector<8x32xf32>
    %722 = math.exp %721 : vector<8x32xf32>
    %cst_336 = arith.constant 1.000000e+00 : f32
    %723 = vector.broadcast %cst_336 : f32 to vector<8x32xf32>
    %724 = arith.addf %723, %722 : vector<8x32xf32>
    %725 = arith.divf %723, %724 : vector<8x32xf32>
    %726 = vector.extract_strided_slice %713 {offsets = [0, 64], sizes = [8, 32], strides = [1, 1]} : vector<8x128xf32> to vector<8x32xf32>
    %727 = math.tanh %726 : vector<8x32xf32>
    %728 = vector.extract_strided_slice %713 {offsets = [0, 96], sizes = [8, 32], strides = [1, 1]} : vector<8x128xf32> to vector<8x32xf32>
    %729 = arith.negf %728 : vector<8x32xf32>
    %730 = math.exp %729 : vector<8x32xf32>
    %cst_337 = arith.constant 1.000000e+00 : f32
    %731 = vector.broadcast %cst_337 : f32 to vector<8x32xf32>
    %732 = arith.addf %731, %730 : vector<8x32xf32>
    %733 = arith.divf %731, %732 : vector<8x32xf32>
    %734 = arith.mulf %719, %727 : vector<8x32xf32>
    %735 = arith.mulf %725, %710 : vector<8x32xf32>
    %736 = arith.addf %734, %735 : vector<8x32xf32>
    %cst_338 = arith.constant -3.000000e+00 : f32
    %cst_339 = arith.constant 3.000000e+00 : f32
    %737 = vector.broadcast %cst_338 : f32 to vector<8x32xf32>
    %738 = arith.maximumf %737, %736 : vector<8x32xf32>
    %739 = vector.broadcast %cst_339 : f32 to vector<8x32xf32>
    %740 = arith.minimumf %739, %738 : vector<8x32xf32>
    %741 = math.tanh %740 : vector<8x32xf32>
    %742 = arith.mulf %733, %741 : vector<8x32xf32>
    %cst_340 = arith.constant dense<0.000000e+00> : vector<8x32xf32>
    %743 = tpu.matmul %742, %447, %cst_340 {dimension_numbers = #tpu.dot_dimension_numbers<[1], [0], [0], [1], [0, 0, 1, 1], [], []>} : vector<8x32xf32>, vector<32x32xf32>, vector<8x32xf32> -> vector<8x32xf32>
    %cst_341 = arith.constant -3.000000e+00 : f32
    %cst_342 = arith.constant 3.000000e+00 : f32
    %744 = vector.broadcast %cst_341 : f32 to vector<8x32xf32>
    %745 = arith.maximumf %744, %743 : vector<8x32xf32>
    %746 = vector.broadcast %cst_342 : f32 to vector<8x32xf32>
    %747 = arith.minimumf %746, %745 : vector<8x32xf32>
    %c5_343 = arith.constant 5 : index
    %748 = memref.load %arg1[%c5_343] : memref<8xi32, #tpu.memory_space<smem>>
    %749 = vector.broadcast %748 : i32 to vector<8x1xi32>
    %750 = arith.cmpi slt, %0, %749 : vector<8x1xi32>
    %751 = vector.shape_cast %750 : vector<8x1xi1> to vector<8x1xi1>
    %752 = vector.broadcast %751 : vector<8x1xi1> to vector<8x32xi1>
    %753 = arith.select %752, %747, %709 : vector<8x32xi1>, vector<8x32xf32>
    %754 = vector.shape_cast %750 : vector<8x1xi1> to vector<8x1xi1>
    %755 = vector.broadcast %754 : vector<8x1xi1> to vector<8x32xi1>
    %756 = arith.select %755, %740, %710 : vector<8x32xi1>, vector<8x32xf32>
    %c0_344 = arith.constant 0 : index
    %c0_345 = arith.constant 0 : index
    %757 = vector.load %arg14[%c0_344, %c0_345] : memref<8x32xf32, #tpu.memory_space<vmem>>, vector<8x32xf32>
    tpu.vector_store %arg14[%c0_344, %c0_345], %753 {strides = array<i32>} : memref<8x32xf32, #tpu.memory_space<vmem>>, vector<8x32xf32>,
    %c0_346 = arith.constant 0 : index
    %c0_347 = arith.constant 0 : index
    %758 = vector.load %arg15[%c0_346, %c0_347] : memref<8x32xf32, #tpu.memory_space<vmem>>, vector<8x32xf32>
    tpu.vector_store %arg15[%c0_346, %c0_347], %756 {strides = array<i32>} : memref<8x32xf32, #tpu.memory_space<vmem>>, vector<8x32xf32>,
    %c104 = arith.constant 104 : index
    %c0_348 = arith.constant 0 : index
    %759 = vector.load %arg10[%c104, %c0_348] : memref<128x32xf32, #tpu.memory_space<vmem>>, vector<8x32xf32>
    tpu.vector_store %arg10[%c104, %c0_348], %753 {strides = array<i32>} : memref<128x32xf32, #tpu.memory_space<vmem>>, vector<8x32xf32>,
    %c0_349 = arith.constant 0 : index
    %c0_350 = arith.constant 0 : index
    %760 = vector.load %arg14[%c0_349, %c0_350] : memref<8x32xf32, #tpu.memory_space<vmem>>, vector<8x32xf32>
    %c0_351 = arith.constant 0 : index
    %c0_352 = arith.constant 0 : index
    %761 = vector.load %arg15[%c0_351, %c0_352] : memref<8x32xf32, #tpu.memory_space<vmem>>, vector<8x32xf32>
    %c48_353 = arith.constant 48 : index
    %c0_354 = arith.constant 0 : index
    %762 = vector.load %arg13[%c48_353, %c0_354] : memref<64x128xf32, #tpu.memory_space<vmem>>, vector<8x128xf32>
    %cst_355 = arith.constant dense<0.000000e+00> : vector<8x128xf32>
    %763 = tpu.matmul %760, %445, %cst_355 {dimension_numbers = #tpu.dot_dimension_numbers<[1], [0], [0], [1], [0, 0, 1, 1], [], []>} : vector<8x32xf32>, vector<32x128xf32>, vector<8x128xf32> -> vector<8x128xf32>
    %764 = arith.addf %762, %763 : vector<8x128xf32>
    %765 = vector.extract_strided_slice %764 {offsets = [0, 0], sizes = [8, 32], strides = [1, 1]} : vector<8x128xf32> to vector<8x32xf32>
    %766 = arith.negf %765 : vector<8x32xf32>
    %767 = math.exp %766 : vector<8x32xf32>
    %cst_356 = arith.constant 1.000000e+00 : f32
    %768 = vector.broadcast %cst_356 : f32 to vector<8x32xf32>
    %769 = arith.addf %768, %767 : vector<8x32xf32>
    %770 = arith.divf %768, %769 : vector<8x32xf32>
    %771 = vector.extract_strided_slice %764 {offsets = [0, 32], sizes = [8, 32], strides = [1, 1]} : vector<8x128xf32> to vector<8x32xf32>
    %772 = arith.negf %771 : vector<8x32xf32>
    %773 = math.exp %772 : vector<8x32xf32>
    %cst_357 = arith.constant 1.000000e+00 : f32
    %774 = vector.broadcast %cst_357 : f32 to vector<8x32xf32>
    %775 = arith.addf %774, %773 : vector<8x32xf32>
    %776 = arith.divf %774, %775 : vector<8x32xf32>
    %777 = vector.extract_strided_slice %764 {offsets = [0, 64], sizes = [8, 32], strides = [1, 1]} : vector<8x128xf32> to vector<8x32xf32>
    %778 = math.tanh %777 : vector<8x32xf32>
    %779 = vector.extract_strided_slice %764 {offsets = [0, 96], sizes = [8, 32], strides = [1, 1]} : vector<8x128xf32> to vector<8x32xf32>
    %780 = arith.negf %779 : vector<8x32xf32>
    %781 = math.exp %780 : vector<8x32xf32>
    %cst_358 = arith.constant 1.000000e+00 : f32
    %782 = vector.broadcast %cst_358 : f32 to vector<8x32xf32>
    %783 = arith.addf %782, %781 : vector<8x32xf32>
    %784 = arith.divf %782, %783 : vector<8x32xf32>
    %785 = arith.mulf %770, %778 : vector<8x32xf32>
    %786 = arith.mulf %776, %761 : vector<8x32xf32>
    %787 = arith.addf %785, %786 : vector<8x32xf32>
    %cst_359 = arith.constant -3.000000e+00 : f32
    %cst_360 = arith.constant 3.000000e+00 : f32
    %788 = vector.broadcast %cst_359 : f32 to vector<8x32xf32>
    %789 = arith.maximumf %788, %787 : vector<8x32xf32>
    %790 = vector.broadcast %cst_360 : f32 to vector<8x32xf32>
    %791 = arith.minimumf %790, %789 : vector<8x32xf32>
    %792 = math.tanh %791 : vector<8x32xf32>
    %793 = arith.mulf %784, %792 : vector<8x32xf32>
    %cst_361 = arith.constant dense<0.000000e+00> : vector<8x32xf32>
    %794 = tpu.matmul %793, %447, %cst_361 {dimension_numbers = #tpu.dot_dimension_numbers<[1], [0], [0], [1], [0, 0, 1, 1], [], []>} : vector<8x32xf32>, vector<32x32xf32>, vector<8x32xf32> -> vector<8x32xf32>
    %cst_362 = arith.constant -3.000000e+00 : f32
    %cst_363 = arith.constant 3.000000e+00 : f32
    %795 = vector.broadcast %cst_362 : f32 to vector<8x32xf32>
    %796 = arith.maximumf %795, %794 : vector<8x32xf32>
    %797 = vector.broadcast %cst_363 : f32 to vector<8x32xf32>
    %798 = arith.minimumf %797, %796 : vector<8x32xf32>
    %c6_364 = arith.constant 6 : index
    %799 = memref.load %arg1[%c6_364] : memref<8xi32, #tpu.memory_space<smem>>
    %800 = vector.broadcast %799 : i32 to vector<8x1xi32>
    %801 = arith.cmpi slt, %0, %800 : vector<8x1xi32>
    %802 = vector.shape_cast %801 : vector<8x1xi1> to vector<8x1xi1>
    %803 = vector.broadcast %802 : vector<8x1xi1> to vector<8x32xi1>
    %804 = arith.select %803, %798, %760 : vector<8x32xi1>, vector<8x32xf32>
    %805 = vector.shape_cast %801 : vector<8x1xi1> to vector<8x1xi1>
    %806 = vector.broadcast %805 : vector<8x1xi1> to vector<8x32xi1>
    %807 = arith.select %806, %791, %761 : vector<8x32xi1>, vector<8x32xf32>
    %c0_365 = arith.constant 0 : index
    %c0_366 = arith.constant 0 : index
    %808 = vector.load %arg14[%c0_365, %c0_366] : memref<8x32xf32, #tpu.memory_space<vmem>>, vector<8x32xf32>
    tpu.vector_store %arg14[%c0_365, %c0_366], %804 {strides = array<i32>} : memref<8x32xf32, #tpu.memory_space<vmem>>, vector<8x32xf32>,
    %c0_367 = arith.constant 0 : index
    %c0_368 = arith.constant 0 : index
    %809 = vector.load %arg15[%c0_367, %c0_368] : memref<8x32xf32, #tpu.memory_space<vmem>>, vector<8x32xf32>
    tpu.vector_store %arg15[%c0_367, %c0_368], %807 {strides = array<i32>} : memref<8x32xf32, #tpu.memory_space<vmem>>, vector<8x32xf32>,
    %c112 = arith.constant 112 : index
    %c0_369 = arith.constant 0 : index
    %810 = vector.load %arg10[%c112, %c0_369] : memref<128x32xf32, #tpu.memory_space<vmem>>, vector<8x32xf32>
    tpu.vector_store %arg10[%c112, %c0_369], %804 {strides = array<i32>} : memref<128x32xf32, #tpu.memory_space<vmem>>, vector<8x32xf32>,
    %c0_370 = arith.constant 0 : index
    %c0_371 = arith.constant 0 : index
    %811 = vector.load %arg14[%c0_370, %c0_371] : memref<8x32xf32, #tpu.memory_space<vmem>>, vector<8x32xf32>
    %c0_372 = arith.constant 0 : index
    %c0_373 = arith.constant 0 : index
    %812 = vector.load %arg15[%c0_372, %c0_373] : memref<8x32xf32, #tpu.memory_space<vmem>>, vector<8x32xf32>
    %c56_374 = arith.constant 56 : index
    %c0_375 = arith.constant 0 : index
    %813 = vector.load %arg13[%c56_374, %c0_375] : memref<64x128xf32, #tpu.memory_space<vmem>>, vector<8x128xf32>
    %cst_376 = arith.constant dense<0.000000e+00> : vector<8x128xf32>
    %814 = tpu.matmul %811, %445, %cst_376 {dimension_numbers = #tpu.dot_dimension_numbers<[1], [0], [0], [1], [0, 0, 1, 1], [], []>} : vector<8x32xf32>, vector<32x128xf32>, vector<8x128xf32> -> vector<8x128xf32>
    %815 = arith.addf %813, %814 : vector<8x128xf32>
    %816 = vector.extract_strided_slice %815 {offsets = [0, 0], sizes = [8, 32], strides = [1, 1]} : vector<8x128xf32> to vector<8x32xf32>
    %817 = arith.negf %816 : vector<8x32xf32>
    %818 = math.exp %817 : vector<8x32xf32>
    %cst_377 = arith.constant 1.000000e+00 : f32
    %819 = vector.broadcast %cst_377 : f32 to vector<8x32xf32>
    %820 = arith.addf %819, %818 : vector<8x32xf32>
    %821 = arith.divf %819, %820 : vector<8x32xf32>
    %822 = vector.extract_strided_slice %815 {offsets = [0, 32], sizes = [8, 32], strides = [1, 1]} : vector<8x128xf32> to vector<8x32xf32>
    %823 = arith.negf %822 : vector<8x32xf32>
    %824 = math.exp %823 : vector<8x32xf32>
    %cst_378 = arith.constant 1.000000e+00 : f32
    %825 = vector.broadcast %cst_378 : f32 to vector<8x32xf32>
    %826 = arith.addf %825, %824 : vector<8x32xf32>
    %827 = arith.divf %825, %826 : vector<8x32xf32>
    %828 = vector.extract_strided_slice %815 {offsets = [0, 64], sizes = [8, 32], strides = [1, 1]} : vector<8x128xf32> to vector<8x32xf32>
    %829 = math.tanh %828 : vector<8x32xf32>
    %830 = vector.extract_strided_slice %815 {offsets = [0, 96], sizes = [8, 32], strides = [1, 1]} : vector<8x128xf32> to vector<8x32xf32>
    %831 = arith.negf %830 : vector<8x32xf32>
    %832 = math.exp %831 : vector<8x32xf32>
    %cst_379 = arith.constant 1.000000e+00 : f32
    %833 = vector.broadcast %cst_379 : f32 to vector<8x32xf32>
    %834 = arith.addf %833, %832 : vector<8x32xf32>
    %835 = arith.divf %833, %834 : vector<8x32xf32>
    %836 = arith.mulf %821, %829 : vector<8x32xf32>
    %837 = arith.mulf %827, %812 : vector<8x32xf32>
    %838 = arith.addf %836, %837 : vector<8x32xf32>
    %cst_380 = arith.constant -3.000000e+00 : f32
    %cst_381 = arith.constant 3.000000e+00 : f32
    %839 = vector.broadcast %cst_380 : f32 to vector<8x32xf32>
    %840 = arith.maximumf %839, %838 : vector<8x32xf32>
    %841 = vector.broadcast %cst_381 : f32 to vector<8x32xf32>
    %842 = arith.minimumf %841, %840 : vector<8x32xf32>
    %843 = math.tanh %842 : vector<8x32xf32>
    %844 = arith.mulf %835, %843 : vector<8x32xf32>
    %cst_382 = arith.constant dense<0.000000e+00> : vector<8x32xf32>
    %845 = tpu.matmul %844, %447, %cst_382 {dimension_numbers = #tpu.dot_dimension_numbers<[1], [0], [0], [1], [0, 0, 1, 1], [], []>} : vector<8x32xf32>, vector<32x32xf32>, vector<8x32xf32> -> vector<8x32xf32>
    %cst_383 = arith.constant -3.000000e+00 : f32
    %cst_384 = arith.constant 3.000000e+00 : f32
    %846 = vector.broadcast %cst_383 : f32 to vector<8x32xf32>
    %847 = arith.maximumf %846, %845 : vector<8x32xf32>
    %848 = vector.broadcast %cst_384 : f32 to vector<8x32xf32>
    %849 = arith.minimumf %848, %847 : vector<8x32xf32>
    %c7_385 = arith.constant 7 : index
    %850 = memref.load %arg1[%c7_385] : memref<8xi32, #tpu.memory_space<smem>>
    %851 = vector.broadcast %850 : i32 to vector<8x1xi32>
    %852 = arith.cmpi slt, %0, %851 : vector<8x1xi32>
    %853 = vector.shape_cast %852 : vector<8x1xi1> to vector<8x1xi1>
    %854 = vector.broadcast %853 : vector<8x1xi1> to vector<8x32xi1>
    %855 = arith.select %854, %849, %811 : vector<8x32xi1>, vector<8x32xf32>
    %856 = vector.shape_cast %852 : vector<8x1xi1> to vector<8x1xi1>
    %857 = vector.broadcast %856 : vector<8x1xi1> to vector<8x32xi1>
    %858 = arith.select %857, %842, %812 : vector<8x32xi1>, vector<8x32xf32>
    %c0_386 = arith.constant 0 : index
    %c0_387 = arith.constant 0 : index
    %859 = vector.load %arg14[%c0_386, %c0_387] : memref<8x32xf32, #tpu.memory_space<vmem>>, vector<8x32xf32>
    tpu.vector_store %arg14[%c0_386, %c0_387], %855 {strides = array<i32>} : memref<8x32xf32, #tpu.memory_space<vmem>>, vector<8x32xf32>,
    %c0_388 = arith.constant 0 : index
    %c0_389 = arith.constant 0 : index
    %860 = vector.load %arg15[%c0_388, %c0_389] : memref<8x32xf32, #tpu.memory_space<vmem>>, vector<8x32xf32>
    tpu.vector_store %arg15[%c0_388, %c0_389], %858 {strides = array<i32>} : memref<8x32xf32, #tpu.memory_space<vmem>>, vector<8x32xf32>,
    %c120 = arith.constant 120 : index
    %c0_390 = arith.constant 0 : index
    %861 = vector.load %arg10[%c120, %c0_390] : memref<128x32xf32, #tpu.memory_space<vmem>>, vector<8x32xf32>
    tpu.vector_store %arg10[%c120, %c0_390], %855 {strides = array<i32>} : memref<128x32xf32, #tpu.memory_space<vmem>>, vector<8x32xf32>,
    %c0_391 = arith.constant 0 : index
    %c0_392 = arith.constant 0 : index
    %862 = vector.load %arg14[%c0_391, %c0_392] : memref<8x32xf32, #tpu.memory_space<vmem>>, vector<8x32xf32>
    %c1_393 = arith.constant 1 : index
    %c0_394 = arith.constant 0 : index
    %c0_395 = arith.constant 0 : index
    %863 = vector.load %arg11[%c1_393, %c0_394, %c0_395] : memref<2x8x32xf32, #tpu.memory_space<vmem>>, vector<1x8x32xf32>
    %864 = vector.shape_cast %863 : vector<1x8x32xf32> to vector<8x32xf32>
    %865 = vector.shape_cast %862 : vector<8x32xf32> to vector<1x8x32xf32>
    tpu.vector_store %arg11[%c1_393, %c0_394, %c0_395], %865 {strides = array<i32>} : memref<2x8x32xf32, #tpu.memory_space<vmem>>, vector<1x8x32xf32>,
    %c0_396 = arith.constant 0 : index
    %c0_397 = arith.constant 0 : index
    %866 = vector.load %arg15[%c0_396, %c0_397] : memref<8x32xf32, #tpu.memory_space<vmem>>, vector<8x32xf32>
    %c1_398 = arith.constant 1 : index
    %c0_399 = arith.constant 0 : index
    %c0_400 = arith.constant 0 : index
    %867 = vector.load %arg12[%c1_398, %c0_399, %c0_400] : memref<2x8x32xf32, #tpu.memory_space<vmem>>, vector<1x8x32xf32>
    %868 = vector.shape_cast %867 : vector<1x8x32xf32> to vector<8x32xf32>
    %869 = vector.shape_cast %866 : vector<8x32xf32> to vector<1x8x32xf32>
    tpu.vector_store %arg12[%c1_398, %c0_399, %c0_400], %869 {strides = array<i32>} : memref<2x8x32xf32, #tpu.memory_space<vmem>>, vector<1x8x32xf32>,
    return
  }
  func.func @transform_0(%arg0: i32, %arg1: memref<8xi32, #tpu.memory_space<smem>>) -> (i32, i32) {
    %c0_i32 = arith.constant 0 : i32
    %c0_i32_0 = arith.constant 0 : i32
    %c0_i32_1 = arith.constant 0 : i32
    return %c0_i32, %c0_i32_0 : i32, i32
  }
  func.func @transform_1(%arg0: i32, %arg1: memref<8xi32, #tpu.memory_space<smem>>) -> (i32, i32, i32) {
    %c0_i32 = arith.constant 0 : i32
    %c0_i32_0 = arith.constant 0 : i32
    %c0_i32_1 = arith.constant 0 : i32
    %c0_i32_2 = arith.constant 0 : i32
    return %c0_i32, %c0_i32_0, %c0_i32_1 : i32, i32, i32
  }
  func.func @transform_2(%arg0: i32, %arg1: memref<8xi32, #tpu.memory_space<smem>>) -> (i32, i32, i32) {
    %c0_i32 = arith.constant 0 : i32
    %c0_i32_0 = arith.constant 0 : i32
    %c0_i32_1 = arith.constant 0 : i32
    %c0_i32_2 = arith.constant 0 : i32
    return %c0_i32, %c0_i32_0, %c0_i32_1 : i32, i32, i32
  }
  func.func @transform_3(%arg0: i32, %arg1: memref<8xi32, #tpu.memory_space<smem>>) -> (i32, i32) {
    %c0_i32 = arith.constant 0 : i32
    %c0_i32_0 = arith.constant 0 : i32
    %c0_i32_1 = arith.constant 0 : i32
    return %c0_i32, %c0_i32_0 : i32, i32
  }
  func.func @transform_4(%arg0: i32, %arg1: memref<8xi32, #tpu.memory_space<smem>>) -> (i32, i32, i32) {
    %c0_i32 = arith.constant 0 : i32
    %c0_i32_0 = arith.constant 0 : i32
    %c0_i32_1 = arith.constant 0 : i32
    %c0_i32_2 = arith.constant 0 : i32
    return %c0_i32, %c0_i32_0, %c0_i32_1 : i32, i32, i32
  }
  func.func @transform_5(%arg0: i32, %arg1: memref<8xi32, #tpu.memory_space<smem>>) -> (i32, i32, i32) {
    %c0_i32 = arith.constant 0 : i32
    %c0_i32_0 = arith.constant 0 : i32
    %c0_i32_1 = arith.constant 0 : i32
    %c0_i32_2 = arith.constant 0 : i32
    return %c0_i32, %c0_i32_0, %c0_i32_1 : i32, i32, i32
  }
  func.func @transform_6(%arg0: i32, %arg1: memref<8xi32, #tpu.memory_space<smem>>) -> (i32, i32, i32) {
    %c0_i32 = arith.constant 0 : i32
    %c0_i32_0 = arith.constant 0 : i32
    %c0_i32_1 = arith.constant 0 : i32
    %c0_i32_2 = arith.constant 0 : i32
    return %c0_i32, %c0_i32_0, %c0_i32_1 : i32, i32, i32
  }
  func.func @transform_7(%arg0: i32, %arg1: memref<8xi32, #tpu.memory_space<smem>>) -> (i32, i32, i32) {
    %c0_i32 = arith.constant 0 : i32
    %c0_i32_0 = arith.constant 0 : i32
    %c0_i32_1 = arith.constant 0 : i32
    %c0_i32_2 = arith.constant 0 : i32
    return %c0_i32, %c0_i32_0, %c0_i32_1 : i32, i32, i32
  }
  func.func @transform_8(%arg0: i32, %arg1: memref<8xi32, #tpu.memory_space<smem>>) -> (i32, i32) {
    %c0_i32 = arith.constant 0 : i32
    %c0_i32_0 = arith.constant 0 : i32
    %c0_i32_1 = arith.constant 0 : i32
    return %c0_i32, %c0_i32_0 : i32, i32
  }
  func.func @transform_9(%arg0: i32, %arg1: memref<8xi32, #tpu.memory_space<smem>>) -> (i32, i32, i32) {
    %c0_i32 = arith.constant 0 : i32
    %c0_i32_0 = arith.constant 0 : i32
    %c0_i32_1 = arith.constant 0 : i32
    %c0_i32_2 = arith.constant 0 : i32
    return %c0_i32, %c0_i32_0, %c0_i32_1 : i32, i32, i32
  }
  func.func @transform_10(%arg0: i32, %arg1: memref<8xi32, #tpu.memory_space<smem>>) -> (i32, i32, i32) {
    %c0_i32 = arith.constant 0 : i32
    %c0_i32_0 = arith.constant 0 : i32
    %c0_i32_1 = arith.constant 0 : i32
    %c0_i32_2 = arith.constant 0 : i32
    return %c0_i32, %c0_i32_0, %c0_i32_1 : i32, i32, i32
  }
}

</mosaic_0001>

<llo_original>
// kernel: tpu_custom_call.1
$region0: #{tpu_custom_call.1}
  #allocation0 [shape = 'u32[]', space=smem, size = 0x4, offset = 0x4, fixed_abs, tag = 'smem constant byte address 0x4 - core index']
  #allocation1 [shape = 'u32[72,128]{1,0:T(1,128)}', space=vmem, size = 0x9000, scoped, tag = 'internal scratch']
  #allocation2 [shape = 'f32[64,128]{1,0:T(8,128)}', space=vmem, size = 0x8000, scoped, tag = 'scratch operand']
  #allocation3 [shape = 'f32[8,32]{1,0:T(8,128)}', space=vmem, size = 0x1000, scoped, tag = 'scratch operand']
  #allocation4 [shape = 'f32[8,32]{1,0:T(8,128)}', space=vmem, size = 0x1000, scoped, tag = 'scratch operand']
  #allocation5 [shape = 's32[1]{0}', space=sflag, size = 0x4, scoped, tag = 'scoped memory for tpu_custom_call.1']
  #allocation6 [shape = 'u8[512]{0}', space=smem, size = 0x200, scoped, tag = 'prefetched SMEM operand 0']
  %s0 = inlined_call_operand.vmem [shape: s32[8], index: 0, kind: input, shape index: {}]
  %s1 = inlined_call_operand.vmem [shape: f32[64,16], index: 1, kind: input, shape index: {}]
  %s2 = inlined_call_operand.vmem [shape: f32[2,8,32], index: 2, kind: input, shape index: {}]
  %s3 = inlined_call_operand.hbm [shape: f32[2,8,32], index: 3, kind: input, shape index: {}]
  %s4 = inlined_call_operand.hbm [shape: f32[16,128], index: 4, kind: input, shape index: {}]
  %s5 = inlined_call_operand.vmem [shape: f32[2,32,128], index: 5, kind: input, shape index: {}]
  %s6 = inlined_call_operand.hbm [shape: f32[2,32,128], index: 6, kind: input, shape index: {}]
  %s7 = inlined_call_operand.vmem [shape: f32[2,1,128], index: 7, kind: input, shape index: {}]
  %s8 = inlined_call_operand.hbm [shape: f32[2,32,32], index: 8, kind: input, shape index: {}]
  %s9 = inlined_call_operand.vmem [shape: f32[128,32], index: 9, kind: output, shape index: {0}]
  %s10 = inlined_call_operand.hbm [shape: f32[2,8,32], index: 10, kind: output, shape index: {1}]
  %s11 = inlined_call_operand.hbm [shape: f32[2,8,32], index: 11, kind: output, shape index: {2}]
  %12 = xla_tuple %s9, %s10, %s11
  %s13 = sld [smem:[#allocation0]]
  $region74: #{tpu_custom_call.1} parent=0
    _
  %s15 = ssub.s32 1, %s13
  %s16 = scalar_select 0, %s15, %s13
  %s18 = sshll.u32 %s0, 4
  %s19 = int_to_ptr.vmem [resolvable:$true] %s18
  %21 = dma.vmem_to_smem %s19, 16, [#allocation6], [#allocation5]
  %23 = dma.done [#allocation5], 16
  %24 = sfence
  $region1: #{tpu_custom_call.1} parent=0
    #allocation7 [shape = 'u8[8192]{0}', space=vmem, size = 0x2000, scoped, tag = 'input window, operand 3, single buffered']
    #allocation8 [shape = 's32[1]{0}', space=sflag, size = 0x4, scoped, tag = 'scoped memory for tpu_custom_call.1']
    #allocation9 [shape = 's32[1]{0}', space=sflag, size = 0x4, scoped, tag = 'scoped memory for tpu_custom_call.1']
    #allocation10 [shape = 'u8[8192]{0}', space=vmem, size = 0x2000, scoped, tag = 'input window, operand 4, single buffered']
    #allocation11 [shape = 's32[1]{0}', space=sflag, size = 0x4, scoped, tag = 'scoped memory for tpu_custom_call.1']
    #allocation12 [shape = 'u8[32768]{0}', space=vmem, size = 0x8000, scoped, tag = 'input window, operand 6, single buffered']
    #allocation13 [shape = 'u8[32768]{0}', space=vmem, size = 0x8000, scoped, tag = 'input window, operand 8, single buffered']
    #allocation14 [shape = 's32[1]{0}', space=sflag, size = 0x4, scoped, tag = 'scoped memory for tpu_custom_call.1']
    #allocation15 [shape = 'u8[8192]{0}', space=vmem, size = 0x2000, scoped, tag = 'output window, operand 1, single buffered']
    #allocation16 [shape = 'u8[8192]{0}', space=vmem, size = 0x2000, scoped, tag = 'output window, operand 2, single buffered']
    #allocation17 [shape = 's32[1]{0}', space=sflag, size = 0x4, scoped, tag = 'scoped memory for tpu_custom_call.1']
    %25 = vsyncpa [#allocation8], 0
    %26 = vsyncpa [#allocation11], 0
    %27 = vsyncpa [#allocation14], 0
    %28 = vsyncpa [#allocation9], 0
    %29 = vsyncpa [#allocation17], 0
    // Predicated region
    $region2: #{tpu_custom_call.1} parent=1 // pred_check
      _
    $region3: #{tpu_custom_call.1} parent=1 // pred_check_branch
      %31 = sbr.rel (0) target = $region5
    $region4: #{tpu_custom_call.1} parent=1 // pred_region
      _
    $region5: #{tpu_custom_call.1} parent=1 // pred_fallthru
      _
    // Predicated region
    $region6: #{tpu_custom_call.1} parent=1 // pred_check
      _
    $region7: #{tpu_custom_call.1} parent=1 // pred_check_branch
      %33 = sbr.rel (0) target = $region9
    $region8: #{tpu_custom_call.1} parent=1 // pred_region
      _
    $region9: #{tpu_custom_call.1} parent=1 // pred_fallthru
      _
    // Predicated region
    $region10: #{tpu_custom_call.1} parent=1 // pred_check
      _
    $region11: #{tpu_custom_call.1} parent=1 // pred_check_branch
      %35 = sbr.rel (0) target = $region13
    $region12: #{tpu_custom_call.1} parent=1 // pred_region
      %37 = vsyncadd [#allocation8], 0
      %s38 = sshll.u32 %s3, 4
      %s39 = int_to_ptr.hbm [resolvable:$true] %s38
      %s40 = sshll.u32 [#allocation7], 4
      %s41 = int_to_ptr.vmem [resolvable:$true] %s40
      %46 = dma.hbm_to_vmem [thread:$0]  %s39, 256, %s41, [#allocation8], 128, 128, 8
    $region13: #{tpu_custom_call.1} parent=1 // pred_fallthru
      _
    // Predicated region
    $region14: #{tpu_custom_call.1} parent=1 // pred_check
      _
    $region15: #{tpu_custom_call.1} parent=1 // pred_check_branch
      %48 = sbr.rel (0) target = $region17
    $region16: #{tpu_custom_call.1} parent=1 // pred_region
      %50 = vsyncadd [#allocation11], 0
      %s51 = sshll.u32 %s4, 4
      %s52 = int_to_ptr.hbm [resolvable:$true] %s51
      %s53 = sshll.u32 [#allocation10], 4
      %s54 = int_to_ptr.vmem [resolvable:$true] %s53
      %59 = dma.hbm_to_vmem [thread:$0]  %s52, 256, %s54, [#allocation11], 128, 128, 8
    $region17: #{tpu_custom_call.1} parent=1 // pred_fallthru
      _
    // Predicated region
    $region18: #{tpu_custom_call.1} parent=1 // pred_check
      _
    $region19: #{tpu_custom_call.1} parent=1 // pred_check_branch
      %61 = sbr.rel (0) target = $region21
    $region20: #{tpu_custom_call.1} parent=1 // pred_region
      _
    $region21: #{tpu_custom_call.1} parent=1 // pred_fallthru
      _
    // Predicated region
    $region22: #{tpu_custom_call.1} parent=1 // pred_check
      _
    $region23: #{tpu_custom_call.1} parent=1 // pred_check_branch
      %63 = sbr.rel (0) target = $region25
    $region24: #{tpu_custom_call.1} parent=1 // pred_region
      %65 = vsyncadd [#allocation11], 0
      %s66 = sshll.u32 %s6, 4
      %s67 = int_to_ptr.hbm [resolvable:$true] %s66
      %s68 = sshll.u32 [#allocation12], 4
      %s69 = int_to_ptr.vmem [resolvable:$true] %s68
      %74 = dma.hbm_to_vmem [thread:$0]  %s67, 1024, %s69, [#allocation11], 128, 128, 8
    $region25: #{tpu_custom_call.1} parent=1 // pred_fallthru
      _
    // Predicated region
    $region26: #{tpu_custom_call.1} parent=1 // pred_check
      _
    $region27: #{tpu_custom_call.1} parent=1 // pred_check_branch
      %76 = sbr.rel (0) target = $region29
    $region28: #{tpu_custom_call.1} parent=1 // pred_region
      _
    $region29: #{tpu_custom_call.1} parent=1 // pred_fallthru
      _
    // Predicated region
    $region30: #{tpu_custom_call.1} parent=1 // pred_check
      _
    $region31: #{tpu_custom_call.1} parent=1 // pred_check_branch
      %78 = sbr.rel (0) target = $region33
    $region32: #{tpu_custom_call.1} parent=1 // pred_region
      %80 = vsyncadd [#allocation14], 0
      %s81 = sshll.u32 %s8, 4
      %s82 = int_to_ptr.hbm [resolvable:$true] %s81
      %s83 = sshll.u32 [#allocation13], 4
      %s84 = int_to_ptr.vmem [resolvable:$true] %s83
      %89 = dma.hbm_to_vmem [thread:$0]  %s82, 1024, %s84, [#allocation14], 128, 128, 8
    $region33: #{tpu_custom_call.1} parent=1 // pred_fallthru
      _
    // Predicated region
    $region34: #{tpu_custom_call.1} parent=1 // pred_check
      _
    $region35: #{tpu_custom_call.1} parent=1 // pred_check_branch
      %91 = sbr.rel (0) target = $region37
    $region36: #{tpu_custom_call.1} parent=1 // pred_region
      %93 = dma.done [#allocation8], 256
    $region37: #{tpu_custom_call.1} parent=1 // pred_fallthru
      _
    // Predicated region
    $region38: #{tpu_custom_call.1} parent=1 // pred_check
      _
    $region39: #{tpu_custom_call.1} parent=1 // pred_check_branch
      %95 = sbr.rel (0) target = $region41
    $region40: #{tpu_custom_call.1} parent=1 // pred_region
      %97 = dma.done [#allocation11], 256
    $region41: #{tpu_custom_call.1} parent=1 // pred_fallthru
      _
    // Predicated region
    $region42: #{tpu_custom_call.1} parent=1 // pred_check
      _
    $region43: #{tpu_custom_call.1} parent=1 // pred_check_branch
      %99 = sbr.rel (0) target = $region45
    $region44: #{tpu_custom_call.1} parent=1 // pred_region
      %101 = dma.done [#allocation11], 1024
    $region45: #{tpu_custom_call.1} parent=1 // pred_fallthru
      _
    // Predicated region
    $region46: #{tpu_custom_call.1} parent=1 // pred_check
      _
    $region47: #{tpu_custom_call.1} parent=1 // pred_check_branch
      %103 = sbr.rel (0) target = $region49
    $region48: #{tpu_custom_call.1} parent=1 // pred_region
      %105 = dma.done [#allocation14], 1024
    $region49: #{tpu_custom_call.1} parent=1 // pred_fallthru
      _
    %v106 = vlaneseq
    %v107 = vshrl.u32 %v106, 7
    %v108 = vld [vmem:[%s1] sm:$0xff]
    %v109 = vld [vmem:[%s1 + $0x8] sm:$0xff]
    %v110 = vld [vmem:[%s1 + $0x10] sm:$0xff]
    %v111 = vld [vmem:[%s1 + $0x18] sm:$0xff]
    %v112 = vld [vmem:[%s1 + $0x20] sm:$0xff]
    %v113 = vld [vmem:[%s1 + $0x28] sm:$0xff]
    %v114 = vld [vmem:[%s1 + $0x30] sm:$0xff]
    %v115 = vld [vmem:[%s1 + $0x38] sm:$0xff]
    %v116 = vld [vmem:[#allocation10] sm:$0xff]
    %v117 = vld [vmem:[#allocation10 + $0x8] sm:$0xff]
    %v118 = vld [vmem:[%s7] sm:$0x1]
    %v120 = vperm.slane %v118, 0
    %vm122 = vcmask 130048
    %v124 = vsel %vm122, %v108, 0
    %v127 = vsel %vm122, %v109, 0
    %v130 = vsel %vm122, %v110, 0
    %v133 = vsel %vm122, %v111, 0
    %v136 = vsel %vm122, %v112, 0
    %v139 = vsel %vm122, %v113, 0
    %v142 = vsel %vm122, %v114, 0
    %v145 = vsel %vm122, %v115, 0
    %147 = vmatpush.msra.mxu0 0.0
    %148 = vmatpush.msra.mxu0 0.0
    %149 = vmatpush.msra.mxu0 0.0
    %150 = vmatpush.msra.mxu0 0.0
    %151 = vmatpush.msra.mxu0 0.0
    %152 = vmatpush.msra.mxu0 0.0
    %153 = vmatpush.msra.mxu0 0.0
    %154 = vmatpush.msra.mxu0 0.0
    %155 = vmatpush.msra.mxu0 0.0
    %156 = vmatpush.msra.mxu0 0.0
    %157 = vmatpush.msra.mxu0 0.0
    %158 = vmatpush.msra.mxu0 0.0
    %159 = vmatpush.msra.mxu0 0.0
    %160 = vmatpush.msra.mxu0 0.0
    %161 = vmatpush.msra.mxu0 %v117
    %162 = vmatpush.msra.mxu0 %v116
    %163 = vmatmul.f32.gmra.mxu0 %v124
    %v164 = vpop.f32.mrf.mxu0
    %v165 = vadd.f32 %v120, %v164
    %166 = vmatmul.f32.gmra.mxu0 %v127
    %v167 = vpop.f32.mrf.mxu0
    %v168 = vadd.f32 %v120, %v167
    %169 = vmatmul.f32.gmra.mxu0 %v130
    %v170 = vpop.f32.mrf.mxu0
    %v171 = vadd.f32 %v120, %v170
    %172 = vmatmul.f32.gmra.mxu0 %v133
    %v173 = vpop.f32.mrf.mxu0
    %v174 = vadd.f32 %v120, %v173
    %175 = vmatmul.f32.gmra.mxu0 %v136
    %v176 = vpop.f32.mrf.mxu0
    %v177 = vadd.f32 %v120, %v176
    %178 = vmatmul.f32.gmra.mxu0 %v139
    %v179 = vpop.f32.mrf.mxu0
    %v180 = vadd.f32 %v120, %v179
    %181 = vmatmul.f32.gmra.mxu0 %v142
    %v182 = vpop.f32.mrf.mxu0
    %v183 = vadd.f32 %v120, %v182
    %184 = vmatmul.f32.gmra.mxu0 %v145
    %v185 = vpop.f32.mrf.mxu0
    %v186 = vadd.f32 %v120, %v185
    %187 = vdwg.mxu0
    %188 = vst [vmem:[#allocation2] sm:$0xff] %v165
    %189 = vst [vmem:[#allocation2 + $0x8] sm:$0xff] %v168
    %190 = vst [vmem:[#allocation2 + $0x10] sm:$0xff] %v171
    %191 = vst [vmem:[#allocation2 + $0x18] sm:$0xff] %v174
    %192 = vst [vmem:[#allocation2 + $0x20] sm:$0xff] %v177
    %193 = vst [vmem:[#allocation2 + $0x28] sm:$0xff] %v180
    %194 = vst [vmem:[#allocation2 + $0x30] sm:$0xff] %v183
    %195 = vst [vmem:[#allocation2 + $0x38] sm:$0xff] %v186
    %v196 = vld [vmem:[#allocation12] sm:$0xff]
    %v197 = vld [vmem:[#allocation12 + $0x8] sm:$0xff]
    %v198 = vld [vmem:[#allocation12 + $0x10] sm:$0xff]
    %v199 = vld [vmem:[#allocation12 + $0x18] sm:$0xff]
    %v200 = vld [vmem:[#allocation13] sm:$0xff]
    %v201 = vld [vmem:[#allocation13 + $0x8] sm:$0xff]
    %v202 = vld [vmem:[#allocation13 + $0x10] sm:$0xff]
    %v203 = vld [vmem:[#allocation13 + $0x18] sm:$0xff]
    %v204 = vld [vmem:[%s2] sm:$0xff]
    %vm205 = vcmask 261120
    %206 = vst.msk [vmem:[#allocation3] sm:$0xff] %vm205, %v204
    %v207 = vld [vmem:[#allocation7] sm:$0xff]
    %208 = vst.msk [vmem:[#allocation4] sm:$0xff] %vm205, %v207
    %v209 = vld [vmem:[#allocation3] sm:$0xff]
    %v210 = vld [vmem:[#allocation4] sm:$0xff]
    %v211 = vld [vmem:[#allocation2] sm:$0xff]
    %v213 = vsel %vm205, %v209, 0
    %215 = vmatpush.msra.mxu0 0.0
    %216 = vmatpush.msra.mxu0 0.0
    %217 = vmatpush.msra.mxu0 0.0
    %218 = vmatpush.msra.mxu0 0.0
    %219 = vmatpush.msra.mxu0 0.0
    %220 = vmatpush.msra.mxu0 0.0
    %221 = vmatpush.msra.mxu0 0.0
    %222 = vmatpush.msra.mxu0 0.0
    %223 = vmatpush.msra.mxu0 0.0
    %224 = vmatpush.msra.mxu0 0.0
    %225 = vmatpush.msra.mxu0 0.0
    %226 = vmatpush.msra.mxu0 0.0
    %227 = vmatpush.msra.mxu0 %v199
    %228 = vmatpush.msra.mxu0 %v198
    %229 = vmatpush.msra.mxu0 %v197
    %230 = vmatpush.msra.mxu0 %v196
    %231 = vmatmul.f32.gmra.mxu0 %v213
    %v232 = vpop.f32.mrf.mxu0
    %v233 = vadd.f32 0.0, %v232
    %234 = vdwg.mxu0
    %v235 = vadd.f32 %v211, %v233
    %v236 = vxor.u32 %v235, 2147483648
    %v237 = vmul.f32 %v236, 1.442695
    %v238 = vpow.pop %v237
    %v239 = vadd.f32 %v238, 1.0
    %v240 = vrcp.pop %v239
    %v241 = vmul.f32 %v239, %v240
    %v242 = vsub.f32 1.0, %v241
    %v243 = vmul.f32 %v240, %v242
    %v244 = vadd.f32 %v240, %v243
    %vm245 = vweird.f32 %v239
    %vm246 = vweird.f32 %v240
    %vm247 = vmor %vm245, %vm246
    %v248 = vsel %vm247, %v240, %v244
    %v249 = vand.u32 2147483647, %v239
    %vm250 = vcmp.eq.f32.partialorder %v249, 8.507059e+37
    %v251 = vand.u32 %v239, 2147483648
    %v252 = vor.u32 1.1754944e-38, %v251
    %v253 = vsel %vm250, %v252, %v248
    %v254 = vmul.f32 1.0, %v253
    %v255 = vtanh.pop %v235
    %257 = vrot.lane.b32.xlu0 %v255, 64
    %v258 = vpop.permute.xlu0 %257
    %v260 = vmul.f32 %v254, %v258
    %262 = vrot.lane.b32.xlu0 %v210, 32
    %v263 = vpop.permute.xlu0 %262
    %v265 = vmul.f32 %v254, %v263
    %267 = vrot.lane.b32.xlu0 %v265, 96
    %v268 = vpop.permute.xlu0 %267
    %v270 = vadd.f32 %v260, %v268
    %v271 = vmax.f32 %v270, -3.0
    %v272 = vmin.f32 %v271, 3.0
    %v273 = vtanh.pop %v272
    %275 = vrot.lane.b32.xlu0 %v273, 96
    %v276 = vpop.permute.xlu0 %275
    %v278 = vmul.f32 %v254, %v276
    %280 = vrot.lane.b32.xlu0 %v278, 32
    %v281 = vpop.permute.xlu0 %280
    %v282 = vsel %vm205, %v281, 0
    %284 = vmatpush.msra.mxu0 0.0
    %285 = vmatpush.msra.mxu0 0.0
    %286 = vmatpush.msra.mxu0 0.0
    %287 = vmatpush.msra.mxu0 0.0
    %288 = vmatpush.msra.mxu0 0.0
    %289 = vmatpush.msra.mxu0 0.0
    %290 = vmatpush.msra.mxu0 0.0
    %291 = vmatpush.msra.mxu0 0.0
    %292 = vmatpush.msra.mxu0 0.0
    %293 = vmatpush.msra.mxu0 0.0
    %294 = vmatpush.msra.mxu0 0.0
    %295 = vmatpush.msra.mxu0 0.0
    %296 = vmatpush.msra.mxu0 %v203
    %297 = vmatpush.msra.mxu0 %v202
    %298 = vmatpush.msra.mxu0 %v201
    %299 = vmatpush.msra.mxu0 %v200
    %300 = vmatmul.f32.gmra.mxu0 %v282
    %v301 = vpop.f32.mrf.mxu0
    %v302 = vadd.f32 0.0, %v301
    %303 = vdwg.mxu0
    %v304 = vmax.f32 %v302, -3.0
    %v305 = vmin.f32 %v304, 3.0
    %s306 = sld [smem:[#allocation6]]
    %v307 = vstv %s306
    %vm308 = vcmp.lt.s32.totalorder %v107, %v307
    %v309 = vsel %vm308, 1, 0
    %vm310 = vcmp.eq.s32.totalorder %v309, 1
    %v311 = vsel %vm310, %v305, %v209
    %v312 = vsel %vm310, %v272, %v210
    %313 = vst.msk [vmem:[#allocation3] sm:$0xff] %vm205, %v311
    %314 = vst.msk [vmem:[#allocation4] sm:$0xff] %vm205, %v312
    %315 = vst.msk [vmem:[%s9] sm:$0xff] %vm205, %v311
    %v316 = vld [vmem:[#allocation3] sm:$0xff]
    %v317 = vld [vmem:[#allocation4] sm:$0xff]
    %v318 = vld [vmem:[#allocation2 + $0x8] sm:$0xff]
    %v320 = vsel %vm205, %v316, 0
    %322 = vmatpush.msra.mxu0 0.0
    %323 = vmatpush.msra.mxu0 0.0
    %324 = vmatpush.msra.mxu0 0.0
    %325 = vmatpush.msra.mxu0 0.0
    %326 = vmatpush.msra.mxu0 0.0
    %327 = vmatpush.msra.mxu0 0.0
    %328 = vmatpush.msra.mxu0 0.0
    %329 = vmatpush.msra.mxu0 0.0
    %330 = vmatpush.msra.mxu0 0.0
    %331 = vmatpush.msra.mxu0 0.0
    %332 = vmatpush.msra.mxu0 0.0
    %333 = vmatpush.msra.mxu0 0.0
    %334 = vmatpush.msra.mxu0 %v199
    %335 = vmatpush.msra.mxu0 %v198
    %336 = vmatpush.msra.mxu0 %v197
    %337 = vmatpush.msra.mxu0 %v196
    %338 = vmatmul.f32.gmra.mxu0 %v320
    %v339 = vpop.f32.mrf.mxu0
    %v340 = vadd.f32 0.0, %v339
    %341 = vdwg.mxu0
    %v342 = vadd.f32 %v318, %v340
    %v343 = vxor.u32 %v342, 2147483648
    %v344 = vmul.f32 %v343, 1.442695
    %v345 = vpow.pop %v344
    %v346 = vadd.f32 %v345, 1.0
    %v347 = vrcp.pop %v346
    %v348 = vmul.f32 %v346, %v347
    %v349 = vsub.f32 1.0, %v348
    %v350 = vmul.f32 %v347, %v349
    %v351 = vadd.f32 %v347, %v350
    %vm352 = vweird.f32 %v346
    %vm353 = vweird.f32 %v347
    %vm354 = vmor %vm352, %vm353
    %v355 = vsel %vm354, %v347, %v351
    %v356 = vand.u32 2147483647, %v346
    %vm357 = vcmp.eq.f32.partialorder %v356, 8.507059e+37
    %v358 = vand.u32 %v346, 2147483648
    %v359 = vor.u32 1.1754944e-38, %v358
    %v360 = vsel %vm357, %v359, %v355
    %v361 = vmul.f32 1.0, %v360
    %v362 = vtanh.pop %v342
    %364 = vrot.lane.b32.xlu0 %v362, 64
    %v365 = vpop.permute.xlu0 %364
    %v367 = vmul.f32 %v361, %v365
    %369 = vrot.lane.b32.xlu0 %v317, 32
    %v370 = vpop.permute.xlu0 %369
    %v372 = vmul.f32 %v361, %v370
    %374 = vrot.lane.b32.xlu0 %v372, 96
    %v375 = vpop.permute.xlu0 %374
    %v377 = vadd.f32 %v367, %v375
    %v378 = vmax.f32 %v377, -3.0
    %v379 = vmin.f32 %v378, 3.0
    %v380 = vtanh.pop %v379
    %382 = vrot.lane.b32.xlu0 %v380, 96
    %v383 = vpop.permute.xlu0 %382
    %v385 = vmul.f32 %v361, %v383
    %387 = vrot.lane.b32.xlu0 %v385, 32
    %v388 = vpop.permute.xlu0 %387
    %v389 = vsel %vm205, %v388, 0
    %391 = vmatpush.msra.mxu0 0.0
    %392 = vmatpush.msra.mxu0 0.0
    %393 = vmatpush.msra.mxu0 0.0
    %394 = vmatpush.msra.mxu0 0.0
    %395 = vmatpush.msra.mxu0 0.0
    %396 = vmatpush.msra.mxu0 0.0
    %397 = vmatpush.msra.mxu0 0.0
    %398 = vmatpush.msra.mxu0 0.0
    %399 = vmatpush.msra.mxu0 0.0
    %400 = vmatpush.msra.mxu0 0.0
    %401 = vmatpush.msra.mxu0 0.0
    %402 = vmatpush.msra.mxu0 0.0
    %403 = vmatpush.msra.mxu0 %v203
    %404 = vmatpush.msra.mxu0 %v202
    %405 = vmatpush.msra.mxu0 %v201
    %406 = vmatpush.msra.mxu0 %v200
    %407 = vmatmul.f32.gmra.mxu0 %v389
    %v408 = vpop.f32.mrf.mxu0
    %v409 = vadd.f32 0.0, %v408
    %410 = vdwg.mxu0
    %v411 = vmax.f32 %v409, -3.0
    %v412 = vmin.f32 %v411, 3.0
    %s413 = sld [smem:[#allocation6 + $0x1]]
    %v414 = vstv %s413
    %vm415 = vcmp.lt.s32.totalorder %v107, %v414
    %v416 = vsel %vm415, 1, 0
    %vm417 = vcmp.eq.s32.totalorder %v416, 1
    %v418 = vsel %vm417, %v412, %v316
    %v419 = vsel %vm417, %v379, %v317
    %420 = vst.msk [vmem:[#allocation3] sm:$0xff] %vm205, %v418
    %421 = vst.msk [vmem:[#allocation4] sm:$0xff] %vm205, %v419
    %422 = vst.msk [vmem:[%s9 + $0x8] sm:$0xff] %vm205, %v418
    %v423 = vld [vmem:[#allocation3] sm:$0xff]
    %v424 = vld [vmem:[#allocation4] sm:$0xff]
    %v425 = vld [vmem:[#allocation2 + $0x10] sm:$0xff]
    %v427 = vsel %vm205, %v423, 0
    %429 = vmatpush.msra.mxu0 0.0
    %430 = vmatpush.msra.mxu0 0.0
    %431 = vmatpush.msra.mxu0 0.0
    %432 = vmatpush.msra.mxu0 0.0
    %433 = vmatpush.msra.mxu0 0.0
    %434 = vmatpush.msra.mxu0 0.0
    %435 = vmatpush.msra.mxu0 0.0
    %436 = vmatpush.msra.mxu0 0.0
    %437 = vmatpush.msra.mxu0 0.0
    %438 = vmatpush.msra.mxu0 0.0
    %439 = vmatpush.msra.mxu0 0.0
    %440 = vmatpush.msra.mxu0 0.0
    %441 = vmatpush.msra.mxu0 %v199
    %442 = vmatpush.msra.mxu0 %v198
    %443 = vmatpush.msra.mxu0 %v197
    %444 = vmatpush.msra.mxu0 %v196
    %445 = vmatmul.f32.gmra.mxu0 %v427
    %v446 = vpop.f32.mrf.mxu0
    %v447 = vadd.f32 0.0, %v446
    %448 = vdwg.mxu0
    %v449 = vadd.f32 %v425, %v447
    %v450 = vxor.u32 %v449, 2147483648
    %v451 = vmul.f32 %v450, 1.442695
    %v452 = vpow.pop %v451
    %v453 = vadd.f32 %v452, 1.0
    %v454 = vrcp.pop %v453
    %v455 = vmul.f32 %v453, %v454
    %v456 = vsub.f32 1.0, %v455
    %v457 = vmul.f32 %v454, %v456
    %v458 = vadd.f32 %v454, %v457
    %vm459 = vweird.f32 %v453
    %vm460 = vweird.f32 %v454
    %vm461 = vmor %vm459, %vm460
    %v462 = vsel %vm461, %v454, %v458
    %v463 = vand.u32 2147483647, %v453
    %vm464 = vcmp.eq.f32.partialorder %v463, 8.507059e+37
    %v465 = vand.u32 %v453, 2147483648
    %v466 = vor.u32 1.1754944e-38, %v465
    %v467 = vsel %vm464, %v466, %v462
    %v468 = vmul.f32 1.0, %v467
    %v469 = vtanh.pop %v449
    %471 = vrot.lane.b32.xlu0 %v469, 64
    %v472 = vpop.permute.xlu0 %471
    %v474 = vmul.f32 %v468, %v472
    %476 = vrot.lane.b32.xlu0 %v424, 32
    %v477 = vpop.permute.xlu0 %476
    %v479 = vmul.f32 %v468, %v477
    %481 = vrot.lane.b32.xlu0 %v479, 96
    %v482 = vpop.permute.xlu0 %481
    %v484 = vadd.f32 %v474, %v482
    %v485 = vmax.f32 %v484, -3.0
    %v486 = vmin.f32 %v485, 3.0
    %v487 = vtanh.pop %v486
    %489 = vrot.lane.b32.xlu0 %v487, 96
    %v490 = vpop.permute.xlu0 %489
    %v492 = vmul.f32 %v468, %v490
    %494 = vrot.lane.b32.xlu0 %v492, 32
    %v495 = vpop.permute.xlu0 %494
    %v496 = vsel %vm205, %v495, 0
    %498 = vmatpush.msra.mxu0 0.0
    %499 = vmatpush.msra.mxu0 0.0
    %500 = vmatpush.msra.mxu0 0.0
    %501 = vmatpush.msra.mxu0 0.0
    %502 = vmatpush.msra.mxu0 0.0
    %503 = vmatpush.msra.mxu0 0.0
    %504 = vmatpush.msra.mxu0 0.0
    %505 = vmatpush.msra.mxu0 0.0
    %506 = vmatpush.msra.mxu0 0.0
    %507 = vmatpush.msra.mxu0 0.0
    %508 = vmatpush.msra.mxu0 0.0
    %509 = vmatpush.msra.mxu0 0.0
    %510 = vmatpush.msra.mxu0 %v203
    %511 = vmatpush.msra.mxu0 %v202
    %512 = vmatpush.msra.mxu0 %v201
    %513 = vmatpush.msra.mxu0 %v200
    %514 = vmatmul.f32.gmra.mxu0 %v496
    %v515 = vpop.f32.mrf.mxu0
    %v516 = vadd.f32 0.0, %v515
    %517 = vdwg.mxu0
    %v518 = vmax.f32 %v516, -3.0
    %v519 = vmin.f32 %v518, 3.0
    %s520 = sld [smem:[#allocation6 + $0x2]]
    %v521 = vstv %s520
    %vm522 = vcmp.lt.s32.totalorder %v107, %v521
    %v523 = vsel %vm522, 1, 0
    %vm524 = vcmp.eq.s32.totalorder %v523, 1
    %v525 = vsel %vm524, %v519, %v423
    %v526 = vsel %vm524, %v486, %v424
    %527 = vst.msk [vmem:[#allocation3] sm:$0xff] %vm205, %v525
    %528 = vst.msk [vmem:[#allocation4] sm:$0xff] %vm205, %v526
    %529 = vst.msk [vmem:[%s9 + $0x10] sm:$0xff] %vm205, %v525
    %v530 = vld [vmem:[#allocation3] sm:$0xff]
    %v531 = vld [vmem:[#allocation4] sm:$0xff]
    %v532 = vld [vmem:[#allocation2 + $0x18] sm:$0xff]
    %v534 = vsel %vm205, %v530, 0
    %536 = vmatpush.msra.mxu0 0.0
    %537 = vmatpush.msra.mxu0 0.0
    %538 = vmatpush.msra.mxu0 0.0
    %539 = vmatpush.msra.mxu0 0.0
    %540 = vmatpush.msra.mxu0 0.0
    %541 = vmatpush.msra.mxu0 0.0
    %542 = vmatpush.msra.mxu0 0.0
    %543 = vmatpush.msra.mxu0 0.0
    %544 = vmatpush.msra.mxu0 0.0
    %545 = vmatpush.msra.mxu0 0.0
    %546 = vmatpush.msra.mxu0 0.0
    %547 = vmatpush.msra.mxu0 0.0
    %548 = vmatpush.msra.mxu0 %v199
    %549 = vmatpush.msra.mxu0 %v198
    %550 = vmatpush.msra.mxu0 %v197
    %551 = vmatpush.msra.mxu0 %v196
    %552 = vmatmul.f32.gmra.mxu0 %v534
    %v553 = vpop.f32.mrf.mxu0
    %v554 = vadd.f32 0.0, %v553
    %555 = vdwg.mxu0
    %v556 = vadd.f32 %v532, %v554
    %v557 = vxor.u32 %v556, 2147483648
    %v558 = vmul.f32 %v557, 1.442695
    %v559 = vpow.pop %v558
    %v560 = vadd.f32 %v559, 1.0
    %v561 = vrcp.pop %v560
    %v562 = vmul.f32 %v560, %v561
    %v563 = vsub.f32 1.0, %v562
    %v564 = vmul.f32 %v561, %v563
    %v565 = vadd.f32 %v561, %v564
    %vm566 = vweird.f32 %v560
    %vm567 = vweird.f32 %v561
    %vm568 = vmor %vm566, %vm567
    %v569 = vsel %vm568, %v561, %v565
    %v570 = vand.u32 2147483647, %v560
    %vm571 = vcmp.eq.f32.partialorder %v570, 8.507059e+37
    %v572 = vand.u32 %v560, 2147483648
    %v573 = vor.u32 1.1754944e-38, %v572
    %v574 = vsel %vm571, %v573, %v569
    %v575 = vmul.f32 1.0, %v574
    %v576 = vtanh.pop %v556
    %578 = vrot.lane.b32.xlu0 %v576, 64
    %v579 = vpop.permute.xlu0 %578
    %v581 = vmul.f32 %v575, %v579
    %583 = vrot.lane.b32.xlu0 %v531, 32
    %v584 = vpop.permute.xlu0 %583
    %v586 = vmul.f32 %v575, %v584
    %588 = vrot.lane.b32.xlu0 %v586, 96
    %v589 = vpop.permute.xlu0 %588
    %v591 = vadd.f32 %v581, %v589
    %v592 = vmax.f32 %v591, -3.0
    %v593 = vmin.f32 %v592, 3.0
    %v594 = vtanh.pop %v593
    %596 = vrot.lane.b32.xlu0 %v594, 96
    %v597 = vpop.permute.xlu0 %596
    %v599 = vmul.f32 %v575, %v597
    %601 = vrot.lane.b32.xlu0 %v599, 32
    %v602 = vpop.permute.xlu0 %601
    %v603 = vsel %vm205, %v602, 0
    %605 = vmatpush.msra.mxu0 0.0
    %606 = vmatpush.msra.mxu0 0.0
    %607 = vmatpush.msra.mxu0 0.0
    %608 = vmatpush.msra.mxu0 0.0
    %609 = vmatpush.msra.mxu0 0.0
    %610 = vmatpush.msra.mxu0 0.0
    %611 = vmatpush.msra.mxu0 0.0
    %612 = vmatpush.msra.mxu0 0.0
    %613 = vmatpush.msra.mxu0 0.0
    %614 = vmatpush.msra.mxu0 0.0
    %615 = vmatpush.msra.mxu0 0.0
    %616 = vmatpush.msra.mxu0 0.0
    %617 = vmatpush.msra.mxu0 %v203
    %618 = vmatpush.msra.mxu0 %v202
    %619 = vmatpush.msra.mxu0 %v201
    %620 = vmatpush.msra.mxu0 %v200
    %621 = vmatmul.f32.gmra.mxu0 %v603
    %v622 = vpop.f32.mrf.mxu0
    %v623 = vadd.f32 0.0, %v622
    %624 = vdwg.mxu0
    %v625 = vmax.f32 %v623, -3.0
    %v626 = vmin.f32 %v625, 3.0
    %s627 = sld [smem:[#allocation6 + $0x3]]
    %v628 = vstv %s627
    %vm629 = vcmp.lt.s32.totalorder %v107, %v628
    %v630 = vsel %vm629, 1, 0
    %vm631 = vcmp.eq.s32.totalorder %v630, 1
    %v632 = vsel %vm631, %v626, %v530
    %v633 = vsel %vm631, %v593, %v531
    %634 = vst.msk [vmem:[#allocation3] sm:$0xff] %vm205, %v632
    %635 = vst.msk [vmem:[#allocation4] sm:$0xff] %vm205, %v633
    %636 = vst.msk [vmem:[%s9 + $0x18] sm:$0xff] %vm205, %v632
    %v637 = vld [vmem:[#allocation3] sm:$0xff]
    %v638 = vld [vmem:[#allocation4] sm:$0xff]
    %v639 = vld [vmem:[#allocation2 + $0x20] sm:$0xff]
    %v641 = vsel %vm205, %v637, 0
    %643 = vmatpush.msra.mxu0 0.0
    %644 = vmatpush.msra.mxu0 0.0
    %645 = vmatpush.msra.mxu0 0.0
    %646 = vmatpush.msra.mxu0 0.0
    %647 = vmatpush.msra.mxu0 0.0
    %648 = vmatpush.msra.mxu0 0.0
    %649 = vmatpush.msra.mxu0 0.0
    %650 = vmatpush.msra.mxu0 0.0
    %651 = vmatpush.msra.mxu0 0.0
    %652 = vmatpush.msra.mxu0 0.0
    %653 = vmatpush.msra.mxu0 0.0
    %654 = vmatpush.msra.mxu0 0.0
    %655 = vmatpush.msra.mxu0 %v199
    %656 = vmatpush.msra.mxu0 %v198
    %657 = vmatpush.msra.mxu0 %v197
    %658 = vmatpush.msra.mxu0 %v196
    %659 = vmatmul.f32.gmra.mxu0 %v641
    %v660 = vpop.f32.mrf.mxu0
    %v661 = vadd.f32 0.0, %v660
    %662 = vdwg.mxu0
    %v663 = vadd.f32 %v639, %v661
    %v664 = vxor.u32 %v663, 2147483648
    %v665 = vmul.f32 %v664, 1.442695
    %v666 = vpow.pop %v665
    %v667 = vadd.f32 %v666, 1.0
    %v668 = vrcp.pop %v667
    %v669 = vmul.f32 %v667, %v668
    %v670 = vsub.f32 1.0, %v669
    %v671 = vmul.f32 %v668, %v670
    %v672 = vadd.f32 %v668, %v671
    %vm673 = vweird.f32 %v667
    %vm674 = vweird.f32 %v668
    %vm675 = vmor %vm673, %vm674
    %v676 = vsel %vm675, %v668, %v672
    %v677 = vand.u32 2147483647, %v667
    %vm678 = vcmp.eq.f32.partialorder %v677, 8.507059e+37
    %v679 = vand.u32 %v667, 2147483648
    %v680 = vor.u32 1.1754944e-38, %v679
    %v681 = vsel %vm678, %v680, %v676
    %v682 = vmul.f32 1.0, %v681
    %v683 = vtanh.pop %v663
    %685 = vrot.lane.b32.xlu0 %v683, 64
    %v686 = vpop.permute.xlu0 %685
    %v688 = vmul.f32 %v682, %v686
    %690 = vrot.lane.b32.xlu0 %v638, 32
    %v691 = vpop.permute.xlu0 %690
    %v693 = vmul.f32 %v682, %v691
    %695 = vrot.lane.b32.xlu0 %v693, 96
    %v696 = vpop.permute.xlu0 %695
    %v698 = vadd.f32 %v688, %v696
    %v699 = vmax.f32 %v698, -3.0
    %v700 = vmin.f32 %v699, 3.0
    %v701 = vtanh.pop %v700
    %703 = vrot.lane.b32.xlu0 %v701, 96
    %v704 = vpop.permute.xlu0 %703
    %v706 = vmul.f32 %v682, %v704
    %708 = vrot.lane.b32.xlu0 %v706, 32
    %v709 = vpop.permute.xlu0 %708
    %v710 = vsel %vm205, %v709, 0
    %712 = vmatpush.msra.mxu0 0.0
    %713 = vmatpush.msra.mxu0 0.0
    %714 = vmatpush.msra.mxu0 0.0
    %715 = vmatpush.msra.mxu0 0.0
    %716 = vmatpush.msra.mxu0 0.0
    %717 = vmatpush.msra.mxu0 0.0
    %718 = vmatpush.msra.mxu0 0.0
    %719 = vmatpush.msra.mxu0 0.0
    %720 = vmatpush.msra.mxu0 0.0
    %721 = vmatpush.msra.mxu0 0.0
    %722 = vmatpush.msra.mxu0 0.0
    %723 = vmatpush.msra.mxu0 0.0
    %724 = vmatpush.msra.mxu0 %v203
    %725 = vmatpush.msra.mxu0 %v202
    %726 = vmatpush.msra.mxu0 %v201
    %727 = vmatpush.msra.mxu0 %v200
    %728 = vmatmul.f32.gmra.mxu0 %v710
    %v729 = vpop.f32.mrf.mxu0
    %v730 = vadd.f32 0.0, %v729
    %731 = vdwg.mxu0
    %v732 = vmax.f32 %v730, -3.0
    %v733 = vmin.f32 %v732, 3.0
    %s734 = sld [smem:[#allocation6 + $0x4]]
    %v735 = vstv %s734
    %vm736 = vcmp.lt.s32.totalorder %v107, %v735
    %v737 = vsel %vm736, 1, 0
    %vm738 = vcmp.eq.s32.totalorder %v737, 1
    %v739 = vsel %vm738, %v733, %v637
    %v740 = vsel %vm738, %v700, %v638
    %741 = vst.msk [vmem:[#allocation3] sm:$0xff] %vm205, %v739
    %742 = vst.msk [vmem:[#allocation4] sm:$0xff] %vm205, %v740
    %743 = vst.msk [vmem:[%s9 + $0x20] sm:$0xff] %vm205, %v739
    %v744 = vld [vmem:[#allocation3] sm:$0xff]
    %v745 = vld [vmem:[#allocation4] sm:$0xff]
    %v746 = vld [vmem:[#allocation2 + $0x28] sm:$0xff]
    %v748 = vsel %vm205, %v744, 0
    %750 = vmatpush.msra.mxu0 0.0
    %751 = vmatpush.msra.mxu0 0.0
    %752 = vmatpush.msra.mxu0 0.0
    %753 = vmatpush.msra.mxu0 0.0
    %754 = vmatpush.msra.mxu0 0.0
    %755 = vmatpush.msra.mxu0 0.0
    %756 = vmatpush.msra.mxu0 0.0
    %757 = vmatpush.msra.mxu0 0.0
    %758 = vmatpush.msra.mxu0 0.0
    %759 = vmatpush.msra.mxu0 0.0
    %760 = vmatpush.msra.mxu0 0.0
    %761 = vmatpush.msra.mxu0 0.0
    %762 = vmatpush.msra.mxu0 %v199
    %763 = vmatpush.msra.mxu0 %v198
    %764 = vmatpush.msra.mxu0 %v197
    %765 = vmatpush.msra.mxu0 %v196
    %766 = vmatmul.f32.gmra.mxu0 %v748
    %v767 = vpop.f32.mrf.mxu0
    %v768 = vadd.f32 0.0, %v767
    %769 = vdwg.mxu0
    %v770 = vadd.f32 %v746, %v768
    %v771 = vxor.u32 %v770, 2147483648
    %v772 = vmul.f32 %v771, 1.442695
    %v773 = vpow.pop %v772
    %v774 = vadd.f32 %v773, 1.0
    %v775 = vrcp.pop %v774
    %v776 = vmul.f32 %v774, %v775
    %v777 = vsub.f32 1.0, %v776
    %v778 = vmul.f32 %v775, %v777
    %v779 = vadd.f32 %v775, %v778
    %vm780 = vweird.f32 %v774
    %vm781 = vweird.f32 %v775
    %vm782 = vmor %vm780, %vm781
    %v783 = vsel %vm782, %v775, %v779
    %v784 = vand.u32 2147483647, %v774
    %vm785 = vcmp.eq.f32.partialorder %v784, 8.507059e+37
    %v786 = vand.u32 %v774, 2147483648
    %v787 = vor.u32 1.1754944e-38, %v786
    %v788 = vsel %vm785, %v787, %v783
    %v789 = vmul.f32 1.0, %v788
    %v790 = vtanh.pop %v770
    %792 = vrot.lane.b32.xlu0 %v790, 64
    %v793 = vpop.permute.xlu0 %792
    %v795 = vmul.f32 %v789, %v793
    %797 = vrot.lane.b32.xlu0 %v745, 32
    %v798 = vpop.permute.xlu0 %797
    %v800 = vmul.f32 %v789, %v798
    %802 = vrot.lane.b32.xlu0 %v800, 96
    %v803 = vpop.permute.xlu0 %802
    %v805 = vadd.f32 %v795, %v803
    %v806 = vmax.f32 %v805, -3.0
    %v807 = vmin.f32 %v806, 3.0
    %v808 = vtanh.pop %v807
    %810 = vrot.lane.b32.xlu0 %v808, 96
    %v811 = vpop.permute.xlu0 %810
    %v813 = vmul.f32 %v789, %v811
    %815 = vrot.lane.b32.xlu0 %v813, 32
    %v816 = vpop.permute.xlu0 %815
    %v817 = vsel %vm205, %v816, 0
    %819 = vmatpush.msra.mxu0 0.0
    %820 = vmatpush.msra.mxu0 0.0
    %821 = vmatpush.msra.mxu0 0.0
    %822 = vmatpush.msra.mxu0 0.0
    %823 = vmatpush.msra.mxu0 0.0
    %824 = vmatpush.msra.mxu0 0.0
    %825 = vmatpush.msra.mxu0 0.0
    %826 = vmatpush.msra.mxu0 0.0
    %827 = vmatpush.msra.mxu0 0.0
    %828 = vmatpush.msra.mxu0 0.0
    %829 = vmatpush.msra.mxu0 0.0
    %830 = vmatpush.msra.mxu0 0.0
    %831 = vmatpush.msra.mxu0 %v203
    %832 = vmatpush.msra.mxu0 %v202
    %833 = vmatpush.msra.mxu0 %v201
    %834 = vmatpush.msra.mxu0 %v200
    %835 = vmatmul.f32.gmra.mxu0 %v817
    %v836 = vpop.f32.mrf.mxu0
    %v837 = vadd.f32 0.0, %v836
    %838 = vdwg.mxu0
    %v839 = vmax.f32 %v837, -3.0
    %v840 = vmin.f32 %v839, 3.0
    %s841 = sld [smem:[#allocation6 + $0x5]]
    %v842 = vstv %s841
    %vm843 = vcmp.lt.s32.totalorder %v107, %v842
    %v844 = vsel %vm843, 1, 0
    %vm845 = vcmp.eq.s32.totalorder %v844, 1
    %v846 = vsel %vm845, %v840, %v744
    %v847 = vsel %vm845, %v807, %v745
    %848 = vst.msk [vmem:[#allocation3] sm:$0xff] %vm205, %v846
    %849 = vst.msk [vmem:[#allocation4] sm:$0xff] %vm205, %v847
    %850 = vst.msk [vmem:[%s9 + $0x28] sm:$0xff] %vm205, %v846
    %v851 = vld [vmem:[#allocation3] sm:$0xff]
    %v852 = vld [vmem:[#allocation4] sm:$0xff]
    %v853 = vld [vmem:[#allocation2 + $0x30] sm:$0xff]
    %v855 = vsel %vm205, %v851, 0
    %857 = vmatpush.msra.mxu0 0.0
    %858 = vmatpush.msra.mxu0 0.0
    %859 = vmatpush.msra.mxu0 0.0
    %860 = vmatpush.msra.mxu0 0.0
    %861 = vmatpush.msra.mxu0 0.0
    %862 = vmatpush.msra.mxu0 0.0
    %863 = vmatpush.msra.mxu0 0.0
    %864 = vmatpush.msra.mxu0 0.0
    %865 = vmatpush.msra.mxu0 0.0
    %866 = vmatpush.msra.mxu0 0.0
    %867 = vmatpush.msra.mxu0 0.0
    %868 = vmatpush.msra.mxu0 0.0
    %869 = vmatpush.msra.mxu0 %v199
    %870 = vmatpush.msra.mxu0 %v198
    %871 = vmatpush.msra.mxu0 %v197
    %872 = vmatpush.msra.mxu0 %v196
    %873 = vmatmul.f32.gmra.mxu0 %v855
    %v874 = vpop.f32.mrf.mxu0
    %v875 = vadd.f32 0.0, %v874
    %876 = vdwg.mxu0
    %v877 = vadd.f32 %v853, %v875
    %v878 = vxor.u32 %v877, 2147483648
    %v879 = vmul.f32 %v878, 1.442695
    %v880 = vpow.pop %v879
    %v881 = vadd.f32 %v880, 1.0
    %v882 = vrcp.pop %v881
    %v883 = vmul.f32 %v881, %v882
    %v884 = vsub.f32 1.0, %v883
    %v885 = vmul.f32 %v882, %v884
    %v886 = vadd.f32 %v882, %v885
    %vm887 = vweird.f32 %v881
    %vm888 = vweird.f32 %v882
    %vm889 = vmor %vm887, %vm888
    %v890 = vsel %vm889, %v882, %v886
    %v891 = vand.u32 2147483647, %v881
    %vm892 = vcmp.eq.f32.partialorder %v891, 8.507059e+37
    %v893 = vand.u32 %v881, 2147483648
    %v894 = vor.u32 1.1754944e-38, %v893
    %v895 = vsel %vm892, %v894, %v890
    %v896 = vmul.f32 1.0, %v895
    %v897 = vtanh.pop %v877
    %899 = vrot.lane.b32.xlu0 %v897, 64
    %v900 = vpop.permute.xlu0 %899
    %v902 = vmul.f32 %v896, %v900
    %904 = vrot.lane.b32.xlu0 %v852, 32
    %v905 = vpop.permute.xlu0 %904
    %v907 = vmul.f32 %v896, %v905
    %909 = vrot.lane.b32.xlu0 %v907, 96
    %v910 = vpop.permute.xlu0 %909
    %v912 = vadd.f32 %v902, %v910
    %v913 = vmax.f32 %v912, -3.0
    %v914 = vmin.f32 %v913, 3.0
    %v915 = vtanh.pop %v914
    %917 = vrot.lane.b32.xlu0 %v915, 96
    %v918 = vpop.permute.xlu0 %917
    %v920 = vmul.f32 %v896, %v918
    %922 = vrot.lane.b32.xlu0 %v920, 32
    %v923 = vpop.permute.xlu0 %922
    %v924 = vsel %vm205, %v923, 0
    %926 = vmatpush.msra.mxu0 0.0
    %927 = vmatpush.msra.mxu0 0.0
    %928 = vmatpush.msra.mxu0 0.0
    %929 = vmatpush.msra.mxu0 0.0
    %930 = vmatpush.msra.mxu0 0.0
    %931 = vmatpush.msra.mxu0 0.0
    %932 = vmatpush.msra.mxu0 0.0
    %933 = vmatpush.msra.mxu0 0.0
    %934 = vmatpush.msra.mxu0 0.0
    %935 = vmatpush.msra.mxu0 0.0
    %936 = vmatpush.msra.mxu0 0.0
    %937 = vmatpush.msra.mxu0 0.0
    %938 = vmatpush.msra.mxu0 %v203
    %939 = vmatpush.msra.mxu0 %v202
    %940 = vmatpush.msra.mxu0 %v201
    %941 = vmatpush.msra.mxu0 %v200
    %942 = vmatmul.f32.gmra.mxu0 %v924
    %v943 = vpop.f32.mrf.mxu0
    %v944 = vadd.f32 0.0, %v943
    %945 = vdwg.mxu0
    %v946 = vmax.f32 %v944, -3.0
    %v947 = vmin.f32 %v946, 3.0
    %s948 = sld [smem:[#allocation6 + $0x6]]
    %v949 = vstv %s948
    %vm950 = vcmp.lt.s32.totalorder %v107, %v949
    %v951 = vsel %vm950, 1, 0
    %vm952 = vcmp.eq.s32.totalorder %v951, 1
    %v953 = vsel %vm952, %v947, %v851
    %v954 = vsel %vm952, %v914, %v852
    %955 = vst.msk [vmem:[#allocation3] sm:$0xff] %vm205, %v953
    %956 = vst.msk [vmem:[#allocation4] sm:$0xff] %vm205, %v954
    %957 = vst.msk [vmem:[%s9 + $0x30] sm:$0xff] %vm205, %v953
    %v958 = vld [vmem:[#allocation3] sm:$0xff]
    %v959 = vld [vmem:[#allocation4] sm:$0xff]
    %v960 = vld [vmem:[#allocation2 + $0x38] sm:$0xff]
    %v962 = vsel %vm205, %v958, 0
    %964 = vmatpush.msra.mxu0 0.0
    %965 = vmatpush.msra.mxu0 0.0
    %966 = vmatpush.msra.mxu0 0.0
    %967 = vmatpush.msra.mxu0 0.0
    %968 = vmatpush.msra.mxu0 0.0
    %969 = vmatpush.msra.mxu0 0.0
    %970 = vmatpush.msra.mxu0 0.0
    %971 = vmatpush.msra.mxu0 0.0
    %972 = vmatpush.msra.mxu0 0.0
    %973 = vmatpush.msra.mxu0 0.0
    %974 = vmatpush.msra.mxu0 0.0
    %975 = vmatpush.msra.mxu0 0.0
    %976 = vmatpush.msra.mxu0 %v199
    %977 = vmatpush.msra.mxu0 %v198
    %978 = vmatpush.msra.mxu0 %v197
    %979 = vmatpush.msra.mxu0 %v196
    %980 = vmatmul.f32.gmra.mxu0 %v962
    %v981 = vpop.f32.mrf.mxu0
    %v982 = vadd.f32 0.0, %v981
    %983 = vdwg.mxu0
    %v984 = vadd.f32 %v960, %v982
    %v985 = vxor.u32 %v984, 2147483648
    %v986 = vmul.f32 %v985, 1.442695
    %v987 = vpow.pop %v986
    %v988 = vadd.f32 %v987, 1.0
    %v989 = vrcp.pop %v988
    %v990 = vmul.f32 %v988, %v989
    %v991 = vsub.f32 1.0, %v990
    %v992 = vmul.f32 %v989, %v991
    %v993 = vadd.f32 %v989, %v992
    %vm994 = vweird.f32 %v988
    %vm995 = vweird.f32 %v989
    %vm996 = vmor %vm994, %vm995
    %v997 = vsel %vm996, %v989, %v993
    %v998 = vand.u32 2147483647, %v988
    %vm999 = vcmp.eq.f32.partialorder %v998, 8.507059e+37
    %v1000 = vand.u32 %v988, 2147483648
    %v1001 = vor.u32 1.1754944e-38, %v1000
    %v1002 = vsel %vm999, %v1001, %v997
    %v1003 = vmul.f32 1.0, %v1002
    %v1004 = vtanh.pop %v984
    %1006 = vrot.lane.b32.xlu0 %v1004, 64
    %v1007 = vpop.permute.xlu0 %1006
    %v1009 = vmul.f32 %v1003, %v1007
    %1011 = vrot.lane.b32.xlu0 %v959, 32
    %v1012 = vpop.permute.xlu0 %1011
    %v1014 = vmul.f32 %v1003, %v1012
    %1016 = vrot.lane.b32.xlu0 %v1014, 96
    %v1017 = vpop.permute.xlu0 %1016
    %v1019 = vadd.f32 %v1009, %v1017
    %v1020 = vmax.f32 %v1019, -3.0
    %v1021 = vmin.f32 %v1020, 3.0
    %v1022 = vtanh.pop %v1021
    %1024 = vrot.lane.b32.xlu0 %v1022, 96
    %v1025 = vpop.permute.xlu0 %1024
    %v1027 = vmul.f32 %v1003, %v1025
    %1029 = vrot.lane.b32.xlu0 %v1027, 32
    %v1030 = vpop.permute.xlu0 %1029
    %v1031 = vsel %vm205, %v1030, 0
    %1033 = vmatpush.msra.mxu0 0.0
    %1034 = vmatpush.msra.mxu0 0.0
    %1035 = vmatpush.msra.mxu0 0.0
    %1036 = vmatpush.msra.mxu0 0.0
    %1037 = vmatpush.msra.mxu0 0.0
    %1038 = vmatpush.msra.mxu0 0.0
    %1039 = vmatpush.msra.mxu0 0.0
    %1040 = vmatpush.msra.mxu0 0.0
    %1041 = vmatpush.msra.mxu0 0.0
    %1042 = vmatpush.msra.mxu0 0.0
    %1043 = vmatpush.msra.mxu0 0.0
    %1044 = vmatpush.msra.mxu0 0.0
    %1045 = vmatpush.msra.mxu0 %v203
    %1046 = vmatpush.msra.mxu0 %v202
    %1047 = vmatpush.msra.mxu0 %v201
    %1048 = vmatpush.msra.mxu0 %v200
    %1049 = vmatmul.f32.gmra.mxu0 %v1031
    %v1050 = vpop.f32.mrf.mxu0
    %v1051 = vadd.f32 0.0, %v1050
    %1052 = vdwg.mxu0
    %v1053 = vmax.f32 %v1051, -3.0
    %v1054 = vmin.f32 %v1053, 3.0
    %s1055 = sld [smem:[#allocation6 + $0x7]]
    %v1056 = vstv %s1055
    %vm1057 = vcmp.lt.s32.totalorder %v107, %v1056
    %v1058 = vsel %vm1057, 1, 0
    %vm1059 = vcmp.eq.s32.totalorder %v1058, 1
    %v1060 = vsel %vm1059, %v1054, %v958
    %v1061 = vsel %vm1059, %v1021, %v959
    %1062 = vst.msk [vmem:[#allocation3] sm:$0xff] %vm205, %v1060
    %1063 = vst.msk [vmem:[#allocation4] sm:$0xff] %vm205, %v1061
    %1064 = vst.msk [vmem:[%s9 + $0x38] sm:$0xff] %vm205, %v1060
    %v1065 = vld [vmem:[#allocation3] sm:$0xff]
    %1066 = vst.msk [vmem:[#allocation15] sm:$0xff] %vm205, %v1065
    %v1067 = vld [vmem:[#allocation4] sm:$0xff]
    %1068 = vst.msk [vmem:[#allocation16] sm:$0xff] %vm205, %v1067
    %v1069 = vld [vmem:[%s9] sm:$0xff]
    %v1070 = vld [vmem:[%s9 + $0x8] sm:$0xff]
    %v1071 = vld [vmem:[%s9 + $0x10] sm:$0xff]
    %v1072 = vld [vmem:[%s9 + $0x18] sm:$0xff]
    %v1073 = vld [vmem:[%s9 + $0x20] sm:$0xff]
    %v1074 = vld [vmem:[%s9 + $0x28] sm:$0xff]
    %v1075 = vld [vmem:[%s9 + $0x30] sm:$0xff]
    %v1076 = vld [vmem:[%s9 + $0x38] sm:$0xff]
    %s1077 = scalar_lea.vmem %s5, 32
    %v1078 = vld [vmem:[%s1077] sm:$0xff]
    %v1079 = vld [vmem:[%s1077 + $0x8] sm:$0xff]
    %v1080 = vld [vmem:[%s1077 + $0x10] sm:$0xff]
    %v1081 = vld [vmem:[%s1077 + $0x18] sm:$0xff]
    %s1082 = scalar_lea.vmem %s7, 1
    %v1083 = vld [vmem:[%s1082] sm:$0x1]
    %v1085 = vperm.slane %v1083, 0
    %v1088 = vsel %vm205, %v1069, 0
    %v1091 = vsel %vm205, %v1070, 0
    %v1094 = vsel %vm205, %v1071, 0
    %v1097 = vsel %vm205, %v1072, 0
    %v1100 = vsel %vm205, %v1073, 0
    %v1103 = vsel %vm205, %v1074, 0
    %v1106 = vsel %vm205, %v1075, 0
    %v1109 = vsel %vm205, %v1076, 0
    %1111 = vmatpush.msra.mxu0 0.0
    %1112 = vmatpush.msra.mxu0 0.0
    %1113 = vmatpush.msra.mxu0 0.0
    %1114 = vmatpush.msra.mxu0 0.0
    %1115 = vmatpush.msra.mxu0 0.0
    %1116 = vmatpush.msra.mxu0 0.0
    %1117 = vmatpush.msra.mxu0 0.0
    %1118 = vmatpush.msra.mxu0 0.0
    %1119 = vmatpush.msra.mxu0 0.0
    %1120 = vmatpush.msra.mxu0 0.0
    %1121 = vmatpush.msra.mxu0 0.0
    %1122 = vmatpush.msra.mxu0 0.0
    %1123 = vmatpush.msra.mxu0 %v1081
    %1124 = vmatpush.msra.mxu0 %v1080
    %1125 = vmatpush.msra.mxu0 %v1079
    %1126 = vmatpush.msra.mxu0 %v1078
    %1127 = vmatmul.f32.gmra.mxu0 %v1088
    %v1128 = vpop.f32.mrf.mxu0
    %v1129 = vadd.f32 %v1085, %v1128
    %1130 = vmatmul.f32.gmra.mxu0 %v1091
    %v1131 = vpop.f32.mrf.mxu0
    %v1132 = vadd.f32 %v1085, %v1131
    %1133 = vmatmul.f32.gmra.mxu0 %v1094
    %v1134 = vpop.f32.mrf.mxu0
    %v1135 = vadd.f32 %v1085, %v1134
    %1136 = vmatmul.f32.gmra.mxu0 %v1097
    %v1137 = vpop.f32.mrf.mxu0
    %v1138 = vadd.f32 %v1085, %v1137
    %1139 = vmatmul.f32.gmra.mxu0 %v1100
    %v1140 = vpop.f32.mrf.mxu0
    %v1141 = vadd.f32 %v1085, %v1140
    %1142 = vmatmul.f32.gmra.mxu0 %v1103
    %v1143 = vpop.f32.mrf.mxu0
    %v1144 = vadd.f32 %v1085, %v1143
    %1145 = vmatmul.f32.gmra.mxu0 %v1106
    %v1146 = vpop.f32.mrf.mxu0
    %v1147 = vadd.f32 %v1085, %v1146
    %1148 = vmatmul.f32.gmra.mxu0 %v1109
    %v1149 = vpop.f32.mrf.mxu0
    %v1150 = vadd.f32 %v1085, %v1149
    %1151 = vdwg.mxu0
    %1152 = vst [vmem:[#allocation2] sm:$0xff] %v1129
    %1153 = vst [vmem:[#allocation2 + $0x8] sm:$0xff] %v1132
    %1154 = vst [vmem:[#allocation2 + $0x10] sm:$0xff] %v1135
    %1155 = vst [vmem:[#allocation2 + $0x18] sm:$0xff] %v1138
    %1156 = vst [vmem:[#allocation2 + $0x20] sm:$0xff] %v1141
    %1157 = vst [vmem:[#allocation2 + $0x28] sm:$0xff] %v1144
    %1158 = vst [vmem:[#allocation2 + $0x30] sm:$0xff] %v1147
    %1159 = vst [vmem:[#allocation2 + $0x38] sm:$0xff] %v1150
    %s1160 = scalar_lea.vmem [#allocation12], 32
    %v1161 = vld [vmem:[%s1160] sm:$0xff]
    %v1162 = vld [vmem:[%s1160 + $0x8] sm:$0xff]
    %v1163 = vld [vmem:[%s1160 + $0x10] sm:$0xff]
    %v1164 = vld [vmem:[%s1160 + $0x18] sm:$0xff]
    %s1165 = scalar_lea.vmem [#allocation13], 32
    %v1166 = vld [vmem:[%s1165] sm:$0xff]
    %v1167 = vld [vmem:[%s1165 + $0x8] sm:$0xff]
    %v1168 = vld [vmem:[%s1165 + $0x10] sm:$0xff]
    %v1169 = vld [vmem:[%s1165 + $0x18] sm:$0xff]
    %s1170 = scalar_lea.vmem %s2, 8
    %v1171 = vld [vmem:[%s1170] sm:$0xff]
    %1172 = vst.msk [vmem:[#allocation3] sm:$0xff] %vm205, %v1171
    %s1173 = scalar_lea.vmem [#allocation7], 8
    %v1174 = vld [vmem:[%s1173] sm:$0xff]
    %1175 = vst.msk [vmem:[#allocation4] sm:$0xff] %vm205, %v1174
    %v1176 = vld [vmem:[#allocation3] sm:$0xff]
    %v1177 = vld [vmem:[#allocation4] sm:$0xff]
    %v1178 = vld [vmem:[#allocation2] sm:$0xff]
    %v1180 = vsel %vm205, %v1176, 0
    %1182 = vmatpush.msra.mxu0 0.0
    %1183 = vmatpush.msra.mxu0 0.0
    %1184 = vmatpush.msra.mxu0 0.0
    %1185 = vmatpush.msra.mxu0 0.0
    %1186 = vmatpush.msra.mxu0 0.0
    %1187 = vmatpush.msra.mxu0 0.0
    %1188 = vmatpush.msra.mxu0 0.0
    %1189 = vmatpush.msra.mxu0 0.0
    %1190 = vmatpush.msra.mxu0 0.0
    %1191 = vmatpush.msra.mxu0 0.0
    %1192 = vmatpush.msra.mxu0 0.0
    %1193 = vmatpush.msra.mxu0 0.0
    %1194 = vmatpush.msra.mxu0 %v1164
    %1195 = vmatpush.msra.mxu0 %v1163
    %1196 = vmatpush.msra.mxu0 %v1162
    %1197 = vmatpush.msra.mxu0 %v1161
    %1198 = vmatmul.f32.gmra.mxu0 %v1180
    %v1199 = vpop.f32.mrf.mxu0
    %v1200 = vadd.f32 0.0, %v1199
    %1201 = vdwg.mxu0
    %v1202 = vadd.f32 %v1178, %v1200
    %v1203 = vxor.u32 %v1202, 2147483648
    %v1204 = vmul.f32 %v1203, 1.442695
    %v1205 = vpow.pop %v1204
    %v1206 = vadd.f32 %v1205, 1.0
    %v1207 = vrcp.pop %v1206
    %v1208 = vmul.f32 %v1206, %v1207
    %v1209 = vsub.f32 1.0, %v1208
    %v1210 = vmul.f32 %v1207, %v1209
    %v1211 = vadd.f32 %v1207, %v1210
    %vm1212 = vweird.f32 %v1206
    %vm1213 = vweird.f32 %v1207
    %vm1214 = vmor %vm1212, %vm1213
    %v1215 = vsel %vm1214, %v1207, %v1211
    %v1216 = vand.u32 2147483647, %v1206
    %vm1217 = vcmp.eq.f32.partialorder %v1216, 8.507059e+37
    %v1218 = vand.u32 %v1206, 2147483648
    %v1219 = vor.u32 1.1754944e-38, %v1218
    %v1220 = vsel %vm1217, %v1219, %v1215
    %v1221 = vmul.f32 1.0, %v1220
    %v1222 = vtanh.pop %v1202
    %1224 = vrot.lane.b32.xlu0 %v1222, 64
    %v1225 = vpop.permute.xlu0 %1224
    %v1227 = vmul.f32 %v1221, %v1225
    %1229 = vrot.lane.b32.xlu0 %v1177, 32
    %v1230 = vpop.permute.xlu0 %1229
    %v1232 = vmul.f32 %v1221, %v1230
    %1234 = vrot.lane.b32.xlu0 %v1232, 96
    %v1235 = vpop.permute.xlu0 %1234
    %v1237 = vadd.f32 %v1227, %v1235
    %v1238 = vmax.f32 %v1237, -3.0
    %v1239 = vmin.f32 %v1238, 3.0
    %v1240 = vtanh.pop %v1239
    %1242 = vrot.lane.b32.xlu0 %v1240, 96
    %v1243 = vpop.permute.xlu0 %1242
    %v1245 = vmul.f32 %v1221, %v1243
    %1247 = vrot.lane.b32.xlu0 %v1245, 32
    %v1248 = vpop.permute.xlu0 %1247
    %v1249 = vsel %vm205, %v1248, 0
    %1251 = vmatpush.msra.mxu0 0.0
    %1252 = vmatpush.msra.mxu0 0.0
    %1253 = vmatpush.msra.mxu0 0.0
    %1254 = vmatpush.msra.mxu0 0.0
    %1255 = vmatpush.msra.mxu0 0.0
    %1256 = vmatpush.msra.mxu0 0.0
    %1257 = vmatpush.msra.mxu0 0.0
    %1258 = vmatpush.msra.mxu0 0.0
    %1259 = vmatpush.msra.mxu0 0.0
    %1260 = vmatpush.msra.mxu0 0.0
    %1261 = vmatpush.msra.mxu0 0.0
    %1262 = vmatpush.msra.mxu0 0.0
    %1263 = vmatpush.msra.mxu0 %v1169
    %1264 = vmatpush.msra.mxu0 %v1168
    %1265 = vmatpush.msra.mxu0 %v1167
    %1266 = vmatpush.msra.mxu0 %v1166
    %1267 = vmatmul.f32.gmra.mxu0 %v1249
    %v1268 = vpop.f32.mrf.mxu0
    %v1269 = vadd.f32 0.0, %v1268
    %1270 = vdwg.mxu0
    %v1271 = vmax.f32 %v1269, -3.0
    %v1272 = vmin.f32 %v1271, 3.0
    %s1273 = sld [smem:[#allocation6]]
    %v1274 = vstv %s1273
    %vm1275 = vcmp.lt.s32.totalorder %v107, %v1274
    %v1276 = vsel %vm1275, 1, 0
    %vm1277 = vcmp.eq.s32.totalorder %v1276, 1
    %v1278 = vsel %vm1277, %v1272, %v1176
    %v1279 = vsel %vm1277, %v1239, %v1177
    %1280 = vst.msk [vmem:[#allocation3] sm:$0xff] %vm205, %v1278
    %1281 = vst.msk [vmem:[#allocation4] sm:$0xff] %vm205, %v1279
    %1282 = vst.msk [vmem:[%s9 + $0x40] sm:$0xff] %vm205, %v1278
    %v1283 = vld [vmem:[#allocation3] sm:$0xff]
    %v1284 = vld [vmem:[#allocation4] sm:$0xff]
    %v1285 = vld [vmem:[#allocation2 + $0x8] sm:$0xff]
    %v1287 = vsel %vm205, %v1283, 0
    %1289 = vmatpush.msra.mxu0 0.0
    %1290 = vmatpush.msra.mxu0 0.0
    %1291 = vmatpush.msra.mxu0 0.0
    %1292 = vmatpush.msra.mxu0 0.0
    %1293 = vmatpush.msra.mxu0 0.0
    %1294 = vmatpush.msra.mxu0 0.0
    %1295 = vmatpush.msra.mxu0 0.0
    %1296 = vmatpush.msra.mxu0 0.0
    %1297 = vmatpush.msra.mxu0 0.0
    %1298 = vmatpush.msra.mxu0 0.0
    %1299 = vmatpush.msra.mxu0 0.0
    %1300 = vmatpush.msra.mxu0 0.0
    %1301 = vmatpush.msra.mxu0 %v1164
    %1302 = vmatpush.msra.mxu0 %v1163
    %1303 = vmatpush.msra.mxu0 %v1162
    %1304 = vmatpush.msra.mxu0 %v1161
    %1305 = vmatmul.f32.gmra.mxu0 %v1287
    %v1306 = vpop.f32.mrf.mxu0
    %v1307 = vadd.f32 0.0, %v1306
    %1308 = vdwg.mxu0
    %v1309 = vadd.f32 %v1285, %v1307
    %v1310 = vxor.u32 %v1309, 2147483648
    %v1311 = vmul.f32 %v1310, 1.442695
    %v1312 = vpow.pop %v1311
    %v1313 = vadd.f32 %v1312, 1.0
    %v1314 = vrcp.pop %v1313
    %v1315 = vmul.f32 %v1313, %v1314
    %v1316 = vsub.f32 1.0, %v1315
    %v1317 = vmul.f32 %v1314, %v1316
    %v1318 = vadd.f32 %v1314, %v1317
    %vm1319 = vweird.f32 %v1313
    %vm1320 = vweird.f32 %v1314
    %vm1321 = vmor %vm1319, %vm1320
    %v1322 = vsel %vm1321, %v1314, %v1318
    %v1323 = vand.u32 2147483647, %v1313
    %vm1324 = vcmp.eq.f32.partialorder %v1323, 8.507059e+37
    %v1325 = vand.u32 %v1313, 2147483648
    %v1326 = vor.u32 1.1754944e-38, %v1325
    %v1327 = vsel %vm1324, %v1326, %v1322
    %v1328 = vmul.f32 1.0, %v1327
    %v1329 = vtanh.pop %v1309
    %1331 = vrot.lane.b32.xlu0 %v1329, 64
    %v1332 = vpop.permute.xlu0 %1331
    %v1334 = vmul.f32 %v1328, %v1332
    %1336 = vrot.lane.b32.xlu0 %v1284, 32
    %v1337 = vpop.permute.xlu0 %1336
    %v1339 = vmul.f32 %v1328, %v1337
    %1341 = vrot.lane.b32.xlu0 %v1339, 96
    %v1342 = vpop.permute.xlu0 %1341
    %v1344 = vadd.f32 %v1334, %v1342
    %v1345 = vmax.f32 %v1344, -3.0
    %v1346 = vmin.f32 %v1345, 3.0
    %v1347 = vtanh.pop %v1346
    %1349 = vrot.lane.b32.xlu0 %v1347, 96
    %v1350 = vpop.permute.xlu0 %1349
    %v1352 = vmul.f32 %v1328, %v1350
    %1354 = vrot.lane.b32.xlu0 %v1352, 32
    %v1355 = vpop.permute.xlu0 %1354
    %v1356 = vsel %vm205, %v1355, 0
    %1358 = vmatpush.msra.mxu0 0.0
    %1359 = vmatpush.msra.mxu0 0.0
    %1360 = vmatpush.msra.mxu0 0.0
    %1361 = vmatpush.msra.mxu0 0.0
    %1362 = vmatpush.msra.mxu0 0.0
    %1363 = vmatpush.msra.mxu0 0.0
    %1364 = vmatpush.msra.mxu0 0.0
    %1365 = vmatpush.msra.mxu0 0.0
    %1366 = vmatpush.msra.mxu0 0.0
    %1367 = vmatpush.msra.mxu0 0.0
    %1368 = vmatpush.msra.mxu0 0.0
    %1369 = vmatpush.msra.mxu0 0.0
    %1370 = vmatpush.msra.mxu0 %v1169
    %1371 = vmatpush.msra.mxu0 %v1168
    %1372 = vmatpush.msra.mxu0 %v1167
    %1373 = vmatpush.msra.mxu0 %v1166
    %1374 = vmatmul.f32.gmra.mxu0 %v1356
    %v1375 = vpop.f32.mrf.mxu0
    %v1376 = vadd.f32 0.0, %v1375
    %1377 = vdwg.mxu0
    %v1378 = vmax.f32 %v1376, -3.0
    %v1379 = vmin.f32 %v1378, 3.0
    %s1380 = sld [smem:[#allocation6 + $0x1]]
    %v1381 = vstv %s1380
    %vm1382 = vcmp.lt.s32.totalorder %v107, %v1381
    %v1383 = vsel %vm1382, 1, 0
    %vm1384 = vcmp.eq.s32.totalorder %v1383, 1
    %v1385 = vsel %vm1384, %v1379, %v1283
    %v1386 = vsel %vm1384, %v1346, %v1284
    %1387 = vst.msk [vmem:[#allocation3] sm:$0xff] %vm205, %v1385
    %1388 = vst.msk [vmem:[#allocation4] sm:$0xff] %vm205, %v1386
    %1389 = vst.msk [vmem:[%s9 + $0x48] sm:$0xff] %vm205, %v1385
    %v1390 = vld [vmem:[#allocation3] sm:$0xff]
    %v1391 = vld [vmem:[#allocation4] sm:$0xff]
    %v1392 = vld [vmem:[#allocation2 + $0x10] sm:$0xff]
    %v1394 = vsel %vm205, %v1390, 0
    %1396 = vmatpush.msra.mxu0 0.0
    %1397 = vmatpush.msra.mxu0 0.0
    %1398 = vmatpush.msra.mxu0 0.0
    %1399 = vmatpush.msra.mxu0 0.0
    %1400 = vmatpush.msra.mxu0 0.0
    %1401 = vmatpush.msra.mxu0 0.0
    %1402 = vmatpush.msra.mxu0 0.0
    %1403 = vmatpush.msra.mxu0 0.0
    %1404 = vmatpush.msra.mxu0 0.0
    %1405 = vmatpush.msra.mxu0 0.0
    %1406 = vmatpush.msra.mxu0 0.0
    %1407 = vmatpush.msra.mxu0 0.0
    %1408 = vmatpush.msra.mxu0 %v1164
    %1409 = vmatpush.msra.mxu0 %v1163
    %1410 = vmatpush.msra.mxu0 %v1162
    %1411 = vmatpush.msra.mxu0 %v1161
    %1412 = vmatmul.f32.gmra.mxu0 %v1394
    %v1413 = vpop.f32.mrf.mxu0
    %v1414 = vadd.f32 0.0, %v1413
    %1415 = vdwg.mxu0
    %v1416 = vadd.f32 %v1392, %v1414
    %v1417 = vxor.u32 %v1416, 2147483648
    %v1418 = vmul.f32 %v1417, 1.442695
    %v1419 = vpow.pop %v1418
    %v1420 = vadd.f32 %v1419, 1.0
    %v1421 = vrcp.pop %v1420
    %v1422 = vmul.f32 %v1420, %v1421
    %v1423 = vsub.f32 1.0, %v1422
    %v1424 = vmul.f32 %v1421, %v1423
    %v1425 = vadd.f32 %v1421, %v1424
    %vm1426 = vweird.f32 %v1420
    %vm1427 = vweird.f32 %v1421
    %vm1428 = vmor %vm1426, %vm1427
    %v1429 = vsel %vm1428, %v1421, %v1425
    %v1430 = vand.u32 2147483647, %v1420
    %vm1431 = vcmp.eq.f32.partialorder %v1430, 8.507059e+37
    %v1432 = vand.u32 %v1420, 2147483648
    %v1433 = vor.u32 1.1754944e-38, %v1432
    %v1434 = vsel %vm1431, %v1433, %v1429
    %v1435 = vmul.f32 1.0, %v1434
    %v1436 = vtanh.pop %v1416
    %1438 = vrot.lane.b32.xlu0 %v1436, 64
    %v1439 = vpop.permute.xlu0 %1438
    %v1441 = vmul.f32 %v1435, %v1439
    %1443 = vrot.lane.b32.xlu0 %v1391, 32
    %v1444 = vpop.permute.xlu0 %1443
    %v1446 = vmul.f32 %v1435, %v1444
    %1448 = vrot.lane.b32.xlu0 %v1446, 96
    %v1449 = vpop.permute.xlu0 %1448
    %v1451 = vadd.f32 %v1441, %v1449
    %v1452 = vmax.f32 %v1451, -3.0
    %v1453 = vmin.f32 %v1452, 3.0
    %v1454 = vtanh.pop %v1453
    %1456 = vrot.lane.b32.xlu0 %v1454, 96
    %v1457 = vpop.permute.xlu0 %1456
    %v1459 = vmul.f32 %v1435, %v1457
    %1461 = vrot.lane.b32.xlu0 %v1459, 32
    %v1462 = vpop.permute.xlu0 %1461
    %v1463 = vsel %vm205, %v1462, 0
    %1465 = vmatpush.msra.mxu0 0.0
    %1466 = vmatpush.msra.mxu0 0.0
    %1467 = vmatpush.msra.mxu0 0.0
    %1468 = vmatpush.msra.mxu0 0.0
    %1469 = vmatpush.msra.mxu0 0.0
    %1470 = vmatpush.msra.mxu0 0.0
    %1471 = vmatpush.msra.mxu0 0.0
    %1472 = vmatpush.msra.mxu0 0.0
    %1473 = vmatpush.msra.mxu0 0.0
    %1474 = vmatpush.msra.mxu0 0.0
    %1475 = vmatpush.msra.mxu0 0.0
    %1476 = vmatpush.msra.mxu0 0.0
    %1477 = vmatpush.msra.mxu0 %v1169
    %1478 = vmatpush.msra.mxu0 %v1168
    %1479 = vmatpush.msra.mxu0 %v1167
    %1480 = vmatpush.msra.mxu0 %v1166
    %1481 = vmatmul.f32.gmra.mxu0 %v1463
    %v1482 = vpop.f32.mrf.mxu0
    %v1483 = vadd.f32 0.0, %v1482
    %1484 = vdwg.mxu0
    %v1485 = vmax.f32 %v1483, -3.0
    %v1486 = vmin.f32 %v1485, 3.0
    %s1487 = sld [smem:[#allocation6 + $0x2]]
    %v1488 = vstv %s1487
    %vm1489 = vcmp.lt.s32.totalorder %v107, %v1488
    %v1490 = vsel %vm1489, 1, 0
    %vm1491 = vcmp.eq.s32.totalorder %v1490, 1
    %v1492 = vsel %vm1491, %v1486, %v1390
    %v1493 = vsel %vm1491, %v1453, %v1391
    %1494 = vst.msk [vmem:[#allocation3] sm:$0xff] %vm205, %v1492
    %1495 = vst.msk [vmem:[#allocation4] sm:$0xff] %vm205, %v1493
    %1496 = vst.msk [vmem:[%s9 + $0x50] sm:$0xff] %vm205, %v1492
    %v1497 = vld [vmem:[#allocation3] sm:$0xff]
    %v1498 = vld [vmem:[#allocation4] sm:$0xff]
    %v1499 = vld [vmem:[#allocation2 + $0x18] sm:$0xff]
    %v1501 = vsel %vm205, %v1497, 0
    %1503 = vmatpush.msra.mxu0 0.0
    %1504 = vmatpush.msra.mxu0 0.0
    %1505 = vmatpush.msra.mxu0 0.0
    %1506 = vmatpush.msra.mxu0 0.0
    %1507 = vmatpush.msra.mxu0 0.0
    %1508 = vmatpush.msra.mxu0 0.0
    %1509 = vmatpush.msra.mxu0 0.0
    %1510 = vmatpush.msra.mxu0 0.0
    %1511 = vmatpush.msra.mxu0 0.0
    %1512 = vmatpush.msra.mxu0 0.0
    %1513 = vmatpush.msra.mxu0 0.0
    %1514 = vmatpush.msra.mxu0 0.0
    %1515 = vmatpush.msra.mxu0 %v1164
    %1516 = vmatpush.msra.mxu0 %v1163
    %1517 = vmatpush.msra.mxu0 %v1162
    %1518 = vmatpush.msra.mxu0 %v1161
    %1519 = vmatmul.f32.gmra.mxu0 %v1501
    %v1520 = vpop.f32.mrf.mxu0
    %v1521 = vadd.f32 0.0, %v1520
    %1522 = vdwg.mxu0
    %v1523 = vadd.f32 %v1499, %v1521
    %v1524 = vxor.u32 %v1523, 2147483648
    %v1525 = vmul.f32 %v1524, 1.442695
    %v1526 = vpow.pop %v1525
    %v1527 = vadd.f32 %v1526, 1.0
    %v1528 = vrcp.pop %v1527
    %v1529 = vmul.f32 %v1527, %v1528
    %v1530 = vsub.f32 1.0, %v1529
    %v1531 = vmul.f32 %v1528, %v1530
    %v1532 = vadd.f32 %v1528, %v1531
    %vm1533 = vweird.f32 %v1527
    %vm1534 = vweird.f32 %v1528
    %vm1535 = vmor %vm1533, %vm1534
    %v1536 = vsel %vm1535, %v1528, %v1532
    %v1537 = vand.u32 2147483647, %v1527
    %vm1538 = vcmp.eq.f32.partialorder %v1537, 8.507059e+37
    %v1539 = vand.u32 %v1527, 2147483648
    %v1540 = vor.u32 1.1754944e-38, %v1539
    %v1541 = vsel %vm1538, %v1540, %v1536
    %v1542 = vmul.f32 1.0, %v1541
    %v1543 = vtanh.pop %v1523
    %1545 = vrot.lane.b32.xlu0 %v1543, 64
    %v1546 = vpop.permute.xlu0 %1545
    %v1548 = vmul.f32 %v1542, %v1546
    %1550 = vrot.lane.b32.xlu0 %v1498, 32
    %v1551 = vpop.permute.xlu0 %1550
    %v1553 = vmul.f32 %v1542, %v1551
    %1555 = vrot.lane.b32.xlu0 %v1553, 96
    %v1556 = vpop.permute.xlu0 %1555
    %v1558 = vadd.f32 %v1548, %v1556
    %v1559 = vmax.f32 %v1558, -3.0
    %v1560 = vmin.f32 %v1559, 3.0
    %v1561 = vtanh.pop %v1560
    %1563 = vrot.lane.b32.xlu0 %v1561, 96
    %v1564 = vpop.permute.xlu0 %1563
    %v1566 = vmul.f32 %v1542, %v1564
    %1568 = vrot.lane.b32.xlu0 %v1566, 32
    %v1569 = vpop.permute.xlu0 %1568
    %v1570 = vsel %vm205, %v1569, 0
    %1572 = vmatpush.msra.mxu0 0.0
    %1573 = vmatpush.msra.mxu0 0.0
    %1574 = vmatpush.msra.mxu0 0.0
    %1575 = vmatpush.msra.mxu0 0.0
    %1576 = vmatpush.msra.mxu0 0.0
    %1577 = vmatpush.msra.mxu0 0.0
    %1578 = vmatpush.msra.mxu0 0.0
    %1579 = vmatpush.msra.mxu0 0.0
    %1580 = vmatpush.msra.mxu0 0.0
    %1581 = vmatpush.msra.mxu0 0.0
    %1582 = vmatpush.msra.mxu0 0.0
    %1583 = vmatpush.msra.mxu0 0.0
    %1584 = vmatpush.msra.mxu0 %v1169
    %1585 = vmatpush.msra.mxu0 %v1168
    %1586 = vmatpush.msra.mxu0 %v1167
    %1587 = vmatpush.msra.mxu0 %v1166
    %1588 = vmatmul.f32.gmra.mxu0 %v1570
    %v1589 = vpop.f32.mrf.mxu0
    %v1590 = vadd.f32 0.0, %v1589
    %1591 = vdwg.mxu0
    %v1592 = vmax.f32 %v1590, -3.0
    %v1593 = vmin.f32 %v1592, 3.0
    %s1594 = sld [smem:[#allocation6 + $0x3]]
    %v1595 = vstv %s1594
    %vm1596 = vcmp.lt.s32.totalorder %v107, %v1595
    %v1597 = vsel %vm1596, 1, 0
    %vm1598 = vcmp.eq.s32.totalorder %v1597, 1
    %v1599 = vsel %vm1598, %v1593, %v1497
    %v1600 = vsel %vm1598, %v1560, %v1498
    %1601 = vst.msk [vmem:[#allocation3] sm:$0xff] %vm205, %v1599
    %1602 = vst.msk [vmem:[#allocation4] sm:$0xff] %vm205, %v1600
    %1603 = vst.msk [vmem:[%s9 + $0x58] sm:$0xff] %vm205, %v1599
    %v1604 = vld [vmem:[#allocation3] sm:$0xff]
    %v1605 = vld [vmem:[#allocation4] sm:$0xff]
    %v1606 = vld [vmem:[#allocation2 + $0x20] sm:$0xff]
    %v1608 = vsel %vm205, %v1604, 0
    %1610 = vmatpush.msra.mxu0 0.0
    %1611 = vmatpush.msra.mxu0 0.0
    %1612 = vmatpush.msra.mxu0 0.0
    %1613 = vmatpush.msra.mxu0 0.0
    %1614 = vmatpush.msra.mxu0 0.0
    %1615 = vmatpush.msra.mxu0 0.0
    %1616 = vmatpush.msra.mxu0 0.0
    %1617 = vmatpush.msra.mxu0 0.0
    %1618 = vmatpush.msra.mxu0 0.0
    %1619 = vmatpush.msra.mxu0 0.0
    %1620 = vmatpush.msra.mxu0 0.0
    %1621 = vmatpush.msra.mxu0 0.0
    %1622 = vmatpush.msra.mxu0 %v1164
    %1623 = vmatpush.msra.mxu0 %v1163
    %1624 = vmatpush.msra.mxu0 %v1162
    %1625 = vmatpush.msra.mxu0 %v1161
    %1626 = vmatmul.f32.gmra.mxu0 %v1608
    %v1627 = vpop.f32.mrf.mxu0
    %v1628 = vadd.f32 0.0, %v1627
    %1629 = vdwg.mxu0
    %v1630 = vadd.f32 %v1606, %v1628
    %v1631 = vxor.u32 %v1630, 2147483648
    %v1632 = vmul.f32 %v1631, 1.442695
    %v1633 = vpow.pop %v1632
    %v1634 = vadd.f32 %v1633, 1.0
    %v1635 = vrcp.pop %v1634
    %v1636 = vmul.f32 %v1634, %v1635
    %v1637 = vsub.f32 1.0, %v1636
    %v1638 = vmul.f32 %v1635, %v1637
    %v1639 = vadd.f32 %v1635, %v1638
    %vm1640 = vweird.f32 %v1634
    %vm1641 = vweird.f32 %v1635
    %vm1642 = vmor %vm1640, %vm1641
    %v1643 = vsel %vm1642, %v1635, %v1639
    %v1644 = vand.u32 2147483647, %v1634
    %vm1645 = vcmp.eq.f32.partialorder %v1644, 8.507059e+37
    %v1646 = vand.u32 %v1634, 2147483648
    %v1647 = vor.u32 1.1754944e-38, %v1646
    %v1648 = vsel %vm1645, %v1647, %v1643
    %v1649 = vmul.f32 1.0, %v1648
    %v1650 = vtanh.pop %v1630
    %1652 = vrot.lane.b32.xlu0 %v1650, 64
    %v1653 = vpop.permute.xlu0 %1652
    %v1655 = vmul.f32 %v1649, %v1653
    %1657 = vrot.lane.b32.xlu0 %v1605, 32
    %v1658 = vpop.permute.xlu0 %1657
    %v1660 = vmul.f32 %v1649, %v1658
    %1662 = vrot.lane.b32.xlu0 %v1660, 96
    %v1663 = vpop.permute.xlu0 %1662
    %v1665 = vadd.f32 %v1655, %v1663
    %v1666 = vmax.f32 %v1665, -3.0
    %v1667 = vmin.f32 %v1666, 3.0
    %v1668 = vtanh.pop %v1667
    %1670 = vrot.lane.b32.xlu0 %v1668, 96
    %v1671 = vpop.permute.xlu0 %1670
    %v1673 = vmul.f32 %v1649, %v1671
    %1675 = vrot.lane.b32.xlu0 %v1673, 32
    %v1676 = vpop.permute.xlu0 %1675
    %v1677 = vsel %vm205, %v1676, 0
    %1679 = vmatpush.msra.mxu0 0.0
    %1680 = vmatpush.msra.mxu0 0.0
    %1681 = vmatpush.msra.mxu0 0.0
    %1682 = vmatpush.msra.mxu0 0.0
    %1683 = vmatpush.msra.mxu0 0.0
    %1684 = vmatpush.msra.mxu0 0.0
    %1685 = vmatpush.msra.mxu0 0.0
    %1686 = vmatpush.msra.mxu0 0.0
    %1687 = vmatpush.msra.mxu0 0.0
    %1688 = vmatpush.msra.mxu0 0.0
    %1689 = vmatpush.msra.mxu0 0.0
    %1690 = vmatpush.msra.mxu0 0.0
    %1691 = vmatpush.msra.mxu0 %v1169
    %1692 = vmatpush.msra.mxu0 %v1168
    %1693 = vmatpush.msra.mxu0 %v1167
    %1694 = vmatpush.msra.mxu0 %v1166
    %1695 = vmatmul.f32.gmra.mxu0 %v1677
    %v1696 = vpop.f32.mrf.mxu0
    %v1697 = vadd.f32 0.0, %v1696
    %1698 = vdwg.mxu0
    %v1699 = vmax.f32 %v1697, -3.0
    %v1700 = vmin.f32 %v1699, 3.0
    %s1701 = sld [smem:[#allocation6 + $0x4]]
    %v1702 = vstv %s1701
    %vm1703 = vcmp.lt.s32.totalorder %v107, %v1702
    %v1704 = vsel %vm1703, 1, 0
    %vm1705 = vcmp.eq.s32.totalorder %v1704, 1
    %v1706 = vsel %vm1705, %v1700, %v1604
    %v1707 = vsel %vm1705, %v1667, %v1605
    %1708 = vst.msk [vmem:[#allocation3] sm:$0xff] %vm205, %v1706
    %1709 = vst.msk [vmem:[#allocation4] sm:$0xff] %vm205, %v1707
    %1710 = vst.msk [vmem:[%s9 + $0x60] sm:$0xff] %vm205, %v1706
    %v1711 = vld [vmem:[#allocation3] sm:$0xff]
    %v1712 = vld [vmem:[#allocation4] sm:$0xff]
    %v1713 = vld [vmem:[#allocation2 + $0x28] sm:$0xff]
    %v1715 = vsel %vm205, %v1711, 0
    %1717 = vmatpush.msra.mxu0 0.0
    %1718 = vmatpush.msra.mxu0 0.0
    %1719 = vmatpush.msra.mxu0 0.0
    %1720 = vmatpush.msra.mxu0 0.0
    %1721 = vmatpush.msra.mxu0 0.0
    %1722 = vmatpush.msra.mxu0 0.0
    %1723 = vmatpush.msra.mxu0 0.0
    %1724 = vmatpush.msra.mxu0 0.0
    %1725 = vmatpush.msra.mxu0 0.0
    %1726 = vmatpush.msra.mxu0 0.0
    %1727 = vmatpush.msra.mxu0 0.0
    %1728 = vmatpush.msra.mxu0 0.0
    %1729 = vmatpush.msra.mxu0 %v1164
    %1730 = vmatpush.msra.mxu0 %v1163
    %1731 = vmatpush.msra.mxu0 %v1162
    %1732 = vmatpush.msra.mxu0 %v1161
    %1733 = vmatmul.f32.gmra.mxu0 %v1715
    %v1734 = vpop.f32.mrf.mxu0
    %v1735 = vadd.f32 0.0, %v1734
    %1736 = vdwg.mxu0
    %v1737 = vadd.f32 %v1713, %v1735
    %v1738 = vxor.u32 %v1737, 2147483648
    %v1739 = vmul.f32 %v1738, 1.442695
    %v1740 = vpow.pop %v1739
    %v1741 = vadd.f32 %v1740, 1.0
    %v1742 = vrcp.pop %v1741
    %v1743 = vmul.f32 %v1741, %v1742
    %v1744 = vsub.f32 1.0, %v1743
    %v1745 = vmul.f32 %v1742, %v1744
    %v1746 = vadd.f32 %v1742, %v1745
    %vm1747 = vweird.f32 %v1741
    %vm1748 = vweird.f32 %v1742
    %vm1749 = vmor %vm1747, %vm1748
    %v1750 = vsel %vm1749, %v1742, %v1746
    %v1751 = vand.u32 2147483647, %v1741
    %vm1752 = vcmp.eq.f32.partialorder %v1751, 8.507059e+37
    %v1753 = vand.u32 %v1741, 2147483648
    %v1754 = vor.u32 1.1754944e-38, %v1753
    %v1755 = vsel %vm1752, %v1754, %v1750
    %v1756 = vmul.f32 1.0, %v1755
    %v1757 = vtanh.pop %v1737
    %1759 = vrot.lane.b32.xlu0 %v1757, 64
    %v1760 = vpop.permute.xlu0 %1759
    %v1762 = vmul.f32 %v1756, %v1760
    %1764 = vrot.lane.b32.xlu0 %v1712, 32
    %v1765 = vpop.permute.xlu0 %1764
    %v1767 = vmul.f32 %v1756, %v1765
    %1769 = vrot.lane.b32.xlu0 %v1767, 96
    %v1770 = vpop.permute.xlu0 %1769
    %v1772 = vadd.f32 %v1762, %v1770
    %v1773 = vmax.f32 %v1772, -3.0
    %v1774 = vmin.f32 %v1773, 3.0
    %v1775 = vtanh.pop %v1774
    %1777 = vrot.lane.b32.xlu0 %v1775, 96
    %v1778 = vpop.permute.xlu0 %1777
    %v1780 = vmul.f32 %v1756, %v1778
    %1782 = vrot.lane.b32.xlu0 %v1780, 32
    %v1783 = vpop.permute.xlu0 %1782
    %v1784 = vsel %vm205, %v1783, 0
    %1786 = vmatpush.msra.mxu0 0.0
    %1787 = vmatpush.msra.mxu0 0.0
    %1788 = vmatpush.msra.mxu0 0.0
    %1789 = vmatpush.msra.mxu0 0.0
    %1790 = vmatpush.msra.mxu0 0.0
    %1791 = vmatpush.msra.mxu0 0.0
    %1792 = vmatpush.msra.mxu0 0.0
    %1793 = vmatpush.msra.mxu0 0.0
    %1794 = vmatpush.msra.mxu0 0.0
    %1795 = vmatpush.msra.mxu0 0.0
    %1796 = vmatpush.msra.mxu0 0.0
    %1797 = vmatpush.msra.mxu0 0.0
    %1798 = vmatpush.msra.mxu0 %v1169
    %1799 = vmatpush.msra.mxu0 %v1168
    %1800 = vmatpush.msra.mxu0 %v1167
    %1801 = vmatpush.msra.mxu0 %v1166
    %1802 = vmatmul.f32.gmra.mxu0 %v1784
    %v1803 = vpop.f32.mrf.mxu0
    %v1804 = vadd.f32 0.0, %v1803
    %1805 = vdwg.mxu0
    %v1806 = vmax.f32 %v1804, -3.0
    %v1807 = vmin.f32 %v1806, 3.0
    %s1808 = sld [smem:[#allocation6 + $0x5]]
    %v1809 = vstv %s1808
    %vm1810 = vcmp.lt.s32.totalorder %v107, %v1809
    %v1811 = vsel %vm1810, 1, 0
    %vm1812 = vcmp.eq.s32.totalorder %v1811, 1
    %v1813 = vsel %vm1812, %v1807, %v1711
    %v1814 = vsel %vm1812, %v1774, %v1712
    %1815 = vst.msk [vmem:[#allocation3] sm:$0xff] %vm205, %v1813
    %1816 = vst.msk [vmem:[#allocation4] sm:$0xff] %vm205, %v1814
    %1817 = vst.msk [vmem:[%s9 + $0x68] sm:$0xff] %vm205, %v1813
    %v1818 = vld [vmem:[#allocation3] sm:$0xff]
    %v1819 = vld [vmem:[#allocation4] sm:$0xff]
    %v1820 = vld [vmem:[#allocation2 + $0x30] sm:$0xff]
    %v1822 = vsel %vm205, %v1818, 0
    %1824 = vmatpush.msra.mxu0 0.0
    %1825 = vmatpush.msra.mxu0 0.0
    %1826 = vmatpush.msra.mxu0 0.0
    %1827 = vmatpush.msra.mxu0 0.0
    %1828 = vmatpush.msra.mxu0 0.0
    %1829 = vmatpush.msra.mxu0 0.0
    %1830 = vmatpush.msra.mxu0 0.0
    %1831 = vmatpush.msra.mxu0 0.0
    %1832 = vmatpush.msra.mxu0 0.0
    %1833 = vmatpush.msra.mxu0 0.0
    %1834 = vmatpush.msra.mxu0 0.0
    %1835 = vmatpush.msra.mxu0 0.0
    %1836 = vmatpush.msra.mxu0 %v1164
    %1837 = vmatpush.msra.mxu0 %v1163
    %1838 = vmatpush.msra.mxu0 %v1162
    %1839 = vmatpush.msra.mxu0 %v1161
    %1840 = vmatmul.f32.gmra.mxu0 %v1822
    %v1841 = vpop.f32.mrf.mxu0
    %v1842 = vadd.f32 0.0, %v1841
    %1843 = vdwg.mxu0
    %v1844 = vadd.f32 %v1820, %v1842
    %v1845 = vxor.u32 %v1844, 2147483648
    %v1846 = vmul.f32 %v1845, 1.442695
    %v1847 = vpow.pop %v1846
    %v1848 = vadd.f32 %v1847, 1.0
    %v1849 = vrcp.pop %v1848
    %v1850 = vmul.f32 %v1848, %v1849
    %v1851 = vsub.f32 1.0, %v1850
    %v1852 = vmul.f32 %v1849, %v1851
    %v1853 = vadd.f32 %v1849, %v1852
    %vm1854 = vweird.f32 %v1848
    %vm1855 = vweird.f32 %v1849
    %vm1856 = vmor %vm1854, %vm1855
    %v1857 = vsel %vm1856, %v1849, %v1853
    %v1858 = vand.u32 2147483647, %v1848
    %vm1859 = vcmp.eq.f32.partialorder %v1858, 8.507059e+37
    %v1860 = vand.u32 %v1848, 2147483648
    %v1861 = vor.u32 1.1754944e-38, %v1860
    %v1862 = vsel %vm1859, %v1861, %v1857
    %v1863 = vmul.f32 1.0, %v1862
    %v1864 = vtanh.pop %v1844
    %1866 = vrot.lane.b32.xlu0 %v1864, 64
    %v1867 = vpop.permute.xlu0 %1866
    %v1869 = vmul.f32 %v1863, %v1867
    %1871 = vrot.lane.b32.xlu0 %v1819, 32
    %v1872 = vpop.permute.xlu0 %1871
    %v1874 = vmul.f32 %v1863, %v1872
    %1876 = vrot.lane.b32.xlu0 %v1874, 96
    %v1877 = vpop.permute.xlu0 %1876
    %v1879 = vadd.f32 %v1869, %v1877
    %v1880 = vmax.f32 %v1879, -3.0
    %v1881 = vmin.f32 %v1880, 3.0
    %v1882 = vtanh.pop %v1881
    %1884 = vrot.lane.b32.xlu0 %v1882, 96
    %v1885 = vpop.permute.xlu0 %1884
    %v1887 = vmul.f32 %v1863, %v1885
    %1889 = vrot.lane.b32.xlu0 %v1887, 32
    %v1890 = vpop.permute.xlu0 %1889
    %v1891 = vsel %vm205, %v1890, 0
    %1893 = vmatpush.msra.mxu0 0.0
    %1894 = vmatpush.msra.mxu0 0.0
    %1895 = vmatpush.msra.mxu0 0.0
    %1896 = vmatpush.msra.mxu0 0.0
    %1897 = vmatpush.msra.mxu0 0.0
    %1898 = vmatpush.msra.mxu0 0.0
    %1899 = vmatpush.msra.mxu0 0.0
    %1900 = vmatpush.msra.mxu0 0.0
    %1901 = vmatpush.msra.mxu0 0.0
    %1902 = vmatpush.msra.mxu0 0.0
    %1903 = vmatpush.msra.mxu0 0.0
    %1904 = vmatpush.msra.mxu0 0.0
    %1905 = vmatpush.msra.mxu0 %v1169
    %1906 = vmatpush.msra.mxu0 %v1168
    %1907 = vmatpush.msra.mxu0 %v1167
    %1908 = vmatpush.msra.mxu0 %v1166
    %1909 = vmatmul.f32.gmra.mxu0 %v1891
    %v1910 = vpop.f32.mrf.mxu0
    %v1911 = vadd.f32 0.0, %v1910
    %1912 = vdwg.mxu0
    %v1913 = vmax.f32 %v1911, -3.0
    %v1914 = vmin.f32 %v1913, 3.0
    %s1915 = sld [smem:[#allocation6 + $0x6]]
    %v1916 = vstv %s1915
    %vm1917 = vcmp.lt.s32.totalorder %v107, %v1916
    %v1918 = vsel %vm1917, 1, 0
    %vm1919 = vcmp.eq.s32.totalorder %v1918, 1
    %v1920 = vsel %vm1919, %v1914, %v1818
    %v1921 = vsel %vm1919, %v1881, %v1819
    %1922 = vst.msk [vmem:[#allocation3] sm:$0xff] %vm205, %v1920
    %1923 = vst.msk [vmem:[#allocation4] sm:$0xff] %vm205, %v1921
    %1924 = vst.msk [vmem:[%s9 + $0x70] sm:$0xff] %vm205, %v1920
    %v1925 = vld [vmem:[#allocation3] sm:$0xff]
    %v1926 = vld [vmem:[#allocation4] sm:$0xff]
    %v1927 = vld [vmem:[#allocation2 + $0x38] sm:$0xff]
    %v1929 = vsel %vm205, %v1925, 0
    %1931 = vmatpush.msra.mxu0 0.0
    %1932 = vmatpush.msra.mxu0 0.0
    %1933 = vmatpush.msra.mxu0 0.0
    %1934 = vmatpush.msra.mxu0 0.0
    %1935 = vmatpush.msra.mxu0 0.0
    %1936 = vmatpush.msra.mxu0 0.0
    %1937 = vmatpush.msra.mxu0 0.0
    %1938 = vmatpush.msra.mxu0 0.0
    %1939 = vmatpush.msra.mxu0 0.0
    %1940 = vmatpush.msra.mxu0 0.0
    %1941 = vmatpush.msra.mxu0 0.0
    %1942 = vmatpush.msra.mxu0 0.0
    %1943 = vmatpush.msra.mxu0 %v1164
    %1944 = vmatpush.msra.mxu0 %v1163
    %1945 = vmatpush.msra.mxu0 %v1162
    %1946 = vmatpush.msra.mxu0 %v1161
    %1947 = vmatmul.f32.gmra.mxu0 %v1929
    %v1948 = vpop.f32.mrf.mxu0
    %v1949 = vadd.f32 0.0, %v1948
    %1950 = vdwg.mxu0
    %v1951 = vadd.f32 %v1927, %v1949
    %v1952 = vxor.u32 %v1951, 2147483648
    %v1953 = vmul.f32 %v1952, 1.442695
    %v1954 = vpow.pop %v1953
    %v1955 = vadd.f32 %v1954, 1.0
    %v1956 = vrcp.pop %v1955
    %v1957 = vmul.f32 %v1955, %v1956
    %v1958 = vsub.f32 1.0, %v1957
    %v1959 = vmul.f32 %v1956, %v1958
    %v1960 = vadd.f32 %v1956, %v1959
    %vm1961 = vweird.f32 %v1955
    %vm1962 = vweird.f32 %v1956
    %vm1963 = vmor %vm1961, %vm1962
    %v1964 = vsel %vm1963, %v1956, %v1960
    %v1965 = vand.u32 2147483647, %v1955
    %vm1966 = vcmp.eq.f32.partialorder %v1965, 8.507059e+37
    %v1967 = vand.u32 %v1955, 2147483648
    %v1968 = vor.u32 1.1754944e-38, %v1967
    %v1969 = vsel %vm1966, %v1968, %v1964
    %v1970 = vmul.f32 1.0, %v1969
    %v1971 = vtanh.pop %v1951
    %1973 = vrot.lane.b32.xlu0 %v1971, 64
    %v1974 = vpop.permute.xlu0 %1973
    %v1976 = vmul.f32 %v1970, %v1974
    %1978 = vrot.lane.b32.xlu0 %v1926, 32
    %v1979 = vpop.permute.xlu0 %1978
    %v1981 = vmul.f32 %v1970, %v1979
    %1983 = vrot.lane.b32.xlu0 %v1981, 96
    %v1984 = vpop.permute.xlu0 %1983
    %v1986 = vadd.f32 %v1976, %v1984
    %v1987 = vmax.f32 %v1986, -3.0
    %v1988 = vmin.f32 %v1987, 3.0
    %v1989 = vtanh.pop %v1988
    %1991 = vrot.lane.b32.xlu0 %v1989, 96
    %v1992 = vpop.permute.xlu0 %1991
    %v1994 = vmul.f32 %v1970, %v1992
    %1996 = vrot.lane.b32.xlu0 %v1994, 32
    %v1997 = vpop.permute.xlu0 %1996
    %v1998 = vsel %vm205, %v1997, 0
    %2000 = vmatpush.msra.mxu0 0.0
    %2001 = vmatpush.msra.mxu0 0.0
    %2002 = vmatpush.msra.mxu0 0.0
    %2003 = vmatpush.msra.mxu0 0.0
    %2004 = vmatpush.msra.mxu0 0.0
    %2005 = vmatpush.msra.mxu0 0.0
    %2006 = vmatpush.msra.mxu0 0.0
    %2007 = vmatpush.msra.mxu0 0.0
    %2008 = vmatpush.msra.mxu0 0.0
    %2009 = vmatpush.msra.mxu0 0.0
    %2010 = vmatpush.msra.mxu0 0.0
    %2011 = vmatpush.msra.mxu0 0.0
    %2012 = vmatpush.msra.mxu0 %v1169
    %2013 = vmatpush.msra.mxu0 %v1168
    %2014 = vmatpush.msra.mxu0 %v1167
    %2015 = vmatpush.msra.mxu0 %v1166
    %2016 = vmatmul.f32.gmra.mxu0 %v1998
    %v2017 = vpop.f32.mrf.mxu0
    %v2018 = vadd.f32 0.0, %v2017
    %2019 = vdwg.mxu0
    %v2020 = vmax.f32 %v2018, -3.0
    %v2021 = vmin.f32 %v2020, 3.0
    %s2022 = sld [smem:[#allocation6 + $0x7]]
    %v2023 = vstv %s2022
    %vm2024 = vcmp.lt.s32.totalorder %v107, %v2023
    %v2025 = vsel %vm2024, 1, 0
    %vm2026 = vcmp.eq.s32.totalorder %v2025, 1
    %v2027 = vsel %vm2026, %v2021, %v1925
    %v2028 = vsel %vm2026, %v1988, %v1926
    %2029 = vst.msk [vmem:[#allocation3] sm:$0xff] %vm205, %v2027
    %2030 = vst.msk [vmem:[#allocation4] sm:$0xff] %vm205, %v2028
    %2031 = vst.msk [vmem:[%s9 + $0x78] sm:$0xff] %vm205, %v2027
    %v2032 = vld [vmem:[#allocation3] sm:$0xff]
    %s2033 = scalar_lea.vmem [#allocation15], 8
    %2034 = vst.msk [vmem:[%s2033] sm:$0xff] %vm205, %v2032
    %v2035 = vld [vmem:[#allocation4] sm:$0xff]
    %s2036 = scalar_lea.vmem [#allocation16], 8
    %2037 = vst.msk [vmem:[%s2036] sm:$0xff] %vm205, %v2035
    // Predicated region
    $region50: #{tpu_custom_call.1} parent=1 // pred_check
      _
    $region51: #{tpu_custom_call.1} parent=1 // pred_check_branch
      %2039 = sbr.rel (0) target = $region53
    $region52: #{tpu_custom_call.1} parent=1 // pred_region
      _
    $region53: #{tpu_custom_call.1} parent=1 // pred_fallthru
      _
    // Predicated region
    $region54: #{tpu_custom_call.1} parent=1 // pred_check
      _
    $region55: #{tpu_custom_call.1} parent=1 // pred_check_branch
      %2041 = sbr.rel (0) target = $region57
    $region56: #{tpu_custom_call.1} parent=1 // pred_region
      %2043 = vsyncadd [#allocation9], 0
      %s2044 = sshll.u32 [#allocation15], 4
      %s2045 = int_to_ptr.vmem [resolvable:$true] %s2044
      %s2046 = sshll.u32 %s10, 4
      %s2047 = int_to_ptr.hbm [resolvable:$true] %s2046
      %2052 = dma.vmem_to_hbm [thread:$0]  %s2045, 256, %s2047, [#allocation9], 128, 128, 8
    $region57: #{tpu_custom_call.1} parent=1 // pred_fallthru
      _
    // Predicated region
    $region58: #{tpu_custom_call.1} parent=1 // pred_check
      _
    $region59: #{tpu_custom_call.1} parent=1 // pred_check_branch
      %2054 = sbr.rel (0) target = $region61
    $region60: #{tpu_custom_call.1} parent=1 // pred_region
      %2056 = vsyncadd [#allocation17], 0
      %s2057 = sshll.u32 [#allocation16], 4
      %s2058 = int_to_ptr.vmem [resolvable:$true] %s2057
      %s2059 = sshll.u32 %s11, 4
      %s2060 = int_to_ptr.hbm [resolvable:$true] %s2059
      %2065 = dma.vmem_to_hbm [thread:$0]  %s2058, 256, %s2060, [#allocation17], 128, 128, 8
    $region61: #{tpu_custom_call.1} parent=1 // pred_fallthru
      _
    // Predicated region
    $region62: #{tpu_custom_call.1} parent=1 // pred_check
      _
    $region63: #{tpu_custom_call.1} parent=1 // pred_check_branch
      %2067 = sbr.rel (0) target = $region65
    $region64: #{tpu_custom_call.1} parent=1 // pred_region
      _
    $region65: #{tpu_custom_call.1} parent=1 // pred_fallthru
      _
    // Predicated region
    $region66: #{tpu_custom_call.1} parent=1 // pred_check
      _
    $region67: #{tpu_custom_call.1} parent=1 // pred_check_branch
      %2069 = sbr.rel (0) target = $region69
    $region68: #{tpu_custom_call.1} parent=1 // pred_region
      %2071 = dma.done [#allocation9], 256
    $region69: #{tpu_custom_call.1} parent=1 // pred_fallthru
      _
    // Predicated region
    $region70: #{tpu_custom_call.1} parent=1 // pred_check
      _
    $region71: #{tpu_custom_call.1} parent=1 // pred_check_branch
      %2073 = sbr.rel (0) target = $region73
    $region72: #{tpu_custom_call.1} parent=1 // pred_region
      %2075 = dma.done [#allocation17], 256
    $region73: #{tpu_custom_call.1} parent=1 // pred_fallthru
      _
    %2076 = vsyncpa [#allocation8], 1
    %2077 = vsyncpa [#allocation11], 1
    %2078 = vsyncpa [#allocation14], 1
    %2079 = vsyncpa [#allocation9], 1
    %2080 = vsyncpa [#allocation17], 1

</llo_original>
